<compile_context>
chip_gen: v6e
topology: v6e:2x2x1
jax: 0.10.0
libtpu: 0.0.40
codegen_flags: <defaults>
</compile_context>

<pallas_src>
import jax
import jax.numpy as jnp
from jax import lax
from jax.experimental import pallas as pl
from jax.experimental.pallas import tpu as pltpu


_TT = 4  # timesteps per recurrence grid step (4-8 amortizes per-step overhead)


def _round_up(x, m):
    return (x + m - 1) // m * m


def _vmem_spec():
    return pl.BlockSpec(memory_space=pltpu.MemorySpace.VMEM)


# ----------------------------------------------------------------------------
# Kernel 1: hoisted input projection  gx = x @ W_ih^T + b   (one big matmul)
# ----------------------------------------------------------------------------
def input_projection_kernel(x_ref, w_ref, b_ref, gx_ref):
    # x_ref: (rm, I) bf16; w_ref: (I, 4Hp) bf16; b_ref: (1, 4Hp) f32
    # gx_ref: (rm, 4Hp) bf16  (f32 accumulate, bf16 store)
    acc = jnp.dot(x_ref[...], w_ref[...], preferred_element_type=jnp.float32)
    gx_ref[...] = (acc + b_ref[...]).astype(gx_ref.dtype)


# ----------------------------------------------------------------------------
# Kernel 2: LSTM recurrence, TT timesteps per grid step (state in VMEM scratch)
# ----------------------------------------------------------------------------
def lstm_recurrence_kernel(min_ref, len_ref, gx_ref, w_hh_ref, hn_ref,
                           h_scr, c_scr):
    # min_ref:  (1,)          int32 min(lengths)  (SMEM)
    # len_ref:  (B, 1)        int32 valid lengths
    # gx_ref:   (TT, B, 4Hp)  bf16 precomputed x@W_ih + b for TT steps (streamed)
    # w_hh_ref: (Hp, 4Hp)     bf16 recurrent weights (VMEM-resident)
    # hn_ref:   (B, Hp)       f32 output: hidden state at last valid step
    tb = pl.program_id(0)
    TT = gx_ref.shape[0]
    Hp = h_scr.shape[1]
    t0 = tb * TT

    @pl.when(tb == 0)
    def _init():
        h_scr[...] = jnp.zeros_like(h_scr)
        c_scr[...] = jnp.zeros_like(c_scr)

    w_hh = w_hh_ref[...]

    def cell(h, c, gx_t):
        # f32 accumulation; bf16 MXU operands.
        gates = gx_t.astype(jnp.float32) + jnp.dot(
            h.astype(jnp.bfloat16), w_hh, preferred_element_type=jnp.float32)
        # PyTorch gate order: input, forget, cell(g), output.  Slices are
        # lane-aligned because Hp is a multiple of 128.
        i_g = jax.nn.sigmoid(gates[:, 0 * Hp:1 * Hp])
        f_g = jax.nn.sigmoid(gates[:, 1 * Hp:2 * Hp])
        g_g = jnp.tanh(gates[:, 2 * Hp:3 * Hp])
        o_g = jax.nn.sigmoid(gates[:, 3 * Hp:4 * Hp])
        c_new = f_g * c + i_g * g_g
        h_new = o_g * jnp.tanh(c_new)
        return h_new, c_new

    # Block fully inside min(lengths): no masking needed on any of its steps.
    fully_valid = (t0 + TT) <= min_ref[0]

    @pl.when(fully_valid)
    def _fast():
        def body(i, carry):
            h, c = carry
            return cell(h, c, gx_ref[i])
        h, c = lax.fori_loop(0, TT, body, (h_scr[...], c_scr[...]), unroll=True)
        h_scr[...] = h
        c_scr[...] = c

    @pl.when(jnp.logical_not(fully_valid))
    def _masked():
        lens = len_ref[...]                      # (B, 1) int32

        def body(i, carry):
            h, c = carry
            h_new, c_new = cell(h, c, gx_ref[i])
            valid = (t0 + i) < lens              # packed-sequence semantics
            return jnp.where(valid, h_new, h), jnp.where(valid, c_new, c)
        h, c = lax.fori_loop(0, TT, body, (h_scr[...], c_scr[...]), unroll=True)
        h_scr[...] = h
        c_scr[...] = c

    @pl.when(tb == pl.num_programs(0) - 1)
    def _finalize():
        hn_ref[...] = h_scr[...]


# ----------------------------------------------------------------------------
# Kernel 3: MLP head  linear1->BN->ReLU->linear2->BN->ReLU->linear3->softmax
# ----------------------------------------------------------------------------
def head_kernel(h_ref, w1_ref, b1_ref, g1_ref, be1_ref,
                w2_ref, b2_ref, g2_ref, be2_ref,
                w3_ref, b3_ref,
                res_ref, out2_ref):
    eps = 1e-5

    def batchnorm(z, gamma, beta):
        # BatchNorm1d in training mode: biased batch statistics over batch dim
        mu = jnp.mean(z, axis=0, keepdims=True)
        var = jnp.mean((z - mu) ** 2, axis=0, keepdims=True)
        return (z - mu) * lax.rsqrt(var + eps) * gamma + beta

    h = h_ref[...].astype(jnp.bfloat16)                                   # (B, H)
    z1 = jnp.dot(h, w1_ref[...], preferred_element_type=jnp.float32) + b1_ref[...]
    a1 = jnp.maximum(batchnorm(z1, g1_ref[...], be1_ref[...]), 0.0)       # (B, 1024)

    z2 = jnp.dot(a1.astype(jnp.bfloat16), w2_ref[...],
                 preferred_element_type=jnp.float32) + b2_ref[...]
    a2 = jnp.maximum(batchnorm(z2, g2_ref[...], be2_ref[...]), 0.0)       # (B, 256)
    out2_ref[...] = a2

    # Lane-dense (128-wide) logits; padded classes carry a -1e9 bias so they
    # vanish under softmax.  Real classes are sliced out in the wrapper.
    logits = jnp.dot(a2.astype(jnp.bfloat16), w3_ref[...],
                     preferred_element_type=jnp.float32) + b3_ref[...]
    m = jnp.max(logits, axis=1, keepdims=True)
    e = jnp.exp(logits - m)
    denom = jnp.sum(e, axis=1, keepdims=True)
    res_ref[...] = e * pl.reciprocal(denom, approx=True)


# ----------------------------------------------------------------------------
# Wrapper
# ----------------------------------------------------------------------------
@jax.jit
def lstm_forward(padded_sequence, input_lengths, params):
    """padded_sequence: (B, T, I) float32 (batch_first, like the PyTorch module).
    input_lengths: (B,) int (sorted descending, as pack_padded_sequence requires).
    Returns (results, hidden_output, outputs) matching the PyTorch forward."""
    B, T, I = padded_sequence.shape
    H = params["w_hh_t"].shape[0]
    Hp = _round_up(H, 128)                 # lane-aligned gate blocks
    NC = params["w3"].shape[1]
    NCp = _round_up(NC, 128)               # lane-dense softmax output
    bf = jnp.bfloat16

    # ---- parameter prep (pad gates / classes; cast matmul weights to bf16) ---
    def pad_gates(w):                      # (rows, 4H) -> (rows, 4*Hp)
        r = w.shape[0]
        w4 = jnp.pad(w.reshape(r, 4, H), ((0, 0), (0, 0), (0, Hp - H)))
        return w4.reshape(r, 4 * Hp)

    w_ih_p = pad_gates(params["w_ih_t"]).astype(bf)                        # (I, 4Hp)
    w_hh_p = jnp.pad(pad_gates(params["w_hh_t"]),
                     ((0, Hp - H), (0, 0))).astype(bf)                     # (Hp, 4Hp)
    b_p = pad_gates(params["b_lstm"])                                      # (1, 4Hp) f32
    w1_b = params["w1"].astype(bf)
    w2_b = params["w2"].astype(bf)
    w3_p = jnp.pad(params["w3"], ((0, 0), (0, NCp - NC))).astype(bf)       # (256, NCp)
    b3_p = jnp.pad(params["b3"], ((0, 0), (0, NCp - NC)), constant_values=-1e9)

    # ---- 1) hoisted input projection: one large matmul over all timesteps ---
    # Time-major so the recurrence can stream contiguous (TT, B, 4Hp) tiles.
    TT = min(_TT, T)
    Tp = _round_up(T, TT)
    x_tm = jnp.transpose(padded_sequence, (1, 0, 2))          # (T, B, I)
    if Tp > T:                                                # pad time so TT | Tp
        x_tm = jnp.pad(x_tm, ((0, Tp - T), (0, 0), (0, 0)))
    x_flat = x_tm.reshape(Tp * B, I).astype(bf)

    TB = Tp * B
    if TB <= 1024:
        rm, TBp = TB, TB
    else:
        rm = 1024                                             # big mem-bound tiles
        TBp = _round_up(TB, rm)                               # avoid masked last tile
        x_flat = jnp.pad(x_flat, ((0, TBp - TB), (0, 0)))

    gx_flat = pl.pallas_call(
        input_projection_kernel,
        out_shape=jax.ShapeDtypeStruct((TBp, 4 * Hp), bf),
        grid=(TBp // rm,),
        in_specs=[pl.BlockSpec((rm, I), lambda r: (r, 0)),
                  pl.BlockSpec((I, 4 * Hp), lambda r: (0, 0)),
                  pl.BlockSpec((1, 4 * Hp), lambda r: (0, 0))],
        out_specs=pl.BlockSpec((rm, 4 * Hp), lambda r: (r, 0)),
        compiler_params=pltpu.CompilerParams(
            dimension_semantics=("parallel",),
            vmem_limit_bytes=32 * 1024 * 1024),
    )(x_flat, w_ih_p, b_p)
    gx = gx_flat[:TB].reshape(Tp, B, 4 * Hp)                  # time-major bf16 gates

    # ---- 2) recurrence: TT-step blocks streamed, h/c in f32 scratch ---------
    # NOTE: on v7x a leading "parallel" batch-tile axis (bt multiple of 8) would
    # split the recurrence across the two TensorCores; omitted at this tiny B.
    lengths_i32 = input_lengths.astype(jnp.int32)
    min_len = jnp.min(lengths_i32).reshape(1)
    len2d = lengths_i32.reshape(B, 1)
    hn_p = pl.pallas_call(
        lstm_recurrence_kernel,
        out_shape=jax.ShapeDtypeStruct((B, Hp), jnp.float32),
        grid=(Tp // TT,),
        in_specs=[pl.BlockSpec(memory_space=pltpu.MemorySpace.SMEM),      # min_len
                  pl.BlockSpec((B, 1), lambda t: (0, 0)),                 # lengths
                  pl.BlockSpec((TT, B, 4 * Hp), lambda t: (t, 0, 0)),     # gx stream
                  pl.BlockSpec((Hp, 4 * Hp), lambda t: (0, 0))],          # w_hh
        out_specs=pl.BlockSpec((B, Hp), lambda t: (0, 0)),
        scratch_shapes=[pltpu.VMEM((B, Hp), jnp.float32),
                        pltpu.VMEM((B, Hp), jnp.float32)],
        compiler_params=pltpu.CompilerParams(
            dimension_semantics=("arbitrary",),          # state carried across T
            vmem_limit_bytes=32 * 1024 * 1024),          # fits v7x's 64 MiB VMEM
    )(min_len, len2d, gx, w_hh_p)
    hn = hn_p[:, :H]                                      # drop lane padding

    # ---- 3) MLP head (single block; full batch resident for BatchNorm) -----
    res_p, outputs = pl.pallas_call(
        head_kernel,
        out_shape=(jax.ShapeDtypeStruct((B, NCp), jnp.float32),
                   jax.ShapeDtypeStruct((B, 256), jnp.float32)),
        in_specs=[_vmem_spec()] * 11,
        out_specs=(_vmem_spec(), _vmem_spec()),
    )(hn,
      w1_b, params["b1"], params["g1"], params["be1"],
      w2_b, params["b2"], params["g2"], params["be2"],
      w3_p, b3_p)
    results = res_p[:, :NC]

    return results, hn, outputs


# ----------------------------------------------------------------------------
# Pure-JAX reference (mirrors the kernels' bf16 storage / f32 accumulation so
# the check isolates the Pallas plumbing; bf16-vs-f32 drift is expected
# mixed-precision behavior, not a kernel bug).
# ----------------------------------------------------------------------------
def reference_forward(padded_sequence, input_lengths, params):
    bf = jnp.bfloat16
    B, T, I = padded_sequence.shape
    H = params["w_hh_t"].shape[0]
    lengths = input_lengths.astype(jnp.int32)

    w_ih = params["w_ih_t"].astype(bf)
    w_hh = params["w_hh_t"].astype(bf)

    x_tm = jnp.transpose(padded_sequence, (1, 0, 2)).astype(bf)    # (T, B, I)
    gx = (jnp.dot(x_tm.reshape(T * B, I), w_ih,
                  preferred_element_type=jnp.float32)
          + params["b_lstm"]).astype(bf).reshape(T, B, 4 * H)

    def step(carry, inp):
        h, c = carry
        gx_t, t = inp
        gates = gx_t.astype(jnp.float32) + jnp.dot(
            h.astype(bf), w_hh, preferred_element_type=jnp.float32)
        i_g, f_g, g_g, o_g = jnp.split(gates, 4, axis=1)
        i_g, f_g, o_g = jax.nn.sigmoid(i_g), jax.nn.sigmoid(f_g), jax.nn.sigmoid(o_g)
        g_g = jnp.tanh(g_g)
        c_new = f_g * c + i_g * g_g
        h_new = o_g * jnp.tanh(c_new)
        m = (t < lengths)[:, None]
        return (jnp.where(m, h_new, h), jnp.where(m, c_new, c)), None

    h0 = jnp.zeros((B, H), jnp.float32)
    c0 = jnp.zeros((B, H), jnp.float32)
    (hn, _), _ = lax.scan(step, (h0, c0), (gx, jnp.arange(T)))

    def bn(z, g, b):
        mu = jnp.mean(z, axis=0, keepdims=True)
        var = jnp.mean((z - mu) ** 2, axis=0, keepdims=True)
        return (z - mu) * lax.rsqrt(var + 1e-5) * g + b

    a1 = jnp.maximum(bn(jnp.dot(hn.astype(bf), params["w1"].astype(bf),
                                preferred_element_type=jnp.float32) + params["b1"],
                        params["g1"], params["be1"]), 0.0)
    a2 = jnp.maximum(bn(jnp.dot(a1.astype(bf), params["w2"].astype(bf),
                                preferred_element_type=jnp.float32) + params["b2"],
                        params["g2"], params["be2"]), 0.0)
    logits = jnp.dot(a2.astype(bf), params["w3"].astype(bf),
                     preferred_element_type=jnp.float32) + params["b3"]
    return jax.nn.softmax(logits, axis=1), hn, a2


# ----------------------------------------------------------------------------
# Deterministic parameter init (shapes from the module's __init__)
# ----------------------------------------------------------------------------
def init_params(key, input_size, hidden_size):
    ks = jax.random.split(key, 16)
    H, I = hidden_size, input_size
    s_lstm = 1.0 / jnp.sqrt(H)

    def u(k, shape, scale):
        return jax.random.uniform(k, shape, jnp.float32, -scale, scale)

    w_ih = u(ks[0], (4 * H, I), s_lstm)          # PyTorch layout (4H, I)
    w_hh = u(ks[1], (4 * H, H), s_lstm)
    b_ih = u(ks[2], (4 * H,), s_lstm)
    b_hh = u(ks[3], (4 * H,), s_lstm)

    return {
        "w_ih_t": w_ih.T,                                     # (I, 4H)
        "w_hh_t": w_hh.T,                                     # (H, 4H)
        "b_lstm": (b_ih + b_hh).reshape(1, 4 * H),            # (1, 4H)
        # linear1: H -> 1024
        "w1": u(ks[4], (H, 1024), 1.0 / jnp.sqrt(H)),
        "b1": u(ks[5], (1, 1024), 1.0 / jnp.sqrt(H)),
        "g1": 1.0 + 0.1 * jax.random.normal(ks[6], (1, 1024), jnp.float32),
        "be1": 0.1 * jax.random.normal(ks[7], (1, 1024), jnp.float32),
        # linear2: 1024 -> 256
        "w2": u(ks[8], (1024, 256), 1.0 / jnp.sqrt(1024.0)),
        "b2": u(ks[9], (1, 256), 1.0 / jnp.sqrt(1024.0)),
        "g2": 1.0 + 0.1 * jax.random.normal(ks[10], (1, 256), jnp.float32),
        "be2": 0.1 * jax.random.normal(ks[11], (1, 256), jnp.float32),
        # linear3: 256 -> 11
        "w3": u(ks[12], (256, 11), 1.0 / jnp.sqrt(256.0)),
        "b3": u(ks[13], (1, 11), 1.0 / jnp.sqrt(256.0)),
    }


if __name__ == "__main__":
    B, T, I, H = 8, 8, 16, 32

    key = jax.random.PRNGKey(0)
    k_param, k_x = jax.random.split(key)
    params = init_params(k_param, input_size=I, hidden_size=H)

    x = jax.random.normal(k_x, (B, T, I), jnp.float32)        # (B, T, I) batch-first
    # sorted descending (as pack_padded_sequence requires); min length 4 so the
    # recurrence exercises both the unmasked fast path and the masked tail path.
    lengths = jnp.array([8, 8, 7, 7, 6, 6, 5, 4], dtype=jnp.int32)

    results, hidden_output, outputs = lstm_forward(x, lengths, params)
    jax.block_until_ready((results, hidden_output, outputs))

    # sanity check against pure-JAX reference (same bf16 storage precision)
    r_ref, h_ref, o_ref = reference_forward(x, lengths, params)
    assert results.shape == (B, 11) and hidden_output.shape == (B, H) and outputs.shape == (B, 256)
    assert jnp.allclose(hidden_output, h_ref, atol=2e-3, rtol=2e-3)
    assert jnp.allclose(outputs, o_ref, atol=5e-3, rtol=5e-3)
    # softmax uses pl.reciprocal(approx=True) -> slightly looser tolerance
    assert jnp.allclose(results, r_ref, atol=5e-3, rtol=5e-3)
    assert jnp.allclose(jnp.sum(results, axis=1), 1.0, atol=2e-3)

    print("KERNEL_OK")
</pallas_src>

<mosaic_0001>
module attributes {stable_mosaic.version = 11 : i64} {
  func.func @input_projection_kernel(%arg0: i32, %arg1: memref<64x16xbf16, #tpu.memory_space<vmem>>, %arg2: memref<16x512xbf16, #tpu.memory_space<vmem>>, %arg3: memref<1x512xf32, #tpu.memory_space<vmem>>, %arg4: memref<64x512xbf16, #tpu.memory_space<vmem>>) attributes {dimension_semantics = [#tpu.dimension_semantics<parallel>], iteration_bounds = array<i64: 1>, scalar_prefetch = 0 : i64, scratch_operands = 0 : i64, tpu.core_type = #tpu.core_type<tc>, window_params = [{transform_indices = @transform_0, window_bounds = array<i64: 64, 16>}, {pipeline_mode = #tpu.pipeline_mode<synchronous>, transform_indices = @transform_1, window_bounds = array<i64: 16, 512>}, {pipeline_mode = #tpu.pipeline_mode<synchronous>, transform_indices = @transform_2, window_bounds = array<i64: 1, 512>}, {transform_indices = @transform_3, window_bounds = array<i64: 64, 512>}]} {
    %c0 = arith.constant 0 : index
    %c0_0 = arith.constant 0 : index
    %0 = vector.load %arg1[%c0, %c0_0] : memref<64x16xbf16, #tpu.memory_space<vmem>>, vector<64x16xbf16>
    %c0_1 = arith.constant 0 : index
    %c0_2 = arith.constant 0 : index
    %1 = vector.load %arg2[%c0_1, %c0_2] : memref<16x512xbf16, #tpu.memory_space<vmem>>, vector<16x512xbf16>
    %cst = arith.constant dense<0.000000e+00> : vector<64x512xf32>
    %2 = tpu.matmul %0, %1, %cst {dimension_numbers = #tpu.dot_dimension_numbers<[1], [0], [0], [1], [0, 0, 1, 1], [], []>} : vector<64x16xbf16>, vector<16x512xbf16>, vector<64x512xf32> -> vector<64x512xf32>
    %c0_3 = arith.constant 0 : index
    %c0_4 = arith.constant 0 : index
    %3 = vector.load %arg3[%c0_3, %c0_4] : memref<1x512xf32, #tpu.memory_space<vmem>>, vector<1x512xf32>
    %4 = vector.broadcast %3 : vector<1x512xf32> to vector<64x512xf32>
    %5 = arith.addf %2, %4 : vector<64x512xf32>
    %6 = arith.truncf %5 : vector<64x512xf32> to vector<64x512xbf16>
    %c0_5 = arith.constant 0 : index
    %c0_6 = arith.constant 0 : index
    %7 = vector.load %arg4[%c0_5, %c0_6] : memref<64x512xbf16, #tpu.memory_space<vmem>>, vector<64x512xbf16>
    tpu.vector_store %arg4[%c0_5, %c0_6], %6 {strides = array<i32>} : memref<64x512xbf16, #tpu.memory_space<vmem>>, vector<64x512xbf16>,
    return
  }
  func.func @transform_0(%arg0: i32) -> (i32, i32) {
    %c0_i32 = arith.constant 0 : i32
    %c0_i32_0 = arith.constant 0 : i32
    return %arg0, %c0_i32 : i32, i32
  }
  func.func @transform_1(%arg0: i32) -> (i32, i32) {
    %c0_i32 = arith.constant 0 : i32
    %c0_i32_0 = arith.constant 0 : i32
    %c0_i32_1 = arith.constant 0 : i32
    return %c0_i32, %c0_i32_0 : i32, i32
  }
  func.func @transform_2(%arg0: i32) -> (i32, i32) {
    %c0_i32 = arith.constant 0 : i32
    %c0_i32_0 = arith.constant 0 : i32
    %c0_i32_1 = arith.constant 0 : i32
    return %c0_i32, %c0_i32_0 : i32, i32
  }
  func.func @transform_3(%arg0: i32) -> (i32, i32) {
    %c0_i32 = arith.constant 0 : i32
    %c0_i32_0 = arith.constant 0 : i32
    return %arg0, %c0_i32 : i32, i32
  }
}

module attributes {stable_mosaic.version = 11 : i64} {
  func.func @lstm_recurrence_kernel(%arg0: i32, %arg1: memref<1xi32, #tpu.memory_space<smem>>, %arg2: memref<8x1xi32, #tpu.memory_space<vmem>>, %arg3: memref<4x8x512xbf16, #tpu.memory_space<vmem>>, %arg4: memref<128x512xbf16, #tpu.memory_space<vmem>>, %arg5: memref<8x128xf32, #tpu.memory_space<vmem>>, %arg6: memref<8x128xf32, #tpu.memory_space<vmem>>, %arg7: memref<8x128xf32, #tpu.memory_space<vmem>>) attributes {dimension_semantics = [#tpu.dimension_semantics<arbitrary>], iteration_bounds = array<i64: 2>, scalar_prefetch = 0 : i64, scratch_operands = 2 : i64, tpu.core_type = #tpu.core_type<tc>, window_params = [{transform_indices = @transform_0, window_bounds = array<i64: 1>}, {pipeline_mode = #tpu.pipeline_mode<synchronous>, transform_indices = @transform_1, window_bounds = array<i64: 8, 1>}, {transform_indices = @transform_2, window_bounds = array<i64: 4, 8, 512>}, {pipeline_mode = #tpu.pipeline_mode<synchronous>, transform_indices = @transform_3, window_bounds = array<i64: 128, 512>}, {pipeline_mode = #tpu.pipeline_mode<synchronous>, transform_indices = @transform_4, window_bounds = array<i64: 8, 128>}]} {
    %c4_i32 = arith.constant 4 : i32
    %0 = arith.muli %arg0, %c4_i32 : i32
    %c0_i32 = arith.constant 0 : i32
    %1 = arith.cmpi eq, %arg0, %c0_i32 : i32
    %2 = arith.extui %1 : i1 to i32
    %c0_i32_0 = arith.constant 0 : i32
    %3 = arith.cmpi ne, %2, %c0_i32_0 : i32
    scf.if %3 {
      %cst = arith.constant 0.000000e+00 : f32
      %16 = vector.broadcast %cst : f32 to vector<8x128xf32>
      %c0_7 = arith.constant 0 : index
      %c0_8 = arith.constant 0 : index
      %17 = vector.load %arg6[%c0_7, %c0_8] : memref<8x128xf32, #tpu.memory_space<vmem>>, vector<8x128xf32>
      tpu.vector_store %arg6[%c0_7, %c0_8], %16 {strides = array<i32>} : memref<8x128xf32, #tpu.memory_space<vmem>>, vector<8x128xf32>,
      %cst_9 = arith.constant 0.000000e+00 : f32
      %18 = vector.broadcast %cst_9 : f32 to vector<8x128xf32>
      %c0_10 = arith.constant 0 : index
      %c0_11 = arith.constant 0 : index
      %19 = vector.load %arg7[%c0_10, %c0_11] : memref<8x128xf32, #tpu.memory_space<vmem>>, vector<8x128xf32>
      tpu.vector_store %arg7[%c0_10, %c0_11], %18 {strides = array<i32>} : memref<8x128xf32, #tpu.memory_space<vmem>>, vector<8x128xf32>,
    } else {
    }
    %c0 = arith.constant 0 : index
    %c0_1 = arith.constant 0 : index
    %4 = vector.load %arg4[%c0, %c0_1] : memref<128x512xbf16, #tpu.memory_space<vmem>>, vector<128x512xbf16>
    %c4_i32_2 = arith.constant 4 : i32
    %5 = arith.addi %0, %c4_i32_2 : i32
    %c0_3 = arith.constant 0 : index
    %6 = memref.load %arg1[%c0_3] : memref<1xi32, #tpu.memory_space<smem>>
    %7 = arith.cmpi sle, %5, %6 : i32
    %8 = arith.extui %7 : i1 to i32
    %c0_i32_4 = arith.constant 0 : i32
    %9 = arith.cmpi ne, %8, %c0_i32_4 : i32
    scf.if %9 {
      %c0_7 = arith.constant 0 : index
      %c0_8 = arith.constant 0 : index
      %16 = vector.load %arg6[%c0_7, %c0_8] : memref<8x128xf32, #tpu.memory_space<vmem>>, vector<8x128xf32>
      %c0_9 = arith.constant 0 : index
      %c0_10 = arith.constant 0 : index
      %17 = vector.load %arg7[%c0_9, %c0_10] : memref<8x128xf32, #tpu.memory_space<vmem>>, vector<8x128xf32>
      %c0_i32_11 = arith.constant 0 : i32
      %18 = arith.index_cast %c0_i32_11 : i32 to index
      %c0_12 = arith.constant 0 : index
      %c0_13 = arith.constant 0 : index
      %19 = vector.load %arg3[%18, %c0_12, %c0_13] : memref<4x8x512xbf16, #tpu.memory_space<vmem>>, vector<1x8x512xbf16>
      %20 = vector.shape_cast %19 : vector<1x8x512xbf16> to vector<8x512xbf16>
      %21 = arith.extf %20 : vector<8x512xbf16> to vector<8x512xf32>
      %22 = arith.truncf %16 : vector<8x128xf32> to vector<8x128xbf16>
      %cst = arith.constant dense<0.000000e+00> : vector<8x512xf32>
      %23 = tpu.matmul %22, %4, %cst {dimension_numbers = #tpu.dot_dimension_numbers<[1], [0], [0], [1], [0, 0, 1, 1], [], []>} : vector<8x128xbf16>, vector<128x512xbf16>, vector<8x512xf32> -> vector<8x512xf32>
      %24 = arith.addf %21, %23 : vector<8x512xf32>
      %25 = vector.extract_strided_slice %24 {offsets = [0, 0], sizes = [8, 128], strides = [1, 1]} : vector<8x512xf32> to vector<8x128xf32>
      %26 = arith.negf %25 : vector<8x128xf32>
      %27 = math.exp %26 : vector<8x128xf32>
      %cst_14 = arith.constant 1.000000e+00 : f32
      %28 = vector.broadcast %cst_14 : f32 to vector<8x128xf32>
      %29 = arith.addf %28, %27 : vector<8x128xf32>
      %30 = arith.divf %28, %29 : vector<8x128xf32>
      %31 = vector.extract_strided_slice %24 {offsets = [0, 128], sizes = [8, 128], strides = [1, 1]} : vector<8x512xf32> to vector<8x128xf32>
      %32 = arith.negf %31 : vector<8x128xf32>
      %33 = math.exp %32 : vector<8x128xf32>
      %cst_15 = arith.constant 1.000000e+00 : f32
      %34 = vector.broadcast %cst_15 : f32 to vector<8x128xf32>
      %35 = arith.addf %34, %33 : vector<8x128xf32>
      %36 = arith.divf %34, %35 : vector<8x128xf32>
      %37 = vector.extract_strided_slice %24 {offsets = [0, 256], sizes = [8, 128], strides = [1, 1]} : vector<8x512xf32> to vector<8x128xf32>
      %38 = math.tanh %37 : vector<8x128xf32>
      %39 = vector.extract_strided_slice %24 {offsets = [0, 384], sizes = [8, 128], strides = [1, 1]} : vector<8x512xf32> to vector<8x128xf32>
      %40 = arith.negf %39 : vector<8x128xf32>
      %41 = math.exp %40 : vector<8x128xf32>
      %cst_16 = arith.constant 1.000000e+00 : f32
      %42 = vector.broadcast %cst_16 : f32 to vector<8x128xf32>
      %43 = arith.addf %42, %41 : vector<8x128xf32>
      %44 = arith.divf %42, %43 : vector<8x128xf32>
      %45 = arith.mulf %36, %17 : vector<8x128xf32>
      %46 = arith.mulf %30, %38 : vector<8x128xf32>
      %47 = arith.addf %45, %46 : vector<8x128xf32>
      %48 = math.tanh %47 : vector<8x128xf32>
      %49 = arith.mulf %44, %48 : vector<8x128xf32>
      %c1_i32_17 = arith.constant 1 : i32
      %50 = arith.index_cast %c1_i32_17 : i32 to index
      %c0_18 = arith.constant 0 : index
      %c0_19 = arith.constant 0 : index
      %51 = vector.load %arg3[%50, %c0_18, %c0_19] : memref<4x8x512xbf16, #tpu.memory_space<vmem>>, vector<1x8x512xbf16>
      %52 = vector.shape_cast %51 : vector<1x8x512xbf16> to vector<8x512xbf16>
      %53 = arith.extf %52 : vector<8x512xbf16> to vector<8x512xf32>
      %54 = arith.truncf %49 : vector<8x128xf32> to vector<8x128xbf16>
      %cst_20 = arith.constant dense<0.000000e+00> : vector<8x512xf32>
      %55 = tpu.matmul %54, %4, %cst_20 {dimension_numbers = #tpu.dot_dimension_numbers<[1], [0], [0], [1], [0, 0, 1, 1], [], []>} : vector<8x128xbf16>, vector<128x512xbf16>, vector<8x512xf32> -> vector<8x512xf32>
      %56 = arith.addf %53, %55 : vector<8x512xf32>
      %57 = vector.extract_strided_slice %56 {offsets = [0, 0], sizes = [8, 128], strides = [1, 1]} : vector<8x512xf32> to vector<8x128xf32>
      %58 = arith.negf %57 : vector<8x128xf32>
      %59 = math.exp %58 : vector<8x128xf32>
      %cst_21 = arith.constant 1.000000e+00 : f32
      %60 = vector.broadcast %cst_21 : f32 to vector<8x128xf32>
      %61 = arith.addf %60, %59 : vector<8x128xf32>
      %62 = arith.divf %60, %61 : vector<8x128xf32>
      %63 = vector.extract_strided_slice %56 {offsets = [0, 128], sizes = [8, 128], strides = [1, 1]} : vector<8x512xf32> to vector<8x128xf32>
      %64 = arith.negf %63 : vector<8x128xf32>
      %65 = math.exp %64 : vector<8x128xf32>
      %cst_22 = arith.constant 1.000000e+00 : f32
      %66 = vector.broadcast %cst_22 : f32 to vector<8x128xf32>
      %67 = arith.addf %66, %65 : vector<8x128xf32>
      %68 = arith.divf %66, %67 : vector<8x128xf32>
      %69 = vector.extract_strided_slice %56 {offsets = [0, 256], sizes = [8, 128], strides = [1, 1]} : vector<8x512xf32> to vector<8x128xf32>
      %70 = math.tanh %69 : vector<8x128xf32>
      %71 = vector.extract_strided_slice %56 {offsets = [0, 384], sizes = [8, 128], strides = [1, 1]} : vector<8x512xf32> to vector<8x128xf32>
      %72 = arith.negf %71 : vector<8x128xf32>
      %73 = math.exp %72 : vector<8x128xf32>
      %cst_23 = arith.constant 1.000000e+00 : f32
      %74 = vector.broadcast %cst_23 : f32 to vector<8x128xf32>
      %75 = arith.addf %74, %73 : vector<8x128xf32>
      %76 = arith.divf %74, %75 : vector<8x128xf32>
      %77 = arith.mulf %68, %47 : vector<8x128xf32>
      %78 = arith.mulf %62, %70 : vector<8x128xf32>
      %79 = arith.addf %77, %78 : vector<8x128xf32>
      %80 = math.tanh %79 : vector<8x128xf32>
      %81 = arith.mulf %76, %80 : vector<8x128xf32>
      %c2_i32 = arith.constant 2 : i32
      %82 = arith.index_cast %c2_i32 : i32 to index
      %c0_24 = arith.constant 0 : index
      %c0_25 = arith.constant 0 : index
      %83 = vector.load %arg3[%82, %c0_24, %c0_25] : memref<4x8x512xbf16, #tpu.memory_space<vmem>>, vector<1x8x512xbf16>
      %84 = vector.shape_cast %83 : vector<1x8x512xbf16> to vector<8x512xbf16>
      %85 = arith.extf %84 : vector<8x512xbf16> to vector<8x512xf32>
      %86 = arith.truncf %81 : vector<8x128xf32> to vector<8x128xbf16>
      %cst_26 = arith.constant dense<0.000000e+00> : vector<8x512xf32>
      %87 = tpu.matmul %86, %4, %cst_26 {dimension_numbers = #tpu.dot_dimension_numbers<[1], [0], [0], [1], [0, 0, 1, 1], [], []>} : vector<8x128xbf16>, vector<128x512xbf16>, vector<8x512xf32> -> vector<8x512xf32>
      %88 = arith.addf %85, %87 : vector<8x512xf32>
      %89 = vector.extract_strided_slice %88 {offsets = [0, 0], sizes = [8, 128], strides = [1, 1]} : vector<8x512xf32> to vector<8x128xf32>
      %90 = arith.negf %89 : vector<8x128xf32>
      %91 = math.exp %90 : vector<8x128xf32>
      %cst_27 = arith.constant 1.000000e+00 : f32
      %92 = vector.broadcast %cst_27 : f32 to vector<8x128xf32>
      %93 = arith.addf %92, %91 : vector<8x128xf32>
      %94 = arith.divf %92, %93 : vector<8x128xf32>
      %95 = vector.extract_strided_slice %88 {offsets = [0, 128], sizes = [8, 128], strides = [1, 1]} : vector<8x512xf32> to vector<8x128xf32>
      %96 = arith.negf %95 : vector<8x128xf32>
      %97 = math.exp %96 : vector<8x128xf32>
      %cst_28 = arith.constant 1.000000e+00 : f32
      %98 = vector.broadcast %cst_28 : f32 to vector<8x128xf32>
      %99 = arith.addf %98, %97 : vector<8x128xf32>
      %100 = arith.divf %98, %99 : vector<8x128xf32>
      %101 = vector.extract_strided_slice %88 {offsets = [0, 256], sizes = [8, 128], strides = [1, 1]} : vector<8x512xf32> to vector<8x128xf32>
      %102 = math.tanh %101 : vector<8x128xf32>
      %103 = vector.extract_strided_slice %88 {offsets = [0, 384], sizes = [8, 128], strides = [1, 1]} : vector<8x512xf32> to vector<8x128xf32>
      %104 = arith.negf %103 : vector<8x128xf32>
      %105 = math.exp %104 : vector<8x128xf32>
      %cst_29 = arith.constant 1.000000e+00 : f32
      %106 = vector.broadcast %cst_29 : f32 to vector<8x128xf32>
      %107 = arith.addf %106, %105 : vector<8x128xf32>
      %108 = arith.divf %106, %107 : vector<8x128xf32>
      %109 = arith.mulf %100, %79 : vector<8x128xf32>
      %110 = arith.mulf %94, %102 : vector<8x128xf32>
      %111 = arith.addf %109, %110 : vector<8x128xf32>
      %112 = math.tanh %111 : vector<8x128xf32>
      %113 = arith.mulf %108, %112 : vector<8x128xf32>
      %c3_i32 = arith.constant 3 : i32
      %114 = arith.index_cast %c3_i32 : i32 to index
      %c0_30 = arith.constant 0 : index
      %c0_31 = arith.constant 0 : index
      %115 = vector.load %arg3[%114, %c0_30, %c0_31] : memref<4x8x512xbf16, #tpu.memory_space<vmem>>, vector<1x8x512xbf16>
      %116 = vector.shape_cast %115 : vector<1x8x512xbf16> to vector<8x512xbf16>
      %117 = arith.extf %116 : vector<8x512xbf16> to vector<8x512xf32>
      %118 = arith.truncf %113 : vector<8x128xf32> to vector<8x128xbf16>
      %cst_32 = arith.constant dense<0.000000e+00> : vector<8x512xf32>
      %119 = tpu.matmul %118, %4, %cst_32 {dimension_numbers = #tpu.dot_dimension_numbers<[1], [0], [0], [1], [0, 0, 1, 1], [], []>} : vector<8x128xbf16>, vector<128x512xbf16>, vector<8x512xf32> -> vector<8x512xf32>
      %120 = arith.addf %117, %119 : vector<8x512xf32>
      %121 = vector.extract_strided_slice %120 {offsets = [0, 0], sizes = [8, 128], strides = [1, 1]} : vector<8x512xf32> to vector<8x128xf32>
      %122 = arith.negf %121 : vector<8x128xf32>
      %123 = math.exp %122 : vector<8x128xf32>
      %cst_33 = arith.constant 1.000000e+00 : f32
      %124 = vector.broadcast %cst_33 : f32 to vector<8x128xf32>
      %125 = arith.addf %124, %123 : vector<8x128xf32>
      %126 = arith.divf %124, %125 : vector<8x128xf32>
      %127 = vector.extract_strided_slice %120 {offsets = [0, 128], sizes = [8, 128], strides = [1, 1]} : vector<8x512xf32> to vector<8x128xf32>
      %128 = arith.negf %127 : vector<8x128xf32>
      %129 = math.exp %128 : vector<8x128xf32>
      %cst_34 = arith.constant 1.000000e+00 : f32
      %130 = vector.broadcast %cst_34 : f32 to vector<8x128xf32>
      %131 = arith.addf %130, %129 : vector<8x128xf32>
      %132 = arith.divf %130, %131 : vector<8x128xf32>
      %133 = vector.extract_strided_slice %120 {offsets = [0, 256], sizes = [8, 128], strides = [1, 1]} : vector<8x512xf32> to vector<8x128xf32>
      %134 = math.tanh %133 : vector<8x128xf32>
      %135 = vector.extract_strided_slice %120 {offsets = [0, 384], sizes = [8, 128], strides = [1, 1]} : vector<8x512xf32> to vector<8x128xf32>
      %136 = arith.negf %135 : vector<8x128xf32>
      %137 = math.exp %136 : vector<8x128xf32>
      %cst_35 = arith.constant 1.000000e+00 : f32
      %138 = vector.broadcast %cst_35 : f32 to vector<8x128xf32>
      %139 = arith.addf %138, %137 : vector<8x128xf32>
      %140 = arith.divf %138, %139 : vector<8x128xf32>
      %141 = arith.mulf %132, %111 : vector<8x128xf32>
      %142 = arith.mulf %126, %134 : vector<8x128xf32>
      %143 = arith.addf %141, %142 : vector<8x128xf32>
      %144 = math.tanh %143 : vector<8x128xf32>
      %145 = arith.mulf %140, %144 : vector<8x128xf32>
      %c4_i32_36 = arith.constant 4 : i32
      %c0_37 = arith.constant 0 : index
      %c0_38 = arith.constant 0 : index
      %146 = vector.load %arg6[%c0_37, %c0_38] : memref<8x128xf32, #tpu.memory_space<vmem>>, vector<8x128xf32>
      tpu.vector_store %arg6[%c0_37, %c0_38], %145 {strides = array<i32>} : memref<8x128xf32, #tpu.memory_space<vmem>>, vector<8x128xf32>,
      %c0_39 = arith.constant 0 : index
      %c0_40 = arith.constant 0 : index
      %147 = vector.load %arg7[%c0_39, %c0_40] : memref<8x128xf32, #tpu.memory_space<vmem>>, vector<8x128xf32>
      tpu.vector_store %arg7[%c0_39, %c0_40], %143 {strides = array<i32>} : memref<8x128xf32, #tpu.memory_space<vmem>>, vector<8x128xf32>,
    } else {
    }
    %true = arith.constant true
    %10 = arith.xori %7, %true : i1
    %11 = arith.extui %10 : i1 to i32
    %c0_i32_5 = arith.constant 0 : i32
    %12 = arith.cmpi ne, %11, %c0_i32_5 : i32
    scf.if %12 {
      %c0_7 = arith.constant 0 : index
      %c0_8 = arith.constant 0 : index
      %16 = vector.load %arg2[%c0_7, %c0_8] : memref<8x1xi32, #tpu.memory_space<vmem>>, vector<8x1xi32>
      %c0_9 = arith.constant 0 : index
      %c0_10 = arith.constant 0 : index
      %17 = vector.load %arg6[%c0_9, %c0_10] : memref<8x128xf32, #tpu.memory_space<vmem>>, vector<8x128xf32>
      %c0_11 = arith.constant 0 : index
      %c0_12 = arith.constant 0 : index
      %18 = vector.load %arg7[%c0_11, %c0_12] : memref<8x128xf32, #tpu.memory_space<vmem>>, vector<8x128xf32>
      %c0_i32_13 = arith.constant 0 : i32
      %19 = arith.index_cast %c0_i32_13 : i32 to index
      %c0_14 = arith.constant 0 : index
      %c0_15 = arith.constant 0 : index
      %20 = vector.load %arg3[%19, %c0_14, %c0_15] : memref<4x8x512xbf16, #tpu.memory_space<vmem>>, vector<1x8x512xbf16>
      %21 = vector.shape_cast %20 : vector<1x8x512xbf16> to vector<8x512xbf16>
      %22 = arith.extf %21 : vector<8x512xbf16> to vector<8x512xf32>
      %23 = arith.truncf %17 : vector<8x128xf32> to vector<8x128xbf16>
      %cst = arith.constant dense<0.000000e+00> : vector<8x512xf32>
      %24 = tpu.matmul %23, %4, %cst {dimension_numbers = #tpu.dot_dimension_numbers<[1], [0], [0], [1], [0, 0, 1, 1], [], []>} : vector<8x128xbf16>, vector<128x512xbf16>, vector<8x512xf32> -> vector<8x512xf32>
      %25 = arith.addf %22, %24 : vector<8x512xf32>
      %26 = vector.extract_strided_slice %25 {offsets = [0, 0], sizes = [8, 128], strides = [1, 1]} : vector<8x512xf32> to vector<8x128xf32>
      %27 = arith.negf %26 : vector<8x128xf32>
      %28 = math.exp %27 : vector<8x128xf32>
      %cst_16 = arith.constant 1.000000e+00 : f32
      %29 = vector.broadcast %cst_16 : f32 to vector<8x128xf32>
      %30 = arith.addf %29, %28 : vector<8x128xf32>
      %31 = arith.divf %29, %30 : vector<8x128xf32>
      %32 = vector.extract_strided_slice %25 {offsets = [0, 128], sizes = [8, 128], strides = [1, 1]} : vector<8x512xf32> to vector<8x128xf32>
      %33 = arith.negf %32 : vector<8x128xf32>
      %34 = math.exp %33 : vector<8x128xf32>
      %cst_17 = arith.constant 1.000000e+00 : f32
      %35 = vector.broadcast %cst_17 : f32 to vector<8x128xf32>
      %36 = arith.addf %35, %34 : vector<8x128xf32>
      %37 = arith.divf %35, %36 : vector<8x128xf32>
      %38 = vector.extract_strided_slice %25 {offsets = [0, 256], sizes = [8, 128], strides = [1, 1]} : vector<8x512xf32> to vector<8x128xf32>
      %39 = math.tanh %38 : vector<8x128xf32>
      %40 = vector.extract_strided_slice %25 {offsets = [0, 384], sizes = [8, 128], strides = [1, 1]} : vector<8x512xf32> to vector<8x128xf32>
      %41 = arith.negf %40 : vector<8x128xf32>
      %42 = math.exp %41 : vector<8x128xf32>
      %cst_18 = arith.constant 1.000000e+00 : f32
      %43 = vector.broadcast %cst_18 : f32 to vector<8x128xf32>
      %44 = arith.addf %43, %42 : vector<8x128xf32>
      %45 = arith.divf %43, %44 : vector<8x128xf32>
      %46 = arith.mulf %37, %18 : vector<8x128xf32>
      %47 = arith.mulf %31, %39 : vector<8x128xf32>
      %48 = arith.addf %46, %47 : vector<8x128xf32>
      %49 = math.tanh %48 : vector<8x128xf32>
      %50 = arith.mulf %45, %49 : vector<8x128xf32>
      %51 = arith.addi %0, %c0_i32_13 : i32
      %52 = vector.broadcast %51 : i32 to vector<8x1xi32>
      %53 = arith.cmpi slt, %52, %16 : vector<8x1xi32>
      %54 = vector.shape_cast %53 : vector<8x1xi1> to vector<8x1xi1>
      %55 = vector.broadcast %54 : vector<8x1xi1> to vector<8x128xi1>
      %56 = arith.select %55, %50, %17 : vector<8x128xi1>, vector<8x128xf32>
      %57 = vector.shape_cast %53 : vector<8x1xi1> to vector<8x1xi1>
      %58 = vector.broadcast %57 : vector<8x1xi1> to vector<8x128xi1>
      %59 = arith.select %58, %48, %18 : vector<8x128xi1>, vector<8x128xf32>
      %c1_i32_19 = arith.constant 1 : i32
      %60 = arith.index_cast %c1_i32_19 : i32 to index
      %c0_20 = arith.constant 0 : index
      %c0_21 = arith.constant 0 : index
      %61 = vector.load %arg3[%60, %c0_20, %c0_21] : memref<4x8x512xbf16, #tpu.memory_space<vmem>>, vector<1x8x512xbf16>
      %62 = vector.shape_cast %61 : vector<1x8x512xbf16> to vector<8x512xbf16>
      %63 = arith.extf %62 : vector<8x512xbf16> to vector<8x512xf32>
      %64 = arith.truncf %56 : vector<8x128xf32> to vector<8x128xbf16>
      %cst_22 = arith.constant dense<0.000000e+00> : vector<8x512xf32>
      %65 = tpu.matmul %64, %4, %cst_22 {dimension_numbers = #tpu.dot_dimension_numbers<[1], [0], [0], [1], [0, 0, 1, 1], [], []>} : vector<8x128xbf16>, vector<128x512xbf16>, vector<8x512xf32> -> vector<8x512xf32>
      %66 = arith.addf %63, %65 : vector<8x512xf32>
      %67 = vector.extract_strided_slice %66 {offsets = [0, 0], sizes = [8, 128], strides = [1, 1]} : vector<8x512xf32> to vector<8x128xf32>
      %68 = arith.negf %67 : vector<8x128xf32>
      %69 = math.exp %68 : vector<8x128xf32>
      %cst_23 = arith.constant 1.000000e+00 : f32
      %70 = vector.broadcast %cst_23 : f32 to vector<8x128xf32>
      %71 = arith.addf %70, %69 : vector<8x128xf32>
      %72 = arith.divf %70, %71 : vector<8x128xf32>
      %73 = vector.extract_strided_slice %66 {offsets = [0, 128], sizes = [8, 128], strides = [1, 1]} : vector<8x512xf32> to vector<8x128xf32>
      %74 = arith.negf %73 : vector<8x128xf32>
      %75 = math.exp %74 : vector<8x128xf32>
      %cst_24 = arith.constant 1.000000e+00 : f32
      %76 = vector.broadcast %cst_24 : f32 to vector<8x128xf32>
      %77 = arith.addf %76, %75 : vector<8x128xf32>
      %78 = arith.divf %76, %77 : vector<8x128xf32>
      %79 = vector.extract_strided_slice %66 {offsets = [0, 256], sizes = [8, 128], strides = [1, 1]} : vector<8x512xf32> to vector<8x128xf32>
      %80 = math.tanh %79 : vector<8x128xf32>
      %81 = vector.extract_strided_slice %66 {offsets = [0, 384], sizes = [8, 128], strides = [1, 1]} : vector<8x512xf32> to vector<8x128xf32>
      %82 = arith.negf %81 : vector<8x128xf32>
      %83 = math.exp %82 : vector<8x128xf32>
      %cst_25 = arith.constant 1.000000e+00 : f32
      %84 = vector.broadcast %cst_25 : f32 to vector<8x128xf32>
      %85 = arith.addf %84, %83 : vector<8x128xf32>
      %86 = arith.divf %84, %85 : vector<8x128xf32>
      %87 = arith.mulf %78, %59 : vector<8x128xf32>
      %88 = arith.mulf %72, %80 : vector<8x128xf32>
      %89 = arith.addf %87, %88 : vector<8x128xf32>
      %90 = math.tanh %89 : vector<8x128xf32>
      %91 = arith.mulf %86, %90 : vector<8x128xf32>
      %92 = arith.addi %0, %c1_i32_19 : i32
      %93 = vector.broadcast %92 : i32 to vector<8x1xi32>
      %94 = arith.cmpi slt, %93, %16 : vector<8x1xi32>
      %95 = vector.shape_cast %94 : vector<8x1xi1> to vector<8x1xi1>
      %96 = vector.broadcast %95 : vector<8x1xi1> to vector<8x128xi1>
      %97 = arith.select %96, %91, %56 : vector<8x128xi1>, vector<8x128xf32>
      %98 = vector.shape_cast %94 : vector<8x1xi1> to vector<8x1xi1>
      %99 = vector.broadcast %98 : vector<8x1xi1> to vector<8x128xi1>
      %100 = arith.select %99, %89, %59 : vector<8x128xi1>, vector<8x128xf32>
      %c2_i32 = arith.constant 2 : i32
      %101 = arith.index_cast %c2_i32 : i32 to index
      %c0_26 = arith.constant 0 : index
      %c0_27 = arith.constant 0 : index
      %102 = vector.load %arg3[%101, %c0_26, %c0_27] : memref<4x8x512xbf16, #tpu.memory_space<vmem>>, vector<1x8x512xbf16>
      %103 = vector.shape_cast %102 : vector<1x8x512xbf16> to vector<8x512xbf16>
      %104 = arith.extf %103 : vector<8x512xbf16> to vector<8x512xf32>
      %105 = arith.truncf %97 : vector<8x128xf32> to vector<8x128xbf16>
      %cst_28 = arith.constant dense<0.000000e+00> : vector<8x512xf32>
      %106 = tpu.matmul %105, %4, %cst_28 {dimension_numbers = #tpu.dot_dimension_numbers<[1], [0], [0], [1], [0, 0, 1, 1], [], []>} : vector<8x128xbf16>, vector<128x512xbf16>, vector<8x512xf32> -> vector<8x512xf32>
      %107 = arith.addf %104, %106 : vector<8x512xf32>
      %108 = vector.extract_strided_slice %107 {offsets = [0, 0], sizes = [8, 128], strides = [1, 1]} : vector<8x512xf32> to vector<8x128xf32>
      %109 = arith.negf %108 : vector<8x128xf32>
      %110 = math.exp %109 : vector<8x128xf32>
      %cst_29 = arith.constant 1.000000e+00 : f32
      %111 = vector.broadcast %cst_29 : f32 to vector<8x128xf32>
      %112 = arith.addf %111, %110 : vector<8x128xf32>
      %113 = arith.divf %111, %112 : vector<8x128xf32>
      %114 = vector.extract_strided_slice %107 {offsets = [0, 128], sizes = [8, 128], strides = [1, 1]} : vector<8x512xf32> to vector<8x128xf32>
      %115 = arith.negf %114 : vector<8x128xf32>
      %116 = math.exp %115 : vector<8x128xf32>
      %cst_30 = arith.constant 1.000000e+00 : f32
      %117 = vector.broadcast %cst_30 : f32 to vector<8x128xf32>
      %118 = arith.addf %117, %116 : vector<8x128xf32>
      %119 = arith.divf %117, %118 : vector<8x128xf32>
      %120 = vector.extract_strided_slice %107 {offsets = [0, 256], sizes = [8, 128], strides = [1, 1]} : vector<8x512xf32> to vector<8x128xf32>
      %121 = math.tanh %120 : vector<8x128xf32>
      %122 = vector.extract_strided_slice %107 {offsets = [0, 384], sizes = [8, 128], strides = [1, 1]} : vector<8x512xf32> to vector<8x128xf32>
      %123 = arith.negf %122 : vector<8x128xf32>
      %124 = math.exp %123 : vector<8x128xf32>
      %cst_31 = arith.constant 1.000000e+00 : f32
      %125 = vector.broadcast %cst_31 : f32 to vector<8x128xf32>
      %126 = arith.addf %125, %124 : vector<8x128xf32>
      %127 = arith.divf %125, %126 : vector<8x128xf32>
      %128 = arith.mulf %119, %100 : vector<8x128xf32>
      %129 = arith.mulf %113, %121 : vector<8x128xf32>
      %130 = arith.addf %128, %129 : vector<8x128xf32>
      %131 = math.tanh %130 : vector<8x128xf32>
      %132 = arith.mulf %127, %131 : vector<8x128xf32>
      %133 = arith.addi %0, %c2_i32 : i32
      %134 = vector.broadcast %133 : i32 to vector<8x1xi32>
      %135 = arith.cmpi slt, %134, %16 : vector<8x1xi32>
      %136 = vector.shape_cast %135 : vector<8x1xi1> to vector<8x1xi1>
      %137 = vector.broadcast %136 : vector<8x1xi1> to vector<8x128xi1>
      %138 = arith.select %137, %132, %97 : vector<8x128xi1>, vector<8x128xf32>
      %139 = vector.shape_cast %135 : vector<8x1xi1> to vector<8x1xi1>
      %140 = vector.broadcast %139 : vector<8x1xi1> to vector<8x128xi1>
      %141 = arith.select %140, %130, %100 : vector<8x128xi1>, vector<8x128xf32>
      %c3_i32 = arith.constant 3 : i32
      %142 = arith.index_cast %c3_i32 : i32 to index
      %c0_32 = arith.constant 0 : index
      %c0_33 = arith.constant 0 : index
      %143 = vector.load %arg3[%142, %c0_32, %c0_33] : memref<4x8x512xbf16, #tpu.memory_space<vmem>>, vector<1x8x512xbf16>
      %144 = vector.shape_cast %143 : vector<1x8x512xbf16> to vector<8x512xbf16>
      %145 = arith.extf %144 : vector<8x512xbf16> to vector<8x512xf32>
      %146 = arith.truncf %138 : vector<8x128xf32> to vector<8x128xbf16>
      %cst_34 = arith.constant dense<0.000000e+00> : vector<8x512xf32>
      %147 = tpu.matmul %146, %4, %cst_34 {dimension_numbers = #tpu.dot_dimension_numbers<[1], [0], [0], [1], [0, 0, 1, 1], [], []>} : vector<8x128xbf16>, vector<128x512xbf16>, vector<8x512xf32> -> vector<8x512xf32>
      %148 = arith.addf %145, %147 : vector<8x512xf32>
      %149 = vector.extract_strided_slice %148 {offsets = [0, 0], sizes = [8, 128], strides = [1, 1]} : vector<8x512xf32> to vector<8x128xf32>
      %150 = arith.negf %149 : vector<8x128xf32>
      %151 = math.exp %150 : vector<8x128xf32>
      %cst_35 = arith.constant 1.000000e+00 : f32
      %152 = vector.broadcast %cst_35 : f32 to vector<8x128xf32>
      %153 = arith.addf %152, %151 : vector<8x128xf32>
      %154 = arith.divf %152, %153 : vector<8x128xf32>
      %155 = vector.extract_strided_slice %148 {offsets = [0, 128], sizes = [8, 128], strides = [1, 1]} : vector<8x512xf32> to vector<8x128xf32>
      %156 = arith.negf %155 : vector<8x128xf32>
      %157 = math.exp %156 : vector<8x128xf32>
      %cst_36 = arith.constant 1.000000e+00 : f32
      %158 = vector.broadcast %cst_36 : f32 to vector<8x128xf32>
      %159 = arith.addf %158, %157 : vector<8x128xf32>
      %160 = arith.divf %158, %159 : vector<8x128xf32>
      %161 = vector.extract_strided_slice %148 {offsets = [0, 256], sizes = [8, 128], strides = [1, 1]} : vector<8x512xf32> to vector<8x128xf32>
      %162 = math.tanh %161 : vector<8x128xf32>
      %163 = vector.extract_strided_slice %148 {offsets = [0, 384], sizes = [8, 128], strides = [1, 1]} : vector<8x512xf32> to vector<8x128xf32>
      %164 = arith.negf %163 : vector<8x128xf32>
      %165 = math.exp %164 : vector<8x128xf32>
      %cst_37 = arith.constant 1.000000e+00 : f32
      %166 = vector.broadcast %cst_37 : f32 to vector<8x128xf32>
      %167 = arith.addf %166, %165 : vector<8x128xf32>
      %168 = arith.divf %166, %167 : vector<8x128xf32>
      %169 = arith.mulf %160, %141 : vector<8x128xf32>
      %170 = arith.mulf %154, %162 : vector<8x128xf32>
      %171 = arith.addf %169, %170 : vector<8x128xf32>
      %172 = math.tanh %171 : vector<8x128xf32>
      %173 = arith.mulf %168, %172 : vector<8x128xf32>
      %174 = arith.addi %0, %c3_i32 : i32
      %175 = vector.broadcast %174 : i32 to vector<8x1xi32>
      %176 = arith.cmpi slt, %175, %16 : vector<8x1xi32>
      %177 = vector.shape_cast %176 : vector<8x1xi1> to vector<8x1xi1>
      %178 = vector.broadcast %177 : vector<8x1xi1> to vector<8x128xi1>
      %179 = arith.select %178, %173, %138 : vector<8x128xi1>, vector<8x128xf32>
      %180 = vector.shape_cast %176 : vector<8x1xi1> to vector<8x1xi1>
      %181 = vector.broadcast %180 : vector<8x1xi1> to vector<8x128xi1>
      %182 = arith.select %181, %171, %141 : vector<8x128xi1>, vector<8x128xf32>
      %c4_i32_38 = arith.constant 4 : i32
      %c0_39 = arith.constant 0 : index
      %c0_40 = arith.constant 0 : index
      %183 = vector.load %arg6[%c0_39, %c0_40] : memref<8x128xf32, #tpu.memory_space<vmem>>, vector<8x128xf32>
      tpu.vector_store %arg6[%c0_39, %c0_40], %179 {strides = array<i32>} : memref<8x128xf32, #tpu.memory_space<vmem>>, vector<8x128xf32>,
      %c0_41 = arith.constant 0 : index
      %c0_42 = arith.constant 0 : index
      %184 = vector.load %arg7[%c0_41, %c0_42] : memref<8x128xf32, #tpu.memory_space<vmem>>, vector<8x128xf32>
      tpu.vector_store %arg7[%c0_41, %c0_42], %182 {strides = array<i32>} : memref<8x128xf32, #tpu.memory_space<vmem>>, vector<8x128xf32>,
    } else {
    }
    %c1_i32 = arith.constant 1 : i32
    %13 = arith.cmpi eq, %arg0, %c1_i32 : i32
    %14 = arith.extui %13 : i1 to i32
    %c0_i32_6 = arith.constant 0 : i32
    %15 = arith.cmpi ne, %14, %c0_i32_6 : i32
    scf.if %15 {
      %c0_7 = arith.constant 0 : index
      %c0_8 = arith.constant 0 : index
      %16 = vector.load %arg6[%c0_7, %c0_8] : memref<8x128xf32, #tpu.memory_space<vmem>>, vector<8x128xf32>
      %c0_9 = arith.constant 0 : index
      %c0_10 = arith.constant 0 : index
      %17 = vector.load %arg5[%c0_9, %c0_10] : memref<8x128xf32, #tpu.memory_space<vmem>>, vector<8x128xf32>
      tpu.vector_store %arg5[%c0_9, %c0_10], %16 {strides = array<i32>} : memref<8x128xf32, #tpu.memory_space<vmem>>, vector<8x128xf32>,
    } else {
    }
    return
  }
  func.func @transform_0(%arg0: i32) -> i32 {
    %c0_i32 = arith.constant 0 : i32
    %c0_i32_0 = arith.constant 0 : i32
    return %c0_i32 : i32
  }
  func.func @transform_1(%arg0: i32) -> (i32, i32) {
    %c0_i32 = arith.constant 0 : i32
    %c0_i32_0 = arith.constant 0 : i32
    %c0_i32_1 = arith.constant 0 : i32
    return %c0_i32, %c0_i32_0 : i32, i32
  }
  func.func @transform_2(%arg0: i32) -> (i32, i32, i32) {
    %c0_i32 = arith.constant 0 : i32
    %c0_i32_0 = arith.constant 0 : i32
    %c0_i32_1 = arith.constant 0 : i32
    return %arg0, %c0_i32, %c0_i32_0 : i32, i32, i32
  }
  func.func @transform_3(%arg0: i32) -> (i32, i32) {
    %c0_i32 = arith.constant 0 : i32
    %c0_i32_0 = arith.constant 0 : i32
    %c0_i32_1 = arith.constant 0 : i32
    return %c0_i32, %c0_i32_0 : i32, i32
  }
  func.func @transform_4(%arg0: i32) -> (i32, i32) {
    %c0_i32 = arith.constant 0 : i32
    %c0_i32_0 = arith.constant 0 : i32
    %c0_i32_1 = arith.constant 0 : i32
    return %c0_i32, %c0_i32_0 : i32, i32
  }
}

module attributes {stable_mosaic.version = 11 : i64} {
  func.func @head_kernel(%arg0: memref<8x32xf32, #tpu.memory_space<vmem>>, %arg1: memref<32x1024xbf16, #tpu.memory_space<vmem>>, %arg2: memref<1x1024xf32, #tpu.memory_space<vmem>>, %arg3: memref<1x1024xf32, #tpu.memory_space<vmem>>, %arg4: memref<1x1024xf32, #tpu.memory_space<vmem>>, %arg5: memref<1024x256xbf16, #tpu.memory_space<vmem>>, %arg6: memref<1x256xf32, #tpu.memory_space<vmem>>, %arg7: memref<1x256xf32, #tpu.memory_space<vmem>>, %arg8: memref<1x256xf32, #tpu.memory_space<vmem>>, %arg9: memref<256x128xbf16, #tpu.memory_space<vmem>>, %arg10: memref<1x128xf32, #tpu.memory_space<vmem>>, %arg11: memref<8x128xf32, #tpu.memory_space<vmem>>, %arg12: memref<8x256xf32, #tpu.memory_space<vmem>>) attributes {dimension_semantics = [], scalar_prefetch = 0 : i64, scratch_operands = 0 : i64, tpu.core_type = #tpu.core_type<tc>} {
    %c0 = arith.constant 0 : index
    %c0_0 = arith.constant 0 : index
    %0 = vector.load %arg0[%c0, %c0_0] : memref<8x32xf32, #tpu.memory_space<vmem>>, vector<8x32xf32>
    %1 = arith.truncf %0 : vector<8x32xf32> to vector<8x32xbf16>
    %c0_1 = arith.constant 0 : index
    %c0_2 = arith.constant 0 : index
    %2 = vector.load %arg1[%c0_1, %c0_2] : memref<32x1024xbf16, #tpu.memory_space<vmem>>, vector<32x1024xbf16>
    %cst = arith.constant dense<0.000000e+00> : vector<8x1024xf32>
    %3 = tpu.matmul %1, %2, %cst {dimension_numbers = #tpu.dot_dimension_numbers<[1], [0], [0], [1], [0, 0, 1, 1], [], []>} : vector<8x32xbf16>, vector<32x1024xbf16>, vector<8x1024xf32> -> vector<8x1024xf32>
    %c0_3 = arith.constant 0 : index
    %c0_4 = arith.constant 0 : index
    %4 = vector.load %arg2[%c0_3, %c0_4] : memref<1x1024xf32, #tpu.memory_space<vmem>>, vector<1x1024xf32>
    %5 = vector.broadcast %4 : vector<1x1024xf32> to vector<8x1024xf32>
    %6 = arith.addf %3, %5 : vector<8x1024xf32>
    %c0_5 = arith.constant 0 : index
    %c0_6 = arith.constant 0 : index
    %7 = vector.load %arg3[%c0_5, %c0_6] : memref<1x1024xf32, #tpu.memory_space<vmem>>, vector<1x1024xf32>
    %c0_7 = arith.constant 0 : index
    %c0_8 = arith.constant 0 : index
    %8 = vector.load %arg4[%c0_7, %c0_8] : memref<1x1024xf32, #tpu.memory_space<vmem>>, vector<1x1024xf32>
    %cst_9 = arith.constant dense<0.000000e+00> : vector<1024xf32>
    %9 = vector.multi_reduction <add>, %6, %cst_9 [0] : vector<8x1024xf32> to vector<1024xf32>
    %10 = vector.shape_cast %9 : vector<1024xf32> to vector<1x1024xf32>
    %cst_10 = arith.constant 8.000000e+00 : f32
    %11 = vector.broadcast %cst_10 : f32 to vector<1x1024xf32>
    %12 = arith.divf %10, %11 : vector<1x1024xf32>
    %13 = vector.broadcast %12 : vector<1x1024xf32> to vector<8x1024xf32>
    %14 = arith.subf %6, %13 : vector<8x1024xf32>
    %15 = arith.mulf %14, %14 : vector<8x1024xf32>
    %cst_11 = arith.constant dense<0.000000e+00> : vector<1024xf32>
    %16 = vector.multi_reduction <add>, %15, %cst_11 [0] : vector<8x1024xf32> to vector<1024xf32>
    %17 = vector.shape_cast %16 : vector<1024xf32> to vector<1x1024xf32>
    %cst_12 = arith.constant 8.000000e+00 : f32
    %18 = vector.broadcast %cst_12 : f32 to vector<1x1024xf32>
    %19 = arith.divf %17, %18 : vector<1x1024xf32>
    %20 = vector.broadcast %12 : vector<1x1024xf32> to vector<8x1024xf32>
    %21 = arith.subf %6, %20 : vector<8x1024xf32>
    %cst_13 = arith.constant 9.99999974E-6 : f32
    %22 = vector.broadcast %cst_13 : f32 to vector<1x1024xf32>
    %23 = arith.addf %19, %22 : vector<1x1024xf32>
    %24 = math.rsqrt %23 : vector<1x1024xf32>
    %25 = vector.broadcast %24 : vector<1x1024xf32> to vector<8x1024xf32>
    %26 = arith.mulf %21, %25 : vector<8x1024xf32>
    %27 = vector.broadcast %7 : vector<1x1024xf32> to vector<8x1024xf32>
    %28 = arith.mulf %26, %27 : vector<8x1024xf32>
    %29 = vector.broadcast %8 : vector<1x1024xf32> to vector<8x1024xf32>
    %30 = arith.addf %28, %29 : vector<8x1024xf32>
    %cst_14 = arith.constant 0.000000e+00 : f32
    %31 = vector.broadcast %cst_14 : f32 to vector<8x1024xf32>
    %32 = arith.maximumf %30, %31 : vector<8x1024xf32>
    %33 = arith.truncf %32 : vector<8x1024xf32> to vector<8x1024xbf16>
    %c0_15 = arith.constant 0 : index
    %c0_16 = arith.constant 0 : index
    %34 = vector.load %arg5[%c0_15, %c0_16] : memref<1024x256xbf16, #tpu.memory_space<vmem>>, vector<1024x256xbf16>
    %cst_17 = arith.constant dense<0.000000e+00> : vector<8x256xf32>
    %35 = tpu.matmul %33, %34, %cst_17 {dimension_numbers = #tpu.dot_dimension_numbers<[1], [0], [0], [1], [0, 0, 1, 1], [], []>} : vector<8x1024xbf16>, vector<1024x256xbf16>, vector<8x256xf32> -> vector<8x256xf32>
    %c0_18 = arith.constant 0 : index
    %c0_19 = arith.constant 0 : index
    %36 = vector.load %arg6[%c0_18, %c0_19] : memref<1x256xf32, #tpu.memory_space<vmem>>, vector<1x256xf32>
    %37 = vector.broadcast %36 : vector<1x256xf32> to vector<8x256xf32>
    %38 = arith.addf %35, %37 : vector<8x256xf32>
    %c0_20 = arith.constant 0 : index
    %c0_21 = arith.constant 0 : index
    %39 = vector.load %arg7[%c0_20, %c0_21] : memref<1x256xf32, #tpu.memory_space<vmem>>, vector<1x256xf32>
    %c0_22 = arith.constant 0 : index
    %c0_23 = arith.constant 0 : index
    %40 = vector.load %arg8[%c0_22, %c0_23] : memref<1x256xf32, #tpu.memory_space<vmem>>, vector<1x256xf32>
    %cst_24 = arith.constant dense<0.000000e+00> : vector<256xf32>
    %41 = vector.multi_reduction <add>, %38, %cst_24 [0] : vector<8x256xf32> to vector<256xf32>
    %42 = vector.shape_cast %41 : vector<256xf32> to vector<1x256xf32>
    %cst_25 = arith.constant 8.000000e+00 : f32
    %43 = vector.broadcast %cst_25 : f32 to vector<1x256xf32>
    %44 = arith.divf %42, %43 : vector<1x256xf32>
    %45 = vector.broadcast %44 : vector<1x256xf32> to vector<8x256xf32>
    %46 = arith.subf %38, %45 : vector<8x256xf32>
    %47 = arith.mulf %46, %46 : vector<8x256xf32>
    %cst_26 = arith.constant dense<0.000000e+00> : vector<256xf32>
    %48 = vector.multi_reduction <add>, %47, %cst_26 [0] : vector<8x256xf32> to vector<256xf32>
    %49 = vector.shape_cast %48 : vector<256xf32> to vector<1x256xf32>
    %cst_27 = arith.constant 8.000000e+00 : f32
    %50 = vector.broadcast %cst_27 : f32 to vector<1x256xf32>
    %51 = arith.divf %49, %50 : vector<1x256xf32>
    %52 = vector.broadcast %44 : vector<1x256xf32> to vector<8x256xf32>
    %53 = arith.subf %38, %52 : vector<8x256xf32>
    %cst_28 = arith.constant 9.99999974E-6 : f32
    %54 = vector.broadcast %cst_28 : f32 to vector<1x256xf32>
    %55 = arith.addf %51, %54 : vector<1x256xf32>
    %56 = math.rsqrt %55 : vector<1x256xf32>
    %57 = vector.broadcast %56 : vector<1x256xf32> to vector<8x256xf32>
    %58 = arith.mulf %53, %57 : vector<8x256xf32>
    %59 = vector.broadcast %39 : vector<1x256xf32> to vector<8x256xf32>
    %60 = arith.mulf %58, %59 : vector<8x256xf32>
    %61 = vector.broadcast %40 : vector<1x256xf32> to vector<8x256xf32>
    %62 = arith.addf %60, %61 : vector<8x256xf32>
    %cst_29 = arith.constant 0.000000e+00 : f32
    %63 = vector.broadcast %cst_29 : f32 to vector<8x256xf32>
    %64 = arith.maximumf %62, %63 : vector<8x256xf32>
    %c0_30 = arith.constant 0 : index
    %c0_31 = arith.constant 0 : index
    %65 = vector.load %arg12[%c0_30, %c0_31] : memref<8x256xf32, #tpu.memory_space<vmem>>, vector<8x256xf32>
    tpu.vector_store %arg12[%c0_30, %c0_31], %64 {strides = array<i32>} : memref<8x256xf32, #tpu.memory_space<vmem>>, vector<8x256xf32>,
    %66 = arith.truncf %64 : vector<8x256xf32> to vector<8x256xbf16>
    %c0_32 = arith.constant 0 : index
    %c0_33 = arith.constant 0 : index
    %67 = vector.load %arg9[%c0_32, %c0_33] : memref<256x128xbf16, #tpu.memory_space<vmem>>, vector<256x128xbf16>
    %cst_34 = arith.constant dense<0.000000e+00> : vector<8x128xf32>
    %68 = tpu.matmul %66, %67, %cst_34 {dimension_numbers = #tpu.dot_dimension_numbers<[1], [0], [0], [1], [0, 0, 1, 1], [], []>} : vector<8x256xbf16>, vector<256x128xbf16>, vector<8x128xf32> -> vector<8x128xf32>
    %c0_35 = arith.constant 0 : index
    %c0_36 = arith.constant 0 : index
    %69 = vector.load %arg10[%c0_35, %c0_36] : memref<1x128xf32, #tpu.memory_space<vmem>>, vector<1x128xf32>
    %70 = vector.broadcast %69 : vector<1x128xf32> to vector<8x128xf32>
    %71 = arith.addf %68, %70 : vector<8x128xf32>
    %cst_37 = arith.constant dense<0xFF800000> : vector<8xf32>
    %72 = vector.multi_reduction <maximumf>, %71, %cst_37 [1] : vector<8x128xf32> to vector<8xf32>
    %73 = vector.shape_cast %72 : vector<8xf32> to vector<8x1xf32>
    %74 = vector.broadcast %73 : vector<8x1xf32> to vector<8x128xf32>
    %75 = arith.subf %71, %74 : vector<8x128xf32>
    %76 = math.exp %75 : vector<8x128xf32>
    %cst_38 = arith.constant dense<0.000000e+00> : vector<8xf32>
    %77 = vector.multi_reduction <add>, %76, %cst_38 [1] : vector<8x128xf32> to vector<8xf32>
    %78 = vector.shape_cast %77 : vector<8xf32> to vector<8x1xf32>
    %79 = tpu.reciprocal %78 {approx = true} : vector<8x1xf32> -> vector<8x1xf32>
    %80 = vector.broadcast %79 : vector<8x1xf32> to vector<8x128xf32>
    %81 = arith.mulf %76, %80 : vector<8x128xf32>
    %c0_39 = arith.constant 0 : index
    %c0_40 = arith.constant 0 : index
    %82 = vector.load %arg11[%c0_39, %c0_40] : memref<8x128xf32, #tpu.memory_space<vmem>>, vector<8x128xf32>
    tpu.vector_store %arg11[%c0_39, %c0_40], %81 {strides = array<i32>} : memref<8x128xf32, #tpu.memory_space<vmem>>, vector<8x128xf32>,
    return
  }
}

</mosaic_0001>

<llo_original>
// kernel: lstm_forward.3
$region0: #{lstm_forward.3}
  #allocation0 [shape = 'u32[]', space=smem, size = 0x4, offset = 0x4, fixed_abs, tag = 'smem constant byte address 0x4 - core index']
  #allocation1 [shape = 'u32[144,128]{1,0:T(1,128)}', space=vmem, size = 0x12000, scoped, tag = 'internal scratch']
  %s0 = inlined_call_operand.vmem [shape: bf16[64,16], index: 0, kind: input, shape index: {}]
  %s1 = inlined_call_operand.vmem [shape: bf16[16,512], index: 1, kind: input, shape index: {}]
  %s2 = inlined_call_operand.vmem [shape: f32[1,512], index: 2, kind: input, shape index: {}]
  %s3 = inlined_call_operand.vmem [shape: bf16[64,512], index: 3, kind: output, shape index: {}]
  %s4 = sld [smem:[#allocation0]]
  $region22: #{lstm_forward.3} parent=0
    _
  %s6 = ssub.s32 1, %s4
  %s7 = scalar_select 0, %s6, %s4
  // Predicated region
  $region2: #{lstm_forward.3} parent=0 // pred_check
    _
  $region3: #{lstm_forward.3} parent=0 // pred_check_branch
    %9 = sbr.rel (0) target = $region5
  $region4: #{lstm_forward.3} parent=0 // pred_region
    _
  $region5: #{lstm_forward.3} parent=0 // pred_fallthru
    _
  // Predicated region
  $region6: #{lstm_forward.3} parent=0 // pred_check
    _
  $region7: #{lstm_forward.3} parent=0 // pred_check_branch
    %11 = sbr.rel (0) target = $region9
  $region8: #{lstm_forward.3} parent=0 // pred_region
    _
  $region9: #{lstm_forward.3} parent=0 // pred_fallthru
    _
  // Predicated region
  $region10: #{lstm_forward.3} parent=0 // pred_check
    _
  $region11: #{lstm_forward.3} parent=0 // pred_check_branch
    %13 = sbr.rel (0) target = $region13
  $region12: #{lstm_forward.3} parent=0 // pred_region
    _
  $region13: #{lstm_forward.3} parent=0 // pred_fallthru
    _
  %v15 = vld [vmem:[%s0] sm:$0xf]
  %v16 = vld [vmem:[%s0 + $0x4] sm:$0xf]
  %v17 = vld [vmem:[%s0 + $0x8] sm:$0xf]
  %v18 = vld [vmem:[%s0 + $0xc] sm:$0xf]
  %v19 = vld [vmem:[%s0 + $0x10] sm:$0xf]
  %v20 = vld [vmem:[%s0 + $0x14] sm:$0xf]
  %v21 = vld [vmem:[%s0 + $0x18] sm:$0xf]
  %v22 = vld [vmem:[%s0 + $0x1c] sm:$0xf]
  %v23 = vld [vmem:[%s1] sm:$0xff]
  %v24 = vld [vmem:[%s1 + $0x8] sm:$0xff]
  %v25 = vld [vmem:[%s1 + $0x10] sm:$0xff]
  %v26 = vld [vmem:[%s1 + $0x18] sm:$0xff]
  %v27 = vld [vmem:[%s2] sm:$0xf]
  %v29 = vlaneseq
  %v30 = vshrl.u32 %v29, 7
  %v31 = vsub.s32 0, %v30
  %v32 = vrot.slane %v27, %v31
  %v33 = vlaneseq
  %v34 = vshrl.u32 %v33, 7
  %v35 = vsub.s32 1, %v34
  %v36 = vrot.slane %v27, %v35
  %v37 = vlaneseq
  %v38 = vshrl.u32 %v37, 7
  %v39 = vsub.s32 2, %v38
  %v40 = vrot.slane %v27, %v39
  %v41 = vlaneseq
  %v42 = vshrl.u32 %v41, 7
  %v43 = vsub.s32 3, %v42
  %v44 = vrot.slane %v27, %v43
  %v57 = vunpack.c.l.b16 %v15
  %v58 = vunpack.c.l.b16 %v16
  %v59 = vunpack.c.l.b16 %v17
  %v60 = vunpack.c.l.b16 %v18
  %v61 = vunpack.c.l.b16 %v19
  %v62 = vunpack.c.l.b16 %v20
  %v63 = vunpack.c.l.b16 %v21
  %v64 = vunpack.c.l.b16 %v22
  %v65 = vpack.c.b16 %v58, %v57
  %v66 = vpack.c.b16 %v60, %v59
  %v67 = vpack.c.b16 %v62, %v61
  %v68 = vpack.c.b16 %v64, %v63
  %v73 = vunpack.c.l.b16 %v23
  %v74 = vunpack.c.h.b16 %v23
  %v75 = vunpack.c.l.b16 %v24
  %v76 = vunpack.c.h.b16 %v24
  %v77 = vunpack.c.l.b16 %v25
  %v78 = vunpack.c.h.b16 %v25
  %v79 = vunpack.c.l.b16 %v26
  %v80 = vunpack.c.h.b16 %v26
  %v81 = vpack.c.b16 %v77, %v73
  %v82 = vpack.c.b16 %v78, %v74
  %v83 = vpack.c.b16 %v79, %v75
  %v84 = vpack.c.b16 %v80, %v76
  %vm89 = vcmask 130048
  %v91 = vsel %vm89, %v65, 0
  %v94 = vsel %vm89, %v66, 0
  %v97 = vsel %vm89, %v67, 0
  %v100 = vsel %vm89, %v68, 0
  %102 = vmatprep.subr.bf16.mxu0 0
  %103 = vmatpush1.bf16.msra.mxu0 0
  %104 = vmatprep.subr.bf16.mxu0 0
  %105 = vmatpush1.bf16.msra.mxu0 0
  %106 = vmatprep.subr.bf16.mxu0 0
  %107 = vmatpush1.bf16.msra.mxu0 0
  %108 = vmatprep.subr.bf16.mxu0 0
  %109 = vmatpush1.bf16.msra.mxu0 0
  %110 = vmatprep.subr.bf16.mxu0 0
  %111 = vmatpush1.bf16.msra.mxu0 0
  %112 = vmatprep.subr.bf16.mxu0 0
  %113 = vmatpush1.bf16.msra.mxu0 0
  %114 = vmatprep.subr.bf16.mxu0 0
  %115 = vmatpush1.bf16.msra.mxu0 0
  %116 = vmatprep.subr.bf16.mxu0 %v82
  %117 = vmatpush1.bf16.msra.mxu0 %v81
  %118 = vmatprep.subr.bf16.mxu0 0
  %119 = vmatpush2.bf16.msra.mxu0 0
  %120 = vmatprep.subr.bf16.mxu0 0
  %121 = vmatpush2.bf16.msra.mxu0 0
  %122 = vmatprep.subr.bf16.mxu0 0
  %123 = vmatpush2.bf16.msra.mxu0 0
  %124 = vmatprep.subr.bf16.mxu0 0
  %125 = vmatpush2.bf16.msra.mxu0 0
  %126 = vmatprep.subr.bf16.mxu0 0
  %127 = vmatpush2.bf16.msra.mxu0 0
  %128 = vmatprep.subr.bf16.mxu0 0
  %129 = vmatpush2.bf16.msra.mxu0 0
  %130 = vmatprep.subr.bf16.mxu0 0
  %131 = vmatpush2.bf16.msra.mxu0 0
  %132 = vmatprep.subr.bf16.mxu0 0
  %133 = vmatpush2.bf16.msra.mxu0 0
  %134 = vmatprep.mubr.bf16.mxu0 0
  %135 = vmatmul.mubr.bf16.gmra.mxu0 %v91
  %v136 = vpop.f32.mrf.mxu0
  %v137 = vadd.f32 %v32, %v136
  %v138 = vpop.f32.mrf.mxu0
  %v139 = vadd.f32 %v36, %v138
  %v140 = vpop.f32.mrf.mxu0
  %v141 = vadd.f32 %v32, %v140
  %v142 = vpop.f32.mrf.mxu0
  %v143 = vadd.f32 %v36, %v142
  %144 = vmatprep.mubr.bf16.mxu0 0
  %145 = vmatmul.mubr.bf16.gmra.mxu0 %v94
  %v146 = vpop.f32.mrf.mxu0
  %v147 = vadd.f32 %v32, %v146
  %v148 = vpop.f32.mrf.mxu0
  %v149 = vadd.f32 %v36, %v148
  %v150 = vpop.f32.mrf.mxu0
  %v151 = vadd.f32 %v32, %v150
  %v152 = vpop.f32.mrf.mxu0
  %v153 = vadd.f32 %v36, %v152
  %154 = vmatprep.mubr.bf16.mxu0 0
  %155 = vmatmul.mubr.bf16.gmra.mxu0 %v97
  %v156 = vpop.f32.mrf.mxu0
  %v157 = vadd.f32 %v32, %v156
  %v158 = vpop.f32.mrf.mxu0
  %v159 = vadd.f32 %v36, %v158
  %v160 = vpop.f32.mrf.mxu0
  %v161 = vadd.f32 %v32, %v160
  %v162 = vpop.f32.mrf.mxu0
  %v163 = vadd.f32 %v36, %v162
  %164 = vmatprep.mubr.bf16.mxu0 0
  %165 = vmatmul.mubr.bf16.gmra.mxu0 %v100
  %v166 = vpop.f32.mrf.mxu0
  %v167 = vadd.f32 %v32, %v166
  %v168 = vpop.f32.mrf.mxu0
  %v169 = vadd.f32 %v36, %v168
  %v170 = vpop.f32.mrf.mxu0
  %v171 = vadd.f32 %v32, %v170
  %v172 = vpop.f32.mrf.mxu0
  %v173 = vadd.f32 %v36, %v172
  %174 = vdwg.mxu0
  %175 = vmatprep.subr.bf16.mxu0 0
  %176 = vmatpush1.bf16.msra.mxu0 0
  %177 = vmatprep.subr.bf16.mxu0 0
  %178 = vmatpush1.bf16.msra.mxu0 0
  %179 = vmatprep.subr.bf16.mxu0 0
  %180 = vmatpush1.bf16.msra.mxu0 0
  %181 = vmatprep.subr.bf16.mxu0 0
  %182 = vmatpush1.bf16.msra.mxu0 0
  %183 = vmatprep.subr.bf16.mxu0 0
  %184 = vmatpush1.bf16.msra.mxu0 0
  %185 = vmatprep.subr.bf16.mxu0 0
  %186 = vmatpush1.bf16.msra.mxu0 0
  %187 = vmatprep.subr.bf16.mxu0 0
  %188 = vmatpush1.bf16.msra.mxu0 0
  %189 = vmatprep.subr.bf16.mxu0 %v84
  %190 = vmatpush1.bf16.msra.mxu0 %v83
  %191 = vmatprep.subr.bf16.mxu0 0
  %192 = vmatpush2.bf16.msra.mxu0 0
  %193 = vmatprep.subr.bf16.mxu0 0
  %194 = vmatpush2.bf16.msra.mxu0 0
  %195 = vmatprep.subr.bf16.mxu0 0
  %196 = vmatpush2.bf16.msra.mxu0 0
  %197 = vmatprep.subr.bf16.mxu0 0
  %198 = vmatpush2.bf16.msra.mxu0 0
  %199 = vmatprep.subr.bf16.mxu0 0
  %200 = vmatpush2.bf16.msra.mxu0 0
  %201 = vmatprep.subr.bf16.mxu0 0
  %202 = vmatpush2.bf16.msra.mxu0 0
  %203 = vmatprep.subr.bf16.mxu0 0
  %204 = vmatpush2.bf16.msra.mxu0 0
  %205 = vmatprep.subr.bf16.mxu0 0
  %206 = vmatpush2.bf16.msra.mxu0 0
  %207 = vmatprep.mubr.bf16.mxu0 0
  %208 = vmatmul.mubr.bf16.gmra.mxu0 %v91
  %v209 = vpop.f32.mrf.mxu0
  %v210 = vadd.f32 %v40, %v209
  %v211 = vpop.f32.mrf.mxu0
  %v212 = vadd.f32 %v44, %v211
  %v213 = vpop.f32.mrf.mxu0
  %v214 = vadd.f32 %v40, %v213
  %v215 = vpop.f32.mrf.mxu0
  %v216 = vadd.f32 %v44, %v215
  %217 = vmatprep.mubr.bf16.mxu0 0
  %218 = vmatmul.mubr.bf16.gmra.mxu0 %v94
  %v219 = vpop.f32.mrf.mxu0
  %v220 = vadd.f32 %v40, %v219
  %v221 = vpop.f32.mrf.mxu0
  %v222 = vadd.f32 %v44, %v221
  %v223 = vpop.f32.mrf.mxu0
  %v224 = vadd.f32 %v40, %v223
  %v225 = vpop.f32.mrf.mxu0
  %v226 = vadd.f32 %v44, %v225
  %227 = vmatprep.mubr.bf16.mxu0 0
  %228 = vmatmul.mubr.bf16.gmra.mxu0 %v97
  %v229 = vpop.f32.mrf.mxu0
  %v230 = vadd.f32 %v40, %v229
  %v231 = vpop.f32.mrf.mxu0
  %v232 = vadd.f32 %v44, %v231
  %v233 = vpop.f32.mrf.mxu0
  %v234 = vadd.f32 %v40, %v233
  %v235 = vpop.f32.mrf.mxu0
  %v236 = vadd.f32 %v44, %v235
  %237 = vmatprep.mubr.bf16.mxu0 0
  %238 = vmatmul.mubr.bf16.gmra.mxu0 %v100
  %v239 = vpop.f32.mrf.mxu0
  %v240 = vadd.f32 %v40, %v239
  %v241 = vpop.f32.mrf.mxu0
  %v242 = vadd.f32 %v44, %v241
  %v243 = vpop.f32.mrf.mxu0
  %v244 = vadd.f32 %v40, %v243
  %v245 = vpop.f32.mrf.mxu0
  %v246 = vadd.f32 %v44, %v245
  %247 = vdwg.mxu0
  %v248 = vpack.c.bf16 %v141, %v137
  %v249 = vpack.c.bf16 %v143, %v139
  %v250 = vpack.c.bf16 %v214, %v210
  %v251 = vpack.c.bf16 %v216, %v212
  %v252 = vpack.c.bf16 %v151, %v147
  %v253 = vpack.c.bf16 %v153, %v149
  %v254 = vpack.c.bf16 %v224, %v220
  %v255 = vpack.c.bf16 %v226, %v222
  %v256 = vpack.c.bf16 %v161, %v157
  %v257 = vpack.c.bf16 %v163, %v159
  %v258 = vpack.c.bf16 %v234, %v230
  %v259 = vpack.c.bf16 %v236, %v232
  %v260 = vpack.c.bf16 %v171, %v167
  %v261 = vpack.c.bf16 %v173, %v169
  %v262 = vpack.c.bf16 %v244, %v240
  %v263 = vpack.c.bf16 %v246, %v242
  %v280 = vunpack.c.l.b16 %v248
  %v281 = vunpack.c.l.b16 %v249
  %v282 = vunpack.c.l.b16 %v250
  %v283 = vunpack.c.l.b16 %v251
  %v284 = vunpack.c.h.b16 %v248
  %v285 = vunpack.c.h.b16 %v249
  %v286 = vunpack.c.h.b16 %v250
  %v287 = vunpack.c.h.b16 %v251
  %v288 = vunpack.c.l.b16 %v252
  %v289 = vunpack.c.l.b16 %v253
  %v290 = vunpack.c.l.b16 %v254
  %v291 = vunpack.c.l.b16 %v255
  %v292 = vunpack.c.h.b16 %v252
  %v293 = vunpack.c.h.b16 %v253
  %v294 = vunpack.c.h.b16 %v254
  %v295 = vunpack.c.h.b16 %v255
  %v296 = vunpack.c.l.b16 %v256
  %v297 = vunpack.c.l.b16 %v257
  %v298 = vunpack.c.l.b16 %v258
  %v299 = vunpack.c.l.b16 %v259
  %v300 = vunpack.c.h.b16 %v256
  %v301 = vunpack.c.h.b16 %v257
  %v302 = vunpack.c.h.b16 %v258
  %v303 = vunpack.c.h.b16 %v259
  %v304 = vunpack.c.l.b16 %v260
  %v305 = vunpack.c.l.b16 %v261
  %v306 = vunpack.c.l.b16 %v262
  %v307 = vunpack.c.l.b16 %v263
  %v308 = vunpack.c.h.b16 %v260
  %v309 = vunpack.c.h.b16 %v261
  %v310 = vunpack.c.h.b16 %v262
  %v311 = vunpack.c.h.b16 %v263
  %v312 = vpack.c.b16 %v281, %v280
  %v313 = vpack.c.b16 %v283, %v282
  %v314 = vpack.c.b16 %v285, %v284
  %v315 = vpack.c.b16 %v287, %v286
  %v316 = vpack.c.b16 %v289, %v288
  %v317 = vpack.c.b16 %v291, %v290
  %v318 = vpack.c.b16 %v293, %v292
  %v319 = vpack.c.b16 %v295, %v294
  %v320 = vpack.c.b16 %v297, %v296
  %v321 = vpack.c.b16 %v299, %v298
  %v322 = vpack.c.b16 %v301, %v300
  %v323 = vpack.c.b16 %v303, %v302
  %v324 = vpack.c.b16 %v305, %v304
  %v325 = vpack.c.b16 %v307, %v306
  %v326 = vpack.c.b16 %v309, %v308
  %v327 = vpack.c.b16 %v311, %v310
  %344 = vst [vmem:[%s3] sm:$0xff] %v312
  %345 = vst [vmem:[%s3 + $0x8] sm:$0xff] %v313
  %346 = vst [vmem:[%s3 + $0x10] sm:$0xff] %v314
  %347 = vst [vmem:[%s3 + $0x18] sm:$0xff] %v315
  %348 = vst [vmem:[%s3 + $0x20] sm:$0xff] %v316
  %349 = vst [vmem:[%s3 + $0x28] sm:$0xff] %v317
  %350 = vst [vmem:[%s3 + $0x30] sm:$0xff] %v318
  %351 = vst [vmem:[%s3 + $0x38] sm:$0xff] %v319
  %352 = vst [vmem:[%s3 + $0x40] sm:$0xff] %v320
  %353 = vst [vmem:[%s3 + $0x48] sm:$0xff] %v321
  %354 = vst [vmem:[%s3 + $0x50] sm:$0xff] %v322
  %355 = vst [vmem:[%s3 + $0x58] sm:$0xff] %v323
  %356 = vst [vmem:[%s3 + $0x60] sm:$0xff] %v324
  %357 = vst [vmem:[%s3 + $0x68] sm:$0xff] %v325
  %358 = vst [vmem:[%s3 + $0x70] sm:$0xff] %v326
  %359 = vst [vmem:[%s3 + $0x78] sm:$0xff] %v327
  // Predicated region
  $region14: #{lstm_forward.3} parent=0 // pred_check
    _
  $region15: #{lstm_forward.3} parent=0 // pred_check_branch
    %361 = sbr.rel (0) target = $region17
  $region16: #{lstm_forward.3} parent=0 // pred_region
    _
  $region17: #{lstm_forward.3} parent=0 // pred_fallthru
    _
  // Predicated region
  $region18: #{lstm_forward.3} parent=0 // pred_check
    _
  $region19: #{lstm_forward.3} parent=0 // pred_check_branch
    %363 = sbr.rel (0) target = $region21
  $region20: #{lstm_forward.3} parent=0 // pred_region
    _
  $region21: #{lstm_forward.3} parent=0 // pred_fallthru
    _

// kernel: lstm_forward.4
$region0: #{lstm_forward.4}
  #allocation0 [shape = 'u32[]', space=smem, size = 0x4, offset = 0x4, fixed_abs, tag = 'smem constant byte address 0x4 - core index']
  #allocation1 [shape = 'u32[144,128]{1,0:T(1,128)}', space=vmem, size = 0x12000, scoped, tag = 'internal scratch']
  #allocation2 [shape = 'f32[8,128]{1,0:T(8,128)}', space=vmem, size = 0x1000, scoped, tag = 'scratch operand']
  #allocation3 [shape = 'f32[8,128]{1,0:T(8,128)}', space=vmem, size = 0x1000, scoped, tag = 'scratch operand']
  #allocation4 [shape = 's32[1]{0:T(128)S(6)}', space=smem, size = 0x200, scoped, tag = 'scoped memory for lstm_forward.4']
  %s0 = inlined_call_operand.<no memory space> [shape: s32[1], index: 0, kind: input, shape index: {}]
  %s1 = inlined_call_operand.vmem [shape: s32[8,1], index: 1, kind: input, shape index: {}]
  %s2 = inlined_call_operand.vmem [shape: bf16[8,8,512], index: 2, kind: input, shape index: {}]
  %s3 = inlined_call_operand.vmem [shape: bf16[128,512], index: 3, kind: input, shape index: {}]
  %s4 = inlined_call_operand.vmem [shape: f32[8,128], index: 4, kind: output, shape index: {}]
  %s5 = sld [smem:[#allocation0]]
  $region65: #{lstm_forward.4} parent=0
    _
  %s7 = ssub.s32 1, %s5
  %s8 = scalar_select 0, %s7, %s5
  %9 = sst [smem:[#allocation4]] %s0
  loop: start=0, step=1, limit=4
  $region2: #{lstm_forward.4} parent=0 // loop_pre_header
    _
  $region3: #{lstm_forward.4} parent=0 // loop_header
    %s11 = sphi 0, %s15
    %p12 = scmp.ge.s32.totalorder %s11, 4
    %s19 = sphi 0, %s19
    %s21 = sphi 0, %s19
    %s22 = sphi 0, %s21
    %s36 = sphi 0, %s22
    %s40 = sphi 0, %s40
    %s42 = sphi 0, %s40
    %s43 = sphi 0, %s42
    %s57 = sphi 0, %s43
    %s63 = sphi 0, %s65
    %s66 = sphi 0, %s63
    %s67 = sphi 0, %s66
    %s83 = sphi 0, %s67
    %s87 = sphi 0, %s87
    %s89 = sphi 0, %s87
    %s90 = sphi 0, %s89
    %s104 = sphi 0, %s90
    %s108 = sphi 0, %s108
    %s110 = sphi 0, %s108
    %s111 = sphi 0, %s110
    %s125 = sphi 0, %s111
  $region4: #{lstm_forward.4} parent=0 // loop_header_branch
    %14 = sbr.rel (%p12) target = $region8
  $region5: #{lstm_forward.4} parent=0 // loop_body
    %s16 = ssub.s32 %s11, 1
    %s17 = ssub.s32 %s11, 2
    %s18 = sadd.s32 %s11, 1
    %s20 = sadd.s32 %s19, 1
    %p23 = scmp.eq.s32.totalorder %s11, 1
    %p24 = scmp.ne.s32.totalorder %s19, %s21
    %p25 = scmp.eq.s32.totalorder %s11, 0
    %p26 = por %p24, %p25
    %p27 = scmp.ne.s32.totalorder %s19, %s21
    %p28 = scmp.eq.s32.totalorder %s16, 1
    %p29 = por %p27, %p28
    %p30 = scmp.ne.s32.totalorder %s21, %s22
    %p31 = scmp.eq.s32.totalorder %s16, 0
    %p32 = por %p30, %p31
    %p33 = scmp.ne.s32.totalorder %s21, %s22
    %p34 = scmp.eq.s32.totalorder %s17, 1
    %p35 = por %p33, %p34
    %p37 = scmp.ne.s32.totalorder %s22, %s36
    %p38 = scmp.eq.s32.totalorder %s17, 0
    %p39 = por %p37, %p38
    %s41 = sadd.s32 %s40, 1
    %p44 = scmp.eq.s32.totalorder %s11, 1
    %p45 = scmp.ne.s32.totalorder %s40, %s42
    %p46 = scmp.eq.s32.totalorder %s11, 0
    %p47 = por %p45, %p46
    %p48 = scmp.ne.s32.totalorder %s40, %s42
    %p49 = scmp.eq.s32.totalorder %s16, 1
    %p50 = por %p48, %p49
    %p51 = scmp.ne.s32.totalorder %s42, %s43
    %p52 = scmp.eq.s32.totalorder %s16, 0
    %p53 = por %p51, %p52
    %p54 = scmp.ne.s32.totalorder %s42, %s43
    %p55 = scmp.eq.s32.totalorder %s17, 1
    %p56 = por %p54, %p55
    %p58 = scmp.ne.s32.totalorder %s43, %s57
    %p59 = scmp.eq.s32.totalorder %s17, 0
    %p60 = por %p58, %p59
    %s61 = ssub.s32 %s11, %s18
    %p62 = scmp.eq.s32.totalorder %s61, 0
    %s64 = sadd.s32 %s63, 1
    %s65 = scalar_select %p62, %s63, %s64
    %p68 = pneg %p62
    %p69 = scmp.eq.s32.totalorder %s11, 1
    %p70 = por %p68, %p69
    %p71 = scmp.ne.s32.totalorder %s63, %s66
    %p72 = scmp.eq.s32.totalorder %s11, 0
    %p73 = por %p71, %p72
    %p74 = scmp.ne.s32.totalorder %s63, %s66
    %p75 = scmp.eq.s32.totalorder %s16, 1
    %p76 = por %p74, %p75
    %p77 = scmp.ne.s32.totalorder %s66, %s67
    %p78 = scmp.eq.s32.totalorder %s16, 0
    %p79 = por %p77, %p78
    %p80 = scmp.ne.s32.totalorder %s66, %s67
    %p81 = scmp.eq.s32.totalorder %s17, 1
    %p82 = por %p80, %p81
    %p84 = scmp.ne.s32.totalorder %s67, %s83
    %p85 = scmp.eq.s32.totalorder %s17, 0
    %p86 = por %p84, %p85
    %s88 = sadd.s32 %s87, 1
    %p91 = scmp.eq.s32.totalorder %s11, 1
    %p92 = scmp.ne.s32.totalorder %s87, %s89
    %p93 = scmp.eq.s32.totalorder %s11, 0
    %p94 = por %p92, %p93
    %p95 = scmp.ne.s32.totalorder %s87, %s89
    %p96 = scmp.eq.s32.totalorder %s16, 1
    %p97 = por %p95, %p96
    %p98 = scmp.ne.s32.totalorder %s89, %s90
    %p99 = scmp.eq.s32.totalorder %s16, 0
    %p100 = por %p98, %p99
    %p101 = scmp.ne.s32.totalorder %s89, %s90
    %p102 = scmp.eq.s32.totalorder %s17, 1
    %p103 = por %p101, %p102
    %p105 = scmp.ne.s32.totalorder %s90, %s104
    %p106 = scmp.eq.s32.totalorder %s17, 0
    %p107 = por %p105, %p106
    %s109 = sadd.s32 %s108, 1
    %p112 = scmp.eq.s32.totalorder %s11, 1
    %p113 = scmp.ne.s32.totalorder %s108, %s110
    %p114 = scmp.eq.s32.totalorder %s11, 0
    %p115 = por %p113, %p114
    %p116 = scmp.ne.s32.totalorder %s108, %s110
    %p117 = scmp.eq.s32.totalorder %s16, 1
    %p118 = por %p116, %p117
    %p119 = scmp.ne.s32.totalorder %s110, %s111
    %p120 = scmp.eq.s32.totalorder %s16, 0
    %p121 = por %p119, %p120
    %p122 = scmp.ne.s32.totalorder %s110, %s111
    %p123 = scmp.eq.s32.totalorder %s17, 1
    %p124 = por %p122, %p123
    %p126 = scmp.ne.s32.totalorder %s111, %s125
    %p127 = scmp.eq.s32.totalorder %s17, 0
    %p128 = por %p126, %p127
    %p129 = scmp.le.s32.totalorder 1, %s11
    %p130 = scmp.lt.s32.totalorder %s11, 3
    %p131 = pnand %p129, %p130
    %p132 = pneg %p131
    // Predicated region
    $region9: #{lstm_forward.4} parent=5 // pred_check
      _
    $region10: #{lstm_forward.4} parent=5 // pred_check_branch
      %134 = sbr.rel (%p131) target = $region12
    $region11: #{lstm_forward.4} parent=5 // pred_region
      %s135 = ssub.s32 %s11, 1
      // Predicated region
      $region13: #{lstm_forward.4} parent=11 // pred_check
        %p136 = pneg %p32
      $region14: #{lstm_forward.4} parent=11 // pred_check_branch
        %138 = sbr.rel (%p136) target = $region16
      $region15: #{lstm_forward.4} parent=11 // pred_region
        _
      $region16: #{lstm_forward.4} parent=11 // pred_fallthru
        _
      // Predicated region
      $region17: #{lstm_forward.4} parent=11 // pred_check
        %p139 = pneg %p53
      $region18: #{lstm_forward.4} parent=11 // pred_check_branch
        %141 = sbr.rel (%p139) target = $region20
      $region19: #{lstm_forward.4} parent=11 // pred_region
        _
      $region20: #{lstm_forward.4} parent=11 // pred_fallthru
        _
      // Predicated region
      $region21: #{lstm_forward.4} parent=11 // pred_check
        %p142 = pneg %p100
      $region22: #{lstm_forward.4} parent=11 // pred_check_branch
        %144 = sbr.rel (%p142) target = $region24
      $region23: #{lstm_forward.4} parent=11 // pred_region
        _
      $region24: #{lstm_forward.4} parent=11 // pred_fallthru
        _
    $region12: #{lstm_forward.4} parent=5 // pred_fallthru
      _
    %p145 = scmp.lt.s32.totalorder %s11, 2
    // Predicated region
    $region25: #{lstm_forward.4} parent=5 // pred_check
      %p146 = pneg %p145
    $region26: #{lstm_forward.4} parent=5 // pred_check_branch
      %148 = sbr.rel (%p146) target = $region28
    $region27: #{lstm_forward.4} parent=5 // pred_region
      // Predicated region
      $region29: #{lstm_forward.4} parent=27 // pred_check
        %p149 = pneg %p73
      $region30: #{lstm_forward.4} parent=27 // pred_check_branch
        %151 = sbr.rel (%p149) target = $region32
      $region31: #{lstm_forward.4} parent=27 // pred_region
        %s152 = smul.u32 4, %s11
        %p153 = scmp.lt.s32.totalorder %s152, 7
        %s154 = scalar_select %p153, %s152, 7
        %s155 = smul.addr %s154, 4
        %s156 = smul.addr %s155, 4
        %s157 = scalar_lea.vmem %s2, %s156
        %s158 = smul.u32 4, %s11
      $region32: #{lstm_forward.4} parent=27 // pred_fallthru
        _
    $region28: #{lstm_forward.4} parent=5 // pred_fallthru
      _
    %p159 = scmp.le.s32.totalorder 1, %s11
    %p160 = scmp.lt.s32.totalorder %s11, 3
    %p161 = pnand %p159, %p160
    %p162 = pneg %p161
    // Predicated region
    $region33: #{lstm_forward.4} parent=5 // pred_check
      _
    $region34: #{lstm_forward.4} parent=5 // pred_check_branch
      %164 = sbr.rel (%p161) target = $region36
    $region35: #{lstm_forward.4} parent=5 // pred_region
      %s165 = ssub.s32 %s11, 1
      %p166 = pneg %p32
      %p167 = pneg %p29
      %p168 = pneg %p53
      %p169 = pneg %p50
      %s170 = smul.u32 4, %s16
      %p171 = scmp.lt.s32.totalorder %s170, 7
      %s172 = scalar_select %p171, %s170, 7
      %s173 = smul.addr %s172, 4
      %s174 = smul.addr %s173, 4
      %s175 = scalar_lea.vmem %s2, %s174
      %p176 = pneg %p79
      %p177 = pneg %p76
      %p178 = pneg %p100
      %p179 = pneg %p97
      %p180 = pneg %p121
      %p181 = pneg %p118
      %s182 = smul.u32 4, %s16
      %p183 = scmp.lt.s32.totalorder %s182, 7
      %s184 = scalar_select %p183, %s182, 7
      %s185 = smul.addr %s184, 4
      %s186 = smul.addr %s185, 4
      %s187 = scalar_lea.vmem %s2, %s186
      %s188 = smul.u32 4, %s16
      %s190 = smul.u32 %s16, 4
      %p191 = scmp.eq.s32.totalorder %s16, 0
      // Predicated region
      $region37: #{lstm_forward.4} parent=35 // pred_check
        %p192 = pneg %p191
      $region38: #{lstm_forward.4} parent=35 // pred_check_branch
        %194 = sbr.rel (%p192) target = $region40
      $region39: #{lstm_forward.4} parent=35 // pred_region
        %195 = vst [vmem:[#allocation2] sm:$0xff] 0.0
        %196 = vst [vmem:[#allocation3] sm:$0xff] 0.0
      $region40: #{lstm_forward.4} parent=35 // pred_fallthru
        _
      %v197 = vld [vmem:[%s3] sm:$0xff]
      %v198 = vld [vmem:[%s3 + $0x8] sm:$0xff]
      %v199 = vld [vmem:[%s3 + $0x10] sm:$0xff]
      %v200 = vld [vmem:[%s3 + $0x18] sm:$0xff]
      %v201 = vld [vmem:[%s3 + $0x20] sm:$0xff]
      %v202 = vld [vmem:[%s3 + $0x28] sm:$0xff]
      %v203 = vld [vmem:[%s3 + $0x30] sm:$0xff]
      %v204 = vld [vmem:[%s3 + $0x38] sm:$0xff]
      %v205 = vld [vmem:[%s3 + $0x40] sm:$0xff]
      %v206 = vld [vmem:[%s3 + $0x48] sm:$0xff]
      %v207 = vld [vmem:[%s3 + $0x50] sm:$0xff]
      %v208 = vld [vmem:[%s3 + $0x58] sm:$0xff]
      %v209 = vld [vmem:[%s3 + $0x60] sm:$0xff]
      %v210 = vld [vmem:[%s3 + $0x68] sm:$0xff]
      %v211 = vld [vmem:[%s3 + $0x70] sm:$0xff]
      %v212 = vld [vmem:[%s3 + $0x78] sm:$0xff]
      %v213 = vld [vmem:[%s3 + $0x80] sm:$0xff]
      %v214 = vld [vmem:[%s3 + $0x88] sm:$0xff]
      %v215 = vld [vmem:[%s3 + $0x90] sm:$0xff]
      %v216 = vld [vmem:[%s3 + $0x98] sm:$0xff]
      %v217 = vld [vmem:[%s3 + $0xa0] sm:$0xff]
      %v218 = vld [vmem:[%s3 + $0xa8] sm:$0xff]
      %v219 = vld [vmem:[%s3 + $0xb0] sm:$0xff]
      %v220 = vld [vmem:[%s3 + $0xb8] sm:$0xff]
      %v221 = vld [vmem:[%s3 + $0xc0] sm:$0xff]
      %v222 = vld [vmem:[%s3 + $0xc8] sm:$0xff]
      %v223 = vld [vmem:[%s3 + $0xd0] sm:$0xff]
      %v224 = vld [vmem:[%s3 + $0xd8] sm:$0xff]
      %v225 = vld [vmem:[%s3 + $0xe0] sm:$0xff]
      %v226 = vld [vmem:[%s3 + $0xe8] sm:$0xff]
      %v227 = vld [vmem:[%s3 + $0xf0] sm:$0xff]
      %v228 = vld [vmem:[%s3 + $0xf8] sm:$0xff]
      %s229 = sadd.s32 %s190, 4
      %s230 = sld [smem:[#allocation4]]
      %p231 = scmp.le.s32.totalorder %s229, %s230
      // Predicated region
      $region41: #{lstm_forward.4} parent=35 // pred_check
        %p232 = pneg %p231
      $region42: #{lstm_forward.4} parent=35 // pred_check_branch
        %234 = sbr.rel (%p232) target = $region44
      $region43: #{lstm_forward.4} parent=35 // pred_region
        %v235 = vld [vmem:[#allocation2] sm:$0xff]
        %v236 = vld [vmem:[#allocation3] sm:$0xff]
        %v237 = vld [vmem:[%s187] sm:$0xff]
        %v238 = vld [vmem:[%s187 + $0x8] sm:$0xff]
        %v239 = vunpack.c.l.bf16 %v237
        %v240 = vunpack.c.h.bf16 %v237
        %v241 = vunpack.c.l.bf16 %v238
        %v242 = vunpack.c.h.bf16 %v238
        %v243 = vpack.c.bf16 %v235, %v235
        %v276 = vunpack.c.l.b16 %v197
        %v277 = vunpack.c.h.b16 %v197
        %v278 = vunpack.c.l.b16 %v198
        %v279 = vunpack.c.h.b16 %v198
        %v280 = vunpack.c.l.b16 %v199
        %v281 = vunpack.c.h.b16 %v199
        %v282 = vunpack.c.l.b16 %v200
        %v283 = vunpack.c.h.b16 %v200
        %v284 = vunpack.c.l.b16 %v201
        %v285 = vunpack.c.h.b16 %v201
        %v286 = vunpack.c.l.b16 %v202
        %v287 = vunpack.c.h.b16 %v202
        %v288 = vunpack.c.l.b16 %v203
        %v289 = vunpack.c.h.b16 %v203
        %v290 = vunpack.c.l.b16 %v204
        %v291 = vunpack.c.h.b16 %v204
        %v292 = vunpack.c.l.b16 %v205
        %v293 = vunpack.c.h.b16 %v205
        %v294 = vunpack.c.l.b16 %v206
        %v295 = vunpack.c.h.b16 %v206
        %v296 = vunpack.c.l.b16 %v207
        %v297 = vunpack.c.h.b16 %v207
        %v298 = vunpack.c.l.b16 %v208
        %v299 = vunpack.c.h.b16 %v208
        %v300 = vunpack.c.l.b16 %v209
        %v301 = vunpack.c.h.b16 %v209
        %v302 = vunpack.c.l.b16 %v210
        %v303 = vunpack.c.h.b16 %v210
        %v304 = vunpack.c.l.b16 %v211
        %v305 = vunpack.c.h.b16 %v211
        %v306 = vunpack.c.l.b16 %v212
        %v307 = vunpack.c.h.b16 %v212
        %v308 = vunpack.c.l.b16 %v213
        %v309 = vunpack.c.h.b16 %v213
        %v310 = vunpack.c.l.b16 %v214
        %v311 = vunpack.c.h.b16 %v214
        %v312 = vunpack.c.l.b16 %v215
        %v313 = vunpack.c.h.b16 %v215
        %v314 = vunpack.c.l.b16 %v216
        %v315 = vunpack.c.h.b16 %v216
        %v316 = vunpack.c.l.b16 %v217
        %v317 = vunpack.c.h.b16 %v217
        %v318 = vunpack.c.l.b16 %v218
        %v319 = vunpack.c.h.b16 %v218
        %v320 = vunpack.c.l.b16 %v219
        %v321 = vunpack.c.h.b16 %v219
        %v322 = vunpack.c.l.b16 %v220
        %v323 = vunpack.c.h.b16 %v220
        %v324 = vunpack.c.l.b16 %v221
        %v325 = vunpack.c.h.b16 %v221
        %v326 = vunpack.c.l.b16 %v222
        %v327 = vunpack.c.h.b16 %v222
        %v328 = vunpack.c.l.b16 %v223
        %v329 = vunpack.c.h.b16 %v223
        %v330 = vunpack.c.l.b16 %v224
        %v331 = vunpack.c.h.b16 %v224
        %v332 = vunpack.c.l.b16 %v225
        %v333 = vunpack.c.h.b16 %v225
        %v334 = vunpack.c.l.b16 %v226
        %v335 = vunpack.c.h.b16 %v226
        %v336 = vunpack.c.l.b16 %v227
        %v337 = vunpack.c.h.b16 %v227
        %v338 = vunpack.c.l.b16 %v228
        %v339 = vunpack.c.h.b16 %v228
        %v340 = vpack.c.b16 %v280, %v276
        %v341 = vpack.c.b16 %v281, %v277
        %v342 = vpack.c.b16 %v282, %v278
        %v343 = vpack.c.b16 %v283, %v279
        %v344 = vpack.c.b16 %v288, %v284
        %v345 = vpack.c.b16 %v289, %v285
        %v346 = vpack.c.b16 %v290, %v286
        %v347 = vpack.c.b16 %v291, %v287
        %v348 = vpack.c.b16 %v296, %v292
        %v349 = vpack.c.b16 %v297, %v293
        %v350 = vpack.c.b16 %v298, %v294
        %v351 = vpack.c.b16 %v299, %v295
        %v352 = vpack.c.b16 %v304, %v300
        %v353 = vpack.c.b16 %v305, %v301
        %v354 = vpack.c.b16 %v306, %v302
        %v355 = vpack.c.b16 %v307, %v303
        %v356 = vpack.c.b16 %v312, %v308
        %v357 = vpack.c.b16 %v313, %v309
        %v358 = vpack.c.b16 %v314, %v310
        %v359 = vpack.c.b16 %v315, %v311
        %v360 = vpack.c.b16 %v320, %v316
        %v361 = vpack.c.b16 %v321, %v317
        %v362 = vpack.c.b16 %v322, %v318
        %v363 = vpack.c.b16 %v323, %v319
        %v364 = vpack.c.b16 %v328, %v324
        %v365 = vpack.c.b16 %v329, %v325
        %v366 = vpack.c.b16 %v330, %v326
        %v367 = vpack.c.b16 %v331, %v327
        %v368 = vpack.c.b16 %v336, %v332
        %v369 = vpack.c.b16 %v337, %v333
        %v370 = vpack.c.b16 %v338, %v334
        %v371 = vpack.c.b16 %v339, %v335
        %404 = vmatprep.subr.bf16.mxu0 %v369
        %405 = vmatpush1.bf16.msra.mxu0 %v368
        %406 = vmatprep.subr.bf16.mxu0 %v365
        %407 = vmatpush1.bf16.msra.mxu0 %v364
        %408 = vmatprep.subr.bf16.mxu0 %v361
        %409 = vmatpush1.bf16.msra.mxu0 %v360
        %410 = vmatprep.subr.bf16.mxu0 %v357
        %411 = vmatpush1.bf16.msra.mxu0 %v356
        %412 = vmatprep.subr.bf16.mxu0 %v353
        %413 = vmatpush1.bf16.msra.mxu0 %v352
        %414 = vmatprep.subr.bf16.mxu0 %v349
        %415 = vmatpush1.bf16.msra.mxu0 %v348
        %416 = vmatprep.subr.bf16.mxu0 %v345
        %417 = vmatpush1.bf16.msra.mxu0 %v344
        %418 = vmatprep.subr.bf16.mxu0 %v341
        %419 = vmatpush1.bf16.msra.mxu0 %v340
        %420 = vmatprep.subr.bf16.mxu0 0
        %421 = vmatpush2.bf16.msra.mxu0 0
        %422 = vmatprep.subr.bf16.mxu0 0
        %423 = vmatpush2.bf16.msra.mxu0 0
        %424 = vmatprep.subr.bf16.mxu0 0
        %425 = vmatpush2.bf16.msra.mxu0 0
        %426 = vmatprep.subr.bf16.mxu0 0
        %427 = vmatpush2.bf16.msra.mxu0 0
        %428 = vmatprep.subr.bf16.mxu0 0
        %429 = vmatpush2.bf16.msra.mxu0 0
        %430 = vmatprep.subr.bf16.mxu0 0
        %431 = vmatpush2.bf16.msra.mxu0 0
        %432 = vmatprep.subr.bf16.mxu0 0
        %433 = vmatpush2.bf16.msra.mxu0 0
        %434 = vmatprep.subr.bf16.mxu0 0
        %435 = vmatpush2.bf16.msra.mxu0 0
        %436 = vmatprep.mubr.bf16.mxu0 0
        %437 = vmatmul.mubr.bf16.gmra.mxu0 %v243
        %v438 = vpop.f32.mrf.mxu0
        %v439 = vadd.f32 0.0, %v438
        %v440 = vpop.f32.mrf.mxu0
        %v441 = vadd.f32 0.0, %v440
        %v442 = vpop.f32.mrf.mxu0
        %v443 = vpop.f32.mrf.mxu0
        %444 = vdwg.mxu0
        %445 = vmatprep.subr.bf16.mxu0 %v371
        %446 = vmatpush1.bf16.msra.mxu0 %v370
        %447 = vmatprep.subr.bf16.mxu0 %v367
        %448 = vmatpush1.bf16.msra.mxu0 %v366
        %449 = vmatprep.subr.bf16.mxu0 %v363
        %450 = vmatpush1.bf16.msra.mxu0 %v362
        %451 = vmatprep.subr.bf16.mxu0 %v359
        %452 = vmatpush1.bf16.msra.mxu0 %v358
        %453 = vmatprep.subr.bf16.mxu0 %v355
        %454 = vmatpush1.bf16.msra.mxu0 %v354
        %455 = vmatprep.subr.bf16.mxu0 %v351
        %456 = vmatpush1.bf16.msra.mxu0 %v350
        %457 = vmatprep.subr.bf16.mxu0 %v347
        %458 = vmatpush1.bf16.msra.mxu0 %v346
        %459 = vmatprep.subr.bf16.mxu0 %v343
        %460 = vmatpush1.bf16.msra.mxu0 %v342
        %461 = vmatprep.subr.bf16.mxu0 0
        %462 = vmatpush2.bf16.msra.mxu0 0
        %463 = vmatprep.subr.bf16.mxu0 0
        %464 = vmatpush2.bf16.msra.mxu0 0
        %465 = vmatprep.subr.bf16.mxu0 0
        %466 = vmatpush2.bf16.msra.mxu0 0
        %467 = vmatprep.subr.bf16.mxu0 0
        %468 = vmatpush2.bf16.msra.mxu0 0
        %469 = vmatprep.subr.bf16.mxu0 0
        %470 = vmatpush2.bf16.msra.mxu0 0
        %471 = vmatprep.subr.bf16.mxu0 0
        %472 = vmatpush2.bf16.msra.mxu0 0
        %473 = vmatprep.subr.bf16.mxu0 0
        %474 = vmatpush2.bf16.msra.mxu0 0
        %475 = vmatprep.subr.bf16.mxu0 0
        %476 = vmatpush2.bf16.msra.mxu0 0
        %477 = vmatprep.mubr.bf16.mxu0 0
        %478 = vmatmul.mubr.bf16.gmra.mxu0 %v243
        %v479 = vpop.f32.mrf.mxu0
        %v480 = vadd.f32 0.0, %v479
        %v481 = vpop.f32.mrf.mxu0
        %v482 = vadd.f32 0.0, %v481
        %v483 = vpop.f32.mrf.mxu0
        %v484 = vpop.f32.mrf.mxu0
        %485 = vdwg.mxu0
        %v486 = vadd.f32 %v239, %v439
        %v487 = vadd.f32 %v240, %v441
        %v488 = vadd.f32 %v241, %v480
        %v489 = vadd.f32 %v242, %v482
        %v490 = vxor.u32 %v486, 2147483648
        %v491 = vmul.f32 %v490, 1.442695
        %v492 = vpow.pop %v491
        %v493 = vadd.f32 %v492, 1.0
        %v494 = vrcp.pop %v493
        %v495 = vmul.f32 1.0, %v494
        %v496 = vxor.u32 %v487, 2147483648
        %v497 = vmul.f32 %v496, 1.442695
        %v498 = vpow.pop %v497
        %v499 = vadd.f32 %v498, 1.0
        %v500 = vrcp.pop %v499
        %v501 = vmul.f32 1.0, %v500
        %v502 = vtanh.pop %v488
        %v503 = vxor.u32 %v489, 2147483648
        %v504 = vmul.f32 %v503, 1.442695
        %v505 = vpow.pop %v504
        %v506 = vadd.f32 %v505, 1.0
        %v507 = vrcp.pop %v506
        %v508 = vmul.f32 1.0, %v507
        %v509 = vmul.f32 %v501, %v236
        %v510 = vmul.f32 %v495, %v502
        %v511 = vadd.f32 %v509, %v510
        %v512 = vtanh.pop %v511
        %v513 = vmul.f32 %v508, %v512
        %s514 = scalar_lea.vmem %s187, 16
        %v515 = vld [vmem:[%s514] sm:$0xff]
        %v516 = vld [vmem:[%s514 + $0x8] sm:$0xff]
        %v517 = vunpack.c.l.bf16 %v515
        %v518 = vunpack.c.h.bf16 %v515
        %v519 = vunpack.c.l.bf16 %v516
        %v520 = vunpack.c.h.bf16 %v516
        %v521 = vpack.c.bf16 %v513, %v513
        %522 = vmatprep.subr.bf16.mxu0 %v369
        %523 = vmatpush1.bf16.msra.mxu0 %v368
        %524 = vmatprep.subr.bf16.mxu0 %v365
        %525 = vmatpush1.bf16.msra.mxu0 %v364
        %526 = vmatprep.subr.bf16.mxu0 %v361
        %527 = vmatpush1.bf16.msra.mxu0 %v360
        %528 = vmatprep.subr.bf16.mxu0 %v357
        %529 = vmatpush1.bf16.msra.mxu0 %v356
        %530 = vmatprep.subr.bf16.mxu0 %v353
        %531 = vmatpush1.bf16.msra.mxu0 %v352
        %532 = vmatprep.subr.bf16.mxu0 %v349
        %533 = vmatpush1.bf16.msra.mxu0 %v348
        %534 = vmatprep.subr.bf16.mxu0 %v345
        %535 = vmatpush1.bf16.msra.mxu0 %v344
        %536 = vmatprep.subr.bf16.mxu0 %v341
        %537 = vmatpush1.bf16.msra.mxu0 %v340
        %538 = vmatprep.subr.bf16.mxu0 0
        %539 = vmatpush2.bf16.msra.mxu0 0
        %540 = vmatprep.subr.bf16.mxu0 0
        %541 = vmatpush2.bf16.msra.mxu0 0
        %542 = vmatprep.subr.bf16.mxu0 0
        %543 = vmatpush2.bf16.msra.mxu0 0
        %544 = vmatprep.subr.bf16.mxu0 0
        %545 = vmatpush2.bf16.msra.mxu0 0
        %546 = vmatprep.subr.bf16.mxu0 0
        %547 = vmatpush2.bf16.msra.mxu0 0
        %548 = vmatprep.subr.bf16.mxu0 0
        %549 = vmatpush2.bf16.msra.mxu0 0
        %550 = vmatprep.subr.bf16.mxu0 0
        %551 = vmatpush2.bf16.msra.mxu0 0
        %552 = vmatprep.subr.bf16.mxu0 0
        %553 = vmatpush2.bf16.msra.mxu0 0
        %554 = vmatprep.mubr.bf16.mxu0 0
        %555 = vmatmul.mubr.bf16.gmra.mxu0 %v521
        %v556 = vpop.f32.mrf.mxu0
        %v557 = vadd.f32 0.0, %v556
        %v558 = vpop.f32.mrf.mxu0
        %v559 = vadd.f32 0.0, %v558
        %v560 = vpop.f32.mrf.mxu0
        %v561 = vpop.f32.mrf.mxu0
        %562 = vdwg.mxu0
        %563 = vmatprep.subr.bf16.mxu0 %v371
        %564 = vmatpush1.bf16.msra.mxu0 %v370
        %565 = vmatprep.subr.bf16.mxu0 %v367
        %566 = vmatpush1.bf16.msra.mxu0 %v366
        %567 = vmatprep.subr.bf16.mxu0 %v363
        %568 = vmatpush1.bf16.msra.mxu0 %v362
        %569 = vmatprep.subr.bf16.mxu0 %v359
        %570 = vmatpush1.bf16.msra.mxu0 %v358
        %571 = vmatprep.subr.bf16.mxu0 %v355
        %572 = vmatpush1.bf16.msra.mxu0 %v354
        %573 = vmatprep.subr.bf16.mxu0 %v351
        %574 = vmatpush1.bf16.msra.mxu0 %v350
        %575 = vmatprep.subr.bf16.mxu0 %v347
        %576 = vmatpush1.bf16.msra.mxu0 %v346
        %577 = vmatprep.subr.bf16.mxu0 %v343
        %578 = vmatpush1.bf16.msra.mxu0 %v342
        %579 = vmatprep.subr.bf16.mxu0 0
        %580 = vmatpush2.bf16.msra.mxu0 0
        %581 = vmatprep.subr.bf16.mxu0 0
        %582 = vmatpush2.bf16.msra.mxu0 0
        %583 = vmatprep.subr.bf16.mxu0 0
        %584 = vmatpush2.bf16.msra.mxu0 0
        %585 = vmatprep.subr.bf16.mxu0 0
        %586 = vmatpush2.bf16.msra.mxu0 0
        %587 = vmatprep.subr.bf16.mxu0 0
        %588 = vmatpush2.bf16.msra.mxu0 0
        %589 = vmatprep.subr.bf16.mxu0 0
        %590 = vmatpush2.bf16.msra.mxu0 0
        %591 = vmatprep.subr.bf16.mxu0 0
        %592 = vmatpush2.bf16.msra.mxu0 0
        %593 = vmatprep.subr.bf16.mxu0 0
        %594 = vmatpush2.bf16.msra.mxu0 0
        %595 = vmatprep.mubr.bf16.mxu0 0
        %596 = vmatmul.mubr.bf16.gmra.mxu0 %v521
        %v597 = vpop.f32.mrf.mxu0
        %v598 = vadd.f32 0.0, %v597
        %v599 = vpop.f32.mrf.mxu0
        %v600 = vadd.f32 0.0, %v599
        %v601 = vpop.f32.mrf.mxu0
        %v602 = vpop.f32.mrf.mxu0
        %603 = vdwg.mxu0
        %v604 = vadd.f32 %v517, %v557
        %v605 = vadd.f32 %v518, %v559
        %v606 = vadd.f32 %v519, %v598
        %v607 = vadd.f32 %v520, %v600
        %v608 = vxor.u32 %v604, 2147483648
        %v609 = vmul.f32 %v608, 1.442695
        %v610 = vpow.pop %v609
        %v611 = vadd.f32 %v610, 1.0
        %v612 = vrcp.pop %v611
        %v613 = vmul.f32 1.0, %v612
        %v614 = vxor.u32 %v605, 2147483648
        %v615 = vmul.f32 %v614, 1.442695
        %v616 = vpow.pop %v615
        %v617 = vadd.f32 %v616, 1.0
        %v618 = vrcp.pop %v617
        %v619 = vmul.f32 1.0, %v618
        %v620 = vtanh.pop %v606
        %v621 = vxor.u32 %v607, 2147483648
        %v622 = vmul.f32 %v621, 1.442695
        %v623 = vpow.pop %v622
        %v624 = vadd.f32 %v623, 1.0
        %v625 = vrcp.pop %v624
        %v626 = vmul.f32 1.0, %v625
        %v627 = vmul.f32 %v619, %v511
        %v628 = vmul.f32 %v613, %v620
        %v629 = vadd.f32 %v627, %v628
        %v630 = vtanh.pop %v629
        %v631 = vmul.f32 %v626, %v630
        %s632 = scalar_lea.vmem %s187, 32
        %v633 = vld [vmem:[%s632] sm:$0xff]
        %v634 = vld [vmem:[%s632 + $0x8] sm:$0xff]
        %v635 = vunpack.c.l.bf16 %v633
        %v636 = vunpack.c.h.bf16 %v633
        %v637 = vunpack.c.l.bf16 %v634
        %v638 = vunpack.c.h.bf16 %v634
        %v639 = vpack.c.bf16 %v631, %v631
        %640 = vmatprep.subr.bf16.mxu0 %v369
        %641 = vmatpush1.bf16.msra.mxu0 %v368
        %642 = vmatprep.subr.bf16.mxu0 %v365
        %643 = vmatpush1.bf16.msra.mxu0 %v364
        %644 = vmatprep.subr.bf16.mxu0 %v361
        %645 = vmatpush1.bf16.msra.mxu0 %v360
        %646 = vmatprep.subr.bf16.mxu0 %v357
        %647 = vmatpush1.bf16.msra.mxu0 %v356
        %648 = vmatprep.subr.bf16.mxu0 %v353
        %649 = vmatpush1.bf16.msra.mxu0 %v352
        %650 = vmatprep.subr.bf16.mxu0 %v349
        %651 = vmatpush1.bf16.msra.mxu0 %v348
        %652 = vmatprep.subr.bf16.mxu0 %v345
        %653 = vmatpush1.bf16.msra.mxu0 %v344
        %654 = vmatprep.subr.bf16.mxu0 %v341
        %655 = vmatpush1.bf16.msra.mxu0 %v340
        %656 = vmatprep.subr.bf16.mxu0 0
        %657 = vmatpush2.bf16.msra.mxu0 0
        %658 = vmatprep.subr.bf16.mxu0 0
        %659 = vmatpush2.bf16.msra.mxu0 0
        %660 = vmatprep.subr.bf16.mxu0 0
        %661 = vmatpush2.bf16.msra.mxu0 0
        %662 = vmatprep.subr.bf16.mxu0 0
        %663 = vmatpush2.bf16.msra.mxu0 0
        %664 = vmatprep.subr.bf16.mxu0 0
        %665 = vmatpush2.bf16.msra.mxu0 0
        %666 = vmatprep.subr.bf16.mxu0 0
        %667 = vmatpush2.bf16.msra.mxu0 0
        %668 = vmatprep.subr.bf16.mxu0 0
        %669 = vmatpush2.bf16.msra.mxu0 0
        %670 = vmatprep.subr.bf16.mxu0 0
        %671 = vmatpush2.bf16.msra.mxu0 0
        %672 = vmatprep.mubr.bf16.mxu0 0
        %673 = vmatmul.mubr.bf16.gmra.mxu0 %v639
        %v674 = vpop.f32.mrf.mxu0
        %v675 = vadd.f32 0.0, %v674
        %v676 = vpop.f32.mrf.mxu0
        %v677 = vadd.f32 0.0, %v676
        %v678 = vpop.f32.mrf.mxu0
        %v679 = vpop.f32.mrf.mxu0
        %680 = vdwg.mxu0
        %681 = vmatprep.subr.bf16.mxu0 %v371
        %682 = vmatpush1.bf16.msra.mxu0 %v370
        %683 = vmatprep.subr.bf16.mxu0 %v367
        %684 = vmatpush1.bf16.msra.mxu0 %v366
        %685 = vmatprep.subr.bf16.mxu0 %v363
        %686 = vmatpush1.bf16.msra.mxu0 %v362
        %687 = vmatprep.subr.bf16.mxu0 %v359
        %688 = vmatpush1.bf16.msra.mxu0 %v358
        %689 = vmatprep.subr.bf16.mxu0 %v355
        %690 = vmatpush1.bf16.msra.mxu0 %v354
        %691 = vmatprep.subr.bf16.mxu0 %v351
        %692 = vmatpush1.bf16.msra.mxu0 %v350
        %693 = vmatprep.subr.bf16.mxu0 %v347
        %694 = vmatpush1.bf16.msra.mxu0 %v346
        %695 = vmatprep.subr.bf16.mxu0 %v343
        %696 = vmatpush1.bf16.msra.mxu0 %v342
        %697 = vmatprep.subr.bf16.mxu0 0
        %698 = vmatpush2.bf16.msra.mxu0 0
        %699 = vmatprep.subr.bf16.mxu0 0
        %700 = vmatpush2.bf16.msra.mxu0 0
        %701 = vmatprep.subr.bf16.mxu0 0
        %702 = vmatpush2.bf16.msra.mxu0 0
        %703 = vmatprep.subr.bf16.mxu0 0
        %704 = vmatpush2.bf16.msra.mxu0 0
        %705 = vmatprep.subr.bf16.mxu0 0
        %706 = vmatpush2.bf16.msra.mxu0 0
        %707 = vmatprep.subr.bf16.mxu0 0
        %708 = vmatpush2.bf16.msra.mxu0 0
        %709 = vmatprep.subr.bf16.mxu0 0
        %710 = vmatpush2.bf16.msra.mxu0 0
        %711 = vmatprep.subr.bf16.mxu0 0
        %712 = vmatpush2.bf16.msra.mxu0 0
        %713 = vmatprep.mubr.bf16.mxu0 0
        %714 = vmatmul.mubr.bf16.gmra.mxu0 %v639
        %v715 = vpop.f32.mrf.mxu0
        %v716 = vadd.f32 0.0, %v715
        %v717 = vpop.f32.mrf.mxu0
        %v718 = vadd.f32 0.0, %v717
        %v719 = vpop.f32.mrf.mxu0
        %v720 = vpop.f32.mrf.mxu0
        %721 = vdwg.mxu0
        %v722 = vadd.f32 %v635, %v675
        %v723 = vadd.f32 %v636, %v677
        %v724 = vadd.f32 %v637, %v716
        %v725 = vadd.f32 %v638, %v718
        %v726 = vxor.u32 %v722, 2147483648
        %v727 = vmul.f32 %v726, 1.442695
        %v728 = vpow.pop %v727
        %v729 = vadd.f32 %v728, 1.0
        %v730 = vrcp.pop %v729
        %v731 = vmul.f32 1.0, %v730
        %v732 = vxor.u32 %v723, 2147483648
        %v733 = vmul.f32 %v732, 1.442695
        %v734 = vpow.pop %v733
        %v735 = vadd.f32 %v734, 1.0
        %v736 = vrcp.pop %v735
        %v737 = vmul.f32 1.0, %v736
        %v738 = vtanh.pop %v724
        %v739 = vxor.u32 %v725, 2147483648
        %v740 = vmul.f32 %v739, 1.442695
        %v741 = vpow.pop %v740
        %v742 = vadd.f32 %v741, 1.0
        %v743 = vrcp.pop %v742
        %v744 = vmul.f32 1.0, %v743
        %v745 = vmul.f32 %v737, %v629
        %v746 = vmul.f32 %v731, %v738
        %v747 = vadd.f32 %v745, %v746
        %v748 = vtanh.pop %v747
        %v749 = vmul.f32 %v744, %v748
        %s750 = scalar_lea.vmem %s187, 48
        %v751 = vld [vmem:[%s750] sm:$0xff]
        %v752 = vld [vmem:[%s750 + $0x8] sm:$0xff]
        %v753 = vunpack.c.l.bf16 %v751
        %v754 = vunpack.c.h.bf16 %v751
        %v755 = vunpack.c.l.bf16 %v752
        %v756 = vunpack.c.h.bf16 %v752
        %v757 = vpack.c.bf16 %v749, %v749
        %758 = vmatprep.subr.bf16.mxu0 %v369
        %759 = vmatpush1.bf16.msra.mxu0 %v368
        %760 = vmatprep.subr.bf16.mxu0 %v365
        %761 = vmatpush1.bf16.msra.mxu0 %v364
        %762 = vmatprep.subr.bf16.mxu0 %v361
        %763 = vmatpush1.bf16.msra.mxu0 %v360
        %764 = vmatprep.subr.bf16.mxu0 %v357
        %765 = vmatpush1.bf16.msra.mxu0 %v356
        %766 = vmatprep.subr.bf16.mxu0 %v353
        %767 = vmatpush1.bf16.msra.mxu0 %v352
        %768 = vmatprep.subr.bf16.mxu0 %v349
        %769 = vmatpush1.bf16.msra.mxu0 %v348
        %770 = vmatprep.subr.bf16.mxu0 %v345
        %771 = vmatpush1.bf16.msra.mxu0 %v344
        %772 = vmatprep.subr.bf16.mxu0 %v341
        %773 = vmatpush1.bf16.msra.mxu0 %v340
        %774 = vmatprep.subr.bf16.mxu0 0
        %775 = vmatpush2.bf16.msra.mxu0 0
        %776 = vmatprep.subr.bf16.mxu0 0
        %777 = vmatpush2.bf16.msra.mxu0 0
        %778 = vmatprep.subr.bf16.mxu0 0
        %779 = vmatpush2.bf16.msra.mxu0 0
        %780 = vmatprep.subr.bf16.mxu0 0
        %781 = vmatpush2.bf16.msra.mxu0 0
        %782 = vmatprep.subr.bf16.mxu0 0
        %783 = vmatpush2.bf16.msra.mxu0 0
        %784 = vmatprep.subr.bf16.mxu0 0
        %785 = vmatpush2.bf16.msra.mxu0 0
        %786 = vmatprep.subr.bf16.mxu0 0
        %787 = vmatpush2.bf16.msra.mxu0 0
        %788 = vmatprep.subr.bf16.mxu0 0
        %789 = vmatpush2.bf16.msra.mxu0 0
        %790 = vmatprep.mubr.bf16.mxu0 0
        %791 = vmatmul.mubr.bf16.gmra.mxu0 %v757
        %v792 = vpop.f32.mrf.mxu0
        %v793 = vadd.f32 0.0, %v792
        %v794 = vpop.f32.mrf.mxu0
        %v795 = vadd.f32 0.0, %v794
        %v796 = vpop.f32.mrf.mxu0
        %v797 = vpop.f32.mrf.mxu0
        %798 = vdwg.mxu0
        %799 = vmatprep.subr.bf16.mxu0 %v371
        %800 = vmatpush1.bf16.msra.mxu0 %v370
        %801 = vmatprep.subr.bf16.mxu0 %v367
        %802 = vmatpush1.bf16.msra.mxu0 %v366
        %803 = vmatprep.subr.bf16.mxu0 %v363
        %804 = vmatpush1.bf16.msra.mxu0 %v362
        %805 = vmatprep.subr.bf16.mxu0 %v359
        %806 = vmatpush1.bf16.msra.mxu0 %v358
        %807 = vmatprep.subr.bf16.mxu0 %v355
        %808 = vmatpush1.bf16.msra.mxu0 %v354
        %809 = vmatprep.subr.bf16.mxu0 %v351
        %810 = vmatpush1.bf16.msra.mxu0 %v350
        %811 = vmatprep.subr.bf16.mxu0 %v347
        %812 = vmatpush1.bf16.msra.mxu0 %v346
        %813 = vmatprep.subr.bf16.mxu0 %v343
        %814 = vmatpush1.bf16.msra.mxu0 %v342
        %815 = vmatprep.subr.bf16.mxu0 0
        %816 = vmatpush2.bf16.msra.mxu0 0
        %817 = vmatprep.subr.bf16.mxu0 0
        %818 = vmatpush2.bf16.msra.mxu0 0
        %819 = vmatprep.subr.bf16.mxu0 0
        %820 = vmatpush2.bf16.msra.mxu0 0
        %821 = vmatprep.subr.bf16.mxu0 0
        %822 = vmatpush2.bf16.msra.mxu0 0
        %823 = vmatprep.subr.bf16.mxu0 0
        %824 = vmatpush2.bf16.msra.mxu0 0
        %825 = vmatprep.subr.bf16.mxu0 0
        %826 = vmatpush2.bf16.msra.mxu0 0
        %827 = vmatprep.subr.bf16.mxu0 0
        %828 = vmatpush2.bf16.msra.mxu0 0
        %829 = vmatprep.subr.bf16.mxu0 0
        %830 = vmatpush2.bf16.msra.mxu0 0
        %831 = vmatprep.mubr.bf16.mxu0 0
        %832 = vmatmul.mubr.bf16.gmra.mxu0 %v757
        %v833 = vpop.f32.mrf.mxu0
        %v834 = vadd.f32 0.0, %v833
        %v835 = vpop.f32.mrf.mxu0
        %v836 = vadd.f32 0.0, %v835
        %v837 = vpop.f32.mrf.mxu0
        %v838 = vpop.f32.mrf.mxu0
        %839 = vdwg.mxu0
        %v840 = vadd.f32 %v753, %v793
        %v841 = vadd.f32 %v754, %v795
        %v842 = vadd.f32 %v755, %v834
        %v843 = vadd.f32 %v756, %v836
        %v844 = vxor.u32 %v840, 2147483648
        %v845 = vmul.f32 %v844, 1.442695
        %v846 = vpow.pop %v845
        %v847 = vadd.f32 %v846, 1.0
        %v848 = vrcp.pop %v847
        %v849 = vmul.f32 1.0, %v848
        %v850 = vxor.u32 %v841, 2147483648
        %v851 = vmul.f32 %v850, 1.442695
        %v852 = vpow.pop %v851
        %v853 = vadd.f32 %v852, 1.0
        %v854 = vrcp.pop %v853
        %v855 = vmul.f32 1.0, %v854
        %v856 = vtanh.pop %v842
        %v857 = vxor.u32 %v843, 2147483648
        %v858 = vmul.f32 %v857, 1.442695
        %v859 = vpow.pop %v858
        %v860 = vadd.f32 %v859, 1.0
        %v861 = vrcp.pop %v860
        %v862 = vmul.f32 1.0, %v861
        %v863 = vmul.f32 %v855, %v747
        %v864 = vmul.f32 %v849, %v856
        %v865 = vadd.f32 %v863, %v864
        %v866 = vtanh.pop %v865
        %v867 = vmul.f32 %v862, %v866
        %868 = vst [vmem:[#allocation2] sm:$0xff] %v867
        %869 = vst [vmem:[#allocation3] sm:$0xff] %v865
      $region44: #{lstm_forward.4} parent=35 // pred_fallthru
        _
      %p870 = scmp.gt.s32.totalorder %s229, %s230
      // Predicated region
      $region45: #{lstm_forward.4} parent=35 // pred_check
        %p871 = pneg %p870
      $region46: #{lstm_forward.4} parent=35 // pred_check_branch
        %873 = sbr.rel (%p871) target = $region48
      $region47: #{lstm_forward.4} parent=35 // pred_region
        %v874 = vld [vmem:[%s1] sm:$0xff]
        %v875 = vld [vmem:[#allocation2] sm:$0xff]
        %v876 = vld [vmem:[#allocation3] sm:$0xff]
        %v877 = vld [vmem:[%s187] sm:$0xff]
        %v878 = vld [vmem:[%s187 + $0x8] sm:$0xff]
        %v879 = vunpack.c.l.bf16 %v877
        %v880 = vunpack.c.h.bf16 %v877
        %v881 = vunpack.c.l.bf16 %v878
        %v882 = vunpack.c.h.bf16 %v878
        %v883 = vpack.c.bf16 %v875, %v875
        %v916 = vunpack.c.l.b16 %v197
        %v917 = vunpack.c.h.b16 %v197
        %v918 = vunpack.c.l.b16 %v198
        %v919 = vunpack.c.h.b16 %v198
        %v920 = vunpack.c.l.b16 %v199
        %v921 = vunpack.c.h.b16 %v199
        %v922 = vunpack.c.l.b16 %v200
        %v923 = vunpack.c.h.b16 %v200
        %v924 = vunpack.c.l.b16 %v201
        %v925 = vunpack.c.h.b16 %v201
        %v926 = vunpack.c.l.b16 %v202
        %v927 = vunpack.c.h.b16 %v202
        %v928 = vunpack.c.l.b16 %v203
        %v929 = vunpack.c.h.b16 %v203
        %v930 = vunpack.c.l.b16 %v204
        %v931 = vunpack.c.h.b16 %v204
        %v932 = vunpack.c.l.b16 %v205
        %v933 = vunpack.c.h.b16 %v205
        %v934 = vunpack.c.l.b16 %v206
        %v935 = vunpack.c.h.b16 %v206
        %v936 = vunpack.c.l.b16 %v207
        %v937 = vunpack.c.h.b16 %v207
        %v938 = vunpack.c.l.b16 %v208
        %v939 = vunpack.c.h.b16 %v208
        %v940 = vunpack.c.l.b16 %v209
        %v941 = vunpack.c.h.b16 %v209
        %v942 = vunpack.c.l.b16 %v210
        %v943 = vunpack.c.h.b16 %v210
        %v944 = vunpack.c.l.b16 %v211
        %v945 = vunpack.c.h.b16 %v211
        %v946 = vunpack.c.l.b16 %v212
        %v947 = vunpack.c.h.b16 %v212
        %v948 = vunpack.c.l.b16 %v213
        %v949 = vunpack.c.h.b16 %v213
        %v950 = vunpack.c.l.b16 %v214
        %v951 = vunpack.c.h.b16 %v214
        %v952 = vunpack.c.l.b16 %v215
        %v953 = vunpack.c.h.b16 %v215
        %v954 = vunpack.c.l.b16 %v216
        %v955 = vunpack.c.h.b16 %v216
        %v956 = vunpack.c.l.b16 %v217
        %v957 = vunpack.c.h.b16 %v217
        %v958 = vunpack.c.l.b16 %v218
        %v959 = vunpack.c.h.b16 %v218
        %v960 = vunpack.c.l.b16 %v219
        %v961 = vunpack.c.h.b16 %v219
        %v962 = vunpack.c.l.b16 %v220
        %v963 = vunpack.c.h.b16 %v220
        %v964 = vunpack.c.l.b16 %v221
        %v965 = vunpack.c.h.b16 %v221
        %v966 = vunpack.c.l.b16 %v222
        %v967 = vunpack.c.h.b16 %v222
        %v968 = vunpack.c.l.b16 %v223
        %v969 = vunpack.c.h.b16 %v223
        %v970 = vunpack.c.l.b16 %v224
        %v971 = vunpack.c.h.b16 %v224
        %v972 = vunpack.c.l.b16 %v225
        %v973 = vunpack.c.h.b16 %v225
        %v974 = vunpack.c.l.b16 %v226
        %v975 = vunpack.c.h.b16 %v226
        %v976 = vunpack.c.l.b16 %v227
        %v977 = vunpack.c.h.b16 %v227
        %v978 = vunpack.c.l.b16 %v228
        %v979 = vunpack.c.h.b16 %v228
        %v980 = vpack.c.b16 %v920, %v916
        %v981 = vpack.c.b16 %v921, %v917
        %v982 = vpack.c.b16 %v922, %v918
        %v983 = vpack.c.b16 %v923, %v919
        %v984 = vpack.c.b16 %v928, %v924
        %v985 = vpack.c.b16 %v929, %v925
        %v986 = vpack.c.b16 %v930, %v926
        %v987 = vpack.c.b16 %v931, %v927
        %v988 = vpack.c.b16 %v936, %v932
        %v989 = vpack.c.b16 %v937, %v933
        %v990 = vpack.c.b16 %v938, %v934
        %v991 = vpack.c.b16 %v939, %v935
        %v992 = vpack.c.b16 %v944, %v940
        %v993 = vpack.c.b16 %v945, %v941
        %v994 = vpack.c.b16 %v946, %v942
        %v995 = vpack.c.b16 %v947, %v943
        %v996 = vpack.c.b16 %v952, %v948
        %v997 = vpack.c.b16 %v953, %v949
        %v998 = vpack.c.b16 %v954, %v950
        %v999 = vpack.c.b16 %v955, %v951
        %v1000 = vpack.c.b16 %v960, %v956
        %v1001 = vpack.c.b16 %v961, %v957
        %v1002 = vpack.c.b16 %v962, %v958
        %v1003 = vpack.c.b16 %v963, %v959
        %v1004 = vpack.c.b16 %v968, %v964
        %v1005 = vpack.c.b16 %v969, %v965
        %v1006 = vpack.c.b16 %v970, %v966
        %v1007 = vpack.c.b16 %v971, %v967
        %v1008 = vpack.c.b16 %v976, %v972
        %v1009 = vpack.c.b16 %v977, %v973
        %v1010 = vpack.c.b16 %v978, %v974
        %v1011 = vpack.c.b16 %v979, %v975
        %1044 = vmatprep.subr.bf16.mxu0 %v1009
        %1045 = vmatpush1.bf16.msra.mxu0 %v1008
        %1046 = vmatprep.subr.bf16.mxu0 %v1005
        %1047 = vmatpush1.bf16.msra.mxu0 %v1004
        %1048 = vmatprep.subr.bf16.mxu0 %v1001
        %1049 = vmatpush1.bf16.msra.mxu0 %v1000
        %1050 = vmatprep.subr.bf16.mxu0 %v997
        %1051 = vmatpush1.bf16.msra.mxu0 %v996
        %1052 = vmatprep.subr.bf16.mxu0 %v993
        %1053 = vmatpush1.bf16.msra.mxu0 %v992
        %1054 = vmatprep.subr.bf16.mxu0 %v989
        %1055 = vmatpush1.bf16.msra.mxu0 %v988
        %1056 = vmatprep.subr.bf16.mxu0 %v985
        %1057 = vmatpush1.bf16.msra.mxu0 %v984
        %1058 = vmatprep.subr.bf16.mxu0 %v981
        %1059 = vmatpush1.bf16.msra.mxu0 %v980
        %1060 = vmatprep.subr.bf16.mxu0 0
        %1061 = vmatpush2.bf16.msra.mxu0 0
        %1062 = vmatprep.subr.bf16.mxu0 0
        %1063 = vmatpush2.bf16.msra.mxu0 0
        %1064 = vmatprep.subr.bf16.mxu0 0
        %1065 = vmatpush2.bf16.msra.mxu0 0
        %1066 = vmatprep.subr.bf16.mxu0 0
        %1067 = vmatpush2.bf16.msra.mxu0 0
        %1068 = vmatprep.subr.bf16.mxu0 0
        %1069 = vmatpush2.bf16.msra.mxu0 0
        %1070 = vmatprep.subr.bf16.mxu0 0
        %1071 = vmatpush2.bf16.msra.mxu0 0
        %1072 = vmatprep.subr.bf16.mxu0 0
        %1073 = vmatpush2.bf16.msra.mxu0 0
        %1074 = vmatprep.subr.bf16.mxu0 0
        %1075 = vmatpush2.bf16.msra.mxu0 0
        %1076 = vmatprep.mubr.bf16.mxu0 0
        %1077 = vmatmul.mubr.bf16.gmra.mxu0 %v883
        %v1078 = vpop.f32.mrf.mxu0
        %v1079 = vadd.f32 0.0, %v1078
        %v1080 = vpop.f32.mrf.mxu0
        %v1081 = vadd.f32 0.0, %v1080
        %v1082 = vpop.f32.mrf.mxu0
        %v1083 = vpop.f32.mrf.mxu0
        %1084 = vdwg.mxu0
        %1085 = vmatprep.subr.bf16.mxu0 %v1011
        %1086 = vmatpush1.bf16.msra.mxu0 %v1010
        %1087 = vmatprep.subr.bf16.mxu0 %v1007
        %1088 = vmatpush1.bf16.msra.mxu0 %v1006
        %1089 = vmatprep.subr.bf16.mxu0 %v1003
        %1090 = vmatpush1.bf16.msra.mxu0 %v1002
        %1091 = vmatprep.subr.bf16.mxu0 %v999
        %1092 = vmatpush1.bf16.msra.mxu0 %v998
        %1093 = vmatprep.subr.bf16.mxu0 %v995
        %1094 = vmatpush1.bf16.msra.mxu0 %v994
        %1095 = vmatprep.subr.bf16.mxu0 %v991
        %1096 = vmatpush1.bf16.msra.mxu0 %v990
        %1097 = vmatprep.subr.bf16.mxu0 %v987
        %1098 = vmatpush1.bf16.msra.mxu0 %v986
        %1099 = vmatprep.subr.bf16.mxu0 %v983
        %1100 = vmatpush1.bf16.msra.mxu0 %v982
        %1101 = vmatprep.subr.bf16.mxu0 0
        %1102 = vmatpush2.bf16.msra.mxu0 0
        %1103 = vmatprep.subr.bf16.mxu0 0
        %1104 = vmatpush2.bf16.msra.mxu0 0
        %1105 = vmatprep.subr.bf16.mxu0 0
        %1106 = vmatpush2.bf16.msra.mxu0 0
        %1107 = vmatprep.subr.bf16.mxu0 0
        %1108 = vmatpush2.bf16.msra.mxu0 0
        %1109 = vmatprep.subr.bf16.mxu0 0
        %1110 = vmatpush2.bf16.msra.mxu0 0
        %1111 = vmatprep.subr.bf16.mxu0 0
        %1112 = vmatpush2.bf16.msra.mxu0 0
        %1113 = vmatprep.subr.bf16.mxu0 0
        %1114 = vmatpush2.bf16.msra.mxu0 0
        %1115 = vmatprep.subr.bf16.mxu0 0
        %1116 = vmatpush2.bf16.msra.mxu0 0
        %1117 = vmatprep.mubr.bf16.mxu0 0
        %1118 = vmatmul.mubr.bf16.gmra.mxu0 %v883
        %v1119 = vpop.f32.mrf.mxu0
        %v1120 = vadd.f32 0.0, %v1119
        %v1121 = vpop.f32.mrf.mxu0
        %v1122 = vadd.f32 0.0, %v1121
        %v1123 = vpop.f32.mrf.mxu0
        %v1124 = vpop.f32.mrf.mxu0
        %1125 = vdwg.mxu0
        %v1126 = vadd.f32 %v879, %v1079
        %v1127 = vadd.f32 %v880, %v1081
        %v1128 = vadd.f32 %v881, %v1120
        %v1129 = vadd.f32 %v882, %v1122
        %v1130 = vxor.u32 %v1126, 2147483648
        %v1131 = vmul.f32 %v1130, 1.442695
        %v1132 = vpow.pop %v1131
        %v1133 = vadd.f32 %v1132, 1.0
        %v1134 = vrcp.pop %v1133
        %v1135 = vmul.f32 1.0, %v1134
        %v1136 = vxor.u32 %v1127, 2147483648
        %v1137 = vmul.f32 %v1136, 1.442695
        %v1138 = vpow.pop %v1137
        %v1139 = vadd.f32 %v1138, 1.0
        %v1140 = vrcp.pop %v1139
        %v1141 = vmul.f32 1.0, %v1140
        %v1142 = vtanh.pop %v1128
        %v1143 = vxor.u32 %v1129, 2147483648
        %v1144 = vmul.f32 %v1143, 1.442695
        %v1145 = vpow.pop %v1144
        %v1146 = vadd.f32 %v1145, 1.0
        %v1147 = vrcp.pop %v1146
        %v1148 = vmul.f32 1.0, %v1147
        %v1149 = vmul.f32 %v1141, %v876
        %v1150 = vmul.f32 %v1135, %v1142
        %v1151 = vadd.f32 %v1149, %v1150
        %v1152 = vtanh.pop %v1151
        %v1153 = vmul.f32 %v1148, %v1152
        %v1154 = vstv %s190
        %vm1155 = vcmp.lt.s32.totalorder %v1154, %v874
        %v1156 = vsel %vm1155, 1, 0
        %1157 = vset.pattern.permute.xlu0 0
        %1158 = vperm.xlu0 %1157, %v1156
        %v1159 = vpop.permute.xlu0 %1158
        %vm1160 = vcmp.eq.s32.totalorder %v1159, 1
        %v1161 = vsel %vm1160, %v1153, %v875
        %v1162 = vsel %vm1160, %v1151, %v876
        %s1163 = scalar_lea.vmem %s187, 16
        %v1164 = vld [vmem:[%s1163] sm:$0xff]
        %v1165 = vld [vmem:[%s1163 + $0x8] sm:$0xff]
        %v1166 = vunpack.c.l.bf16 %v1164
        %v1167 = vunpack.c.h.bf16 %v1164
        %v1168 = vunpack.c.l.bf16 %v1165
        %v1169 = vunpack.c.h.bf16 %v1165
        %v1170 = vpack.c.bf16 %v1161, %v1161
        %1171 = vmatprep.subr.bf16.mxu0 %v1009
        %1172 = vmatpush1.bf16.msra.mxu0 %v1008
        %1173 = vmatprep.subr.bf16.mxu0 %v1005
        %1174 = vmatpush1.bf16.msra.mxu0 %v1004
        %1175 = vmatprep.subr.bf16.mxu0 %v1001
        %1176 = vmatpush1.bf16.msra.mxu0 %v1000
        %1177 = vmatprep.subr.bf16.mxu0 %v997
        %1178 = vmatpush1.bf16.msra.mxu0 %v996
        %1179 = vmatprep.subr.bf16.mxu0 %v993
        %1180 = vmatpush1.bf16.msra.mxu0 %v992
        %1181 = vmatprep.subr.bf16.mxu0 %v989
        %1182 = vmatpush1.bf16.msra.mxu0 %v988
        %1183 = vmatprep.subr.bf16.mxu0 %v985
        %1184 = vmatpush1.bf16.msra.mxu0 %v984
        %1185 = vmatprep.subr.bf16.mxu0 %v981
        %1186 = vmatpush1.bf16.msra.mxu0 %v980
        %1187 = vmatprep.subr.bf16.mxu0 0
        %1188 = vmatpush2.bf16.msra.mxu0 0
        %1189 = vmatprep.subr.bf16.mxu0 0
        %1190 = vmatpush2.bf16.msra.mxu0 0
        %1191 = vmatprep.subr.bf16.mxu0 0
        %1192 = vmatpush2.bf16.msra.mxu0 0
        %1193 = vmatprep.subr.bf16.mxu0 0
        %1194 = vmatpush2.bf16.msra.mxu0 0
        %1195 = vmatprep.subr.bf16.mxu0 0
        %1196 = vmatpush2.bf16.msra.mxu0 0
        %1197 = vmatprep.subr.bf16.mxu0 0
        %1198 = vmatpush2.bf16.msra.mxu0 0
        %1199 = vmatprep.subr.bf16.mxu0 0
        %1200 = vmatpush2.bf16.msra.mxu0 0
        %1201 = vmatprep.subr.bf16.mxu0 0
        %1202 = vmatpush2.bf16.msra.mxu0 0
        %1203 = vmatprep.mubr.bf16.mxu0 0
        %1204 = vmatmul.mubr.bf16.gmra.mxu0 %v1170
        %v1205 = vpop.f32.mrf.mxu0
        %v1206 = vadd.f32 0.0, %v1205
        %v1207 = vpop.f32.mrf.mxu0
        %v1208 = vadd.f32 0.0, %v1207
        %v1209 = vpop.f32.mrf.mxu0
        %v1210 = vpop.f32.mrf.mxu0
        %1211 = vdwg.mxu0
        %1212 = vmatprep.subr.bf16.mxu0 %v1011
        %1213 = vmatpush1.bf16.msra.mxu0 %v1010
        %1214 = vmatprep.subr.bf16.mxu0 %v1007
        %1215 = vmatpush1.bf16.msra.mxu0 %v1006
        %1216 = vmatprep.subr.bf16.mxu0 %v1003
        %1217 = vmatpush1.bf16.msra.mxu0 %v1002
        %1218 = vmatprep.subr.bf16.mxu0 %v999
        %1219 = vmatpush1.bf16.msra.mxu0 %v998
        %1220 = vmatprep.subr.bf16.mxu0 %v995
        %1221 = vmatpush1.bf16.msra.mxu0 %v994
        %1222 = vmatprep.subr.bf16.mxu0 %v991
        %1223 = vmatpush1.bf16.msra.mxu0 %v990
        %1224 = vmatprep.subr.bf16.mxu0 %v987
        %1225 = vmatpush1.bf16.msra.mxu0 %v986
        %1226 = vmatprep.subr.bf16.mxu0 %v983
        %1227 = vmatpush1.bf16.msra.mxu0 %v982
        %1228 = vmatprep.subr.bf16.mxu0 0
        %1229 = vmatpush2.bf16.msra.mxu0 0
        %1230 = vmatprep.subr.bf16.mxu0 0
        %1231 = vmatpush2.bf16.msra.mxu0 0
        %1232 = vmatprep.subr.bf16.mxu0 0
        %1233 = vmatpush2.bf16.msra.mxu0 0
        %1234 = vmatprep.subr.bf16.mxu0 0
        %1235 = vmatpush2.bf16.msra.mxu0 0
        %1236 = vmatprep.subr.bf16.mxu0 0
        %1237 = vmatpush2.bf16.msra.mxu0 0
        %1238 = vmatprep.subr.bf16.mxu0 0
        %1239 = vmatpush2.bf16.msra.mxu0 0
        %1240 = vmatprep.subr.bf16.mxu0 0
        %1241 = vmatpush2.bf16.msra.mxu0 0
        %1242 = vmatprep.subr.bf16.mxu0 0
        %1243 = vmatpush2.bf16.msra.mxu0 0
        %1244 = vmatprep.mubr.bf16.mxu0 0
        %1245 = vmatmul.mubr.bf16.gmra.mxu0 %v1170
        %v1246 = vpop.f32.mrf.mxu0
        %v1247 = vadd.f32 0.0, %v1246
        %v1248 = vpop.f32.mrf.mxu0
        %v1249 = vadd.f32 0.0, %v1248
        %v1250 = vpop.f32.mrf.mxu0
        %v1251 = vpop.f32.mrf.mxu0
        %1252 = vdwg.mxu0
        %v1253 = vadd.f32 %v1166, %v1206
        %v1254 = vadd.f32 %v1167, %v1208
        %v1255 = vadd.f32 %v1168, %v1247
        %v1256 = vadd.f32 %v1169, %v1249
        %v1257 = vxor.u32 %v1253, 2147483648
        %v1258 = vmul.f32 %v1257, 1.442695
        %v1259 = vpow.pop %v1258
        %v1260 = vadd.f32 %v1259, 1.0
        %v1261 = vrcp.pop %v1260
        %v1262 = vmul.f32 1.0, %v1261
        %v1263 = vxor.u32 %v1254, 2147483648
        %v1264 = vmul.f32 %v1263, 1.442695
        %v1265 = vpow.pop %v1264
        %v1266 = vadd.f32 %v1265, 1.0
        %v1267 = vrcp.pop %v1266
        %v1268 = vmul.f32 1.0, %v1267
        %v1269 = vtanh.pop %v1255
        %v1270 = vxor.u32 %v1256, 2147483648
        %v1271 = vmul.f32 %v1270, 1.442695
        %v1272 = vpow.pop %v1271
        %v1273 = vadd.f32 %v1272, 1.0
        %v1274 = vrcp.pop %v1273
        %v1275 = vmul.f32 1.0, %v1274
        %v1276 = vmul.f32 %v1268, %v1162
        %v1277 = vmul.f32 %v1262, %v1269
        %v1278 = vadd.f32 %v1276, %v1277
        %v1279 = vtanh.pop %v1278
        %v1280 = vmul.f32 %v1275, %v1279
        %s1281 = sadd.s32 %s190, 1
        %v1282 = vstv %s1281
        %vm1283 = vcmp.lt.s32.totalorder %v1282, %v874
        %v1284 = vsel %vm1283, 1, 0
        %1285 = vset.pattern.permute.xlu0 0
        %1286 = vperm.xlu0 %1285, %v1284
        %v1287 = vpop.permute.xlu0 %1286
        %vm1288 = vcmp.eq.s32.totalorder %v1287, 1
        %v1289 = vsel %vm1288, %v1280, %v1161
        %v1290 = vsel %vm1288, %v1278, %v1162
        %s1291 = scalar_lea.vmem %s187, 32
        %v1292 = vld [vmem:[%s1291] sm:$0xff]
        %v1293 = vld [vmem:[%s1291 + $0x8] sm:$0xff]
        %v1294 = vunpack.c.l.bf16 %v1292
        %v1295 = vunpack.c.h.bf16 %v1292
        %v1296 = vunpack.c.l.bf16 %v1293
        %v1297 = vunpack.c.h.bf16 %v1293
        %v1298 = vpack.c.bf16 %v1289, %v1289
        %1299 = vmatprep.subr.bf16.mxu0 %v1009
        %1300 = vmatpush1.bf16.msra.mxu0 %v1008
        %1301 = vmatprep.subr.bf16.mxu0 %v1005
        %1302 = vmatpush1.bf16.msra.mxu0 %v1004
        %1303 = vmatprep.subr.bf16.mxu0 %v1001
        %1304 = vmatpush1.bf16.msra.mxu0 %v1000
        %1305 = vmatprep.subr.bf16.mxu0 %v997
        %1306 = vmatpush1.bf16.msra.mxu0 %v996
        %1307 = vmatprep.subr.bf16.mxu0 %v993
        %1308 = vmatpush1.bf16.msra.mxu0 %v992
        %1309 = vmatprep.subr.bf16.mxu0 %v989
        %1310 = vmatpush1.bf16.msra.mxu0 %v988
        %1311 = vmatprep.subr.bf16.mxu0 %v985
        %1312 = vmatpush1.bf16.msra.mxu0 %v984
        %1313 = vmatprep.subr.bf16.mxu0 %v981
        %1314 = vmatpush1.bf16.msra.mxu0 %v980
        %1315 = vmatprep.subr.bf16.mxu0 0
        %1316 = vmatpush2.bf16.msra.mxu0 0
        %1317 = vmatprep.subr.bf16.mxu0 0
        %1318 = vmatpush2.bf16.msra.mxu0 0
        %1319 = vmatprep.subr.bf16.mxu0 0
        %1320 = vmatpush2.bf16.msra.mxu0 0
        %1321 = vmatprep.subr.bf16.mxu0 0
        %1322 = vmatpush2.bf16.msra.mxu0 0
        %1323 = vmatprep.subr.bf16.mxu0 0
        %1324 = vmatpush2.bf16.msra.mxu0 0
        %1325 = vmatprep.subr.bf16.mxu0 0
        %1326 = vmatpush2.bf16.msra.mxu0 0
        %1327 = vmatprep.subr.bf16.mxu0 0
        %1328 = vmatpush2.bf16.msra.mxu0 0
        %1329 = vmatprep.subr.bf16.mxu0 0
        %1330 = vmatpush2.bf16.msra.mxu0 0
        %1331 = vmatprep.mubr.bf16.mxu0 0
        %1332 = vmatmul.mubr.bf16.gmra.mxu0 %v1298
        %v1333 = vpop.f32.mrf.mxu0
        %v1334 = vadd.f32 0.0, %v1333
        %v1335 = vpop.f32.mrf.mxu0
        %v1336 = vadd.f32 0.0, %v1335
        %v1337 = vpop.f32.mrf.mxu0
        %v1338 = vpop.f32.mrf.mxu0
        %1339 = vdwg.mxu0
        %1340 = vmatprep.subr.bf16.mxu0 %v1011
        %1341 = vmatpush1.bf16.msra.mxu0 %v1010
        %1342 = vmatprep.subr.bf16.mxu0 %v1007
        %1343 = vmatpush1.bf16.msra.mxu0 %v1006
        %1344 = vmatprep.subr.bf16.mxu0 %v1003
        %1345 = vmatpush1.bf16.msra.mxu0 %v1002
        %1346 = vmatprep.subr.bf16.mxu0 %v999
        %1347 = vmatpush1.bf16.msra.mxu0 %v998
        %1348 = vmatprep.subr.bf16.mxu0 %v995
        %1349 = vmatpush1.bf16.msra.mxu0 %v994
        %1350 = vmatprep.subr.bf16.mxu0 %v991
        %1351 = vmatpush1.bf16.msra.mxu0 %v990
        %1352 = vmatprep.subr.bf16.mxu0 %v987
        %1353 = vmatpush1.bf16.msra.mxu0 %v986
        %1354 = vmatprep.subr.bf16.mxu0 %v983
        %1355 = vmatpush1.bf16.msra.mxu0 %v982
        %1356 = vmatprep.subr.bf16.mxu0 0
        %1357 = vmatpush2.bf16.msra.mxu0 0
        %1358 = vmatprep.subr.bf16.mxu0 0
        %1359 = vmatpush2.bf16.msra.mxu0 0
        %1360 = vmatprep.subr.bf16.mxu0 0
        %1361 = vmatpush2.bf16.msra.mxu0 0
        %1362 = vmatprep.subr.bf16.mxu0 0
        %1363 = vmatpush2.bf16.msra.mxu0 0
        %1364 = vmatprep.subr.bf16.mxu0 0
        %1365 = vmatpush2.bf16.msra.mxu0 0
        %1366 = vmatprep.subr.bf16.mxu0 0
        %1367 = vmatpush2.bf16.msra.mxu0 0
        %1368 = vmatprep.subr.bf16.mxu0 0
        %1369 = vmatpush2.bf16.msra.mxu0 0
        %1370 = vmatprep.subr.bf16.mxu0 0
        %1371 = vmatpush2.bf16.msra.mxu0 0
        %1372 = vmatprep.mubr.bf16.mxu0 0
        %1373 = vmatmul.mubr.bf16.gmra.mxu0 %v1298
        %v1374 = vpop.f32.mrf.mxu0
        %v1375 = vadd.f32 0.0, %v1374
        %v1376 = vpop.f32.mrf.mxu0
        %v1377 = vadd.f32 0.0, %v1376
        %v1378 = vpop.f32.mrf.mxu0
        %v1379 = vpop.f32.mrf.mxu0
        %1380 = vdwg.mxu0
        %v1381 = vadd.f32 %v1294, %v1334
        %v1382 = vadd.f32 %v1295, %v1336
        %v1383 = vadd.f32 %v1296, %v1375
        %v1384 = vadd.f32 %v1297, %v1377
        %v1385 = vxor.u32 %v1381, 2147483648
        %v1386 = vmul.f32 %v1385, 1.442695
        %v1387 = vpow.pop %v1386
        %v1388 = vadd.f32 %v1387, 1.0
        %v1389 = vrcp.pop %v1388
        %v1390 = vmul.f32 1.0, %v1389
        %v1391 = vxor.u32 %v1382, 2147483648
        %v1392 = vmul.f32 %v1391, 1.442695
        %v1393 = vpow.pop %v1392
        %v1394 = vadd.f32 %v1393, 1.0
        %v1395 = vrcp.pop %v1394
        %v1396 = vmul.f32 1.0, %v1395
        %v1397 = vtanh.pop %v1383
        %v1398 = vxor.u32 %v1384, 2147483648
        %v1399 = vmul.f32 %v1398, 1.442695
        %v1400 = vpow.pop %v1399
        %v1401 = vadd.f32 %v1400, 1.0
        %v1402 = vrcp.pop %v1401
        %v1403 = vmul.f32 1.0, %v1402
        %v1404 = vmul.f32 %v1396, %v1290
        %v1405 = vmul.f32 %v1390, %v1397
        %v1406 = vadd.f32 %v1404, %v1405
        %v1407 = vtanh.pop %v1406
        %v1408 = vmul.f32 %v1403, %v1407
        %s1409 = sadd.s32 %s190, 2
        %v1410 = vstv %s1409
        %vm1411 = vcmp.lt.s32.totalorder %v1410, %v874
        %v1412 = vsel %vm1411, 1, 0
        %1413 = vset.pattern.permute.xlu0 0
        %1414 = vperm.xlu0 %1413, %v1412
        %v1415 = vpop.permute.xlu0 %1414
        %vm1416 = vcmp.eq.s32.totalorder %v1415, 1
        %v1417 = vsel %vm1416, %v1408, %v1289
        %v1418 = vsel %vm1416, %v1406, %v1290
        %s1419 = scalar_lea.vmem %s187, 48
        %v1420 = vld [vmem:[%s1419] sm:$0xff]
        %v1421 = vld [vmem:[%s1419 + $0x8] sm:$0xff]
        %v1422 = vunpack.c.l.bf16 %v1420
        %v1423 = vunpack.c.h.bf16 %v1420
        %v1424 = vunpack.c.l.bf16 %v1421
        %v1425 = vunpack.c.h.bf16 %v1421
        %v1426 = vpack.c.bf16 %v1417, %v1417
        %1427 = vmatprep.subr.bf16.mxu0 %v1009
        %1428 = vmatpush1.bf16.msra.mxu0 %v1008
        %1429 = vmatprep.subr.bf16.mxu0 %v1005
        %1430 = vmatpush1.bf16.msra.mxu0 %v1004
        %1431 = vmatprep.subr.bf16.mxu0 %v1001
        %1432 = vmatpush1.bf16.msra.mxu0 %v1000
        %1433 = vmatprep.subr.bf16.mxu0 %v997
        %1434 = vmatpush1.bf16.msra.mxu0 %v996
        %1435 = vmatprep.subr.bf16.mxu0 %v993
        %1436 = vmatpush1.bf16.msra.mxu0 %v992
        %1437 = vmatprep.subr.bf16.mxu0 %v989
        %1438 = vmatpush1.bf16.msra.mxu0 %v988
        %1439 = vmatprep.subr.bf16.mxu0 %v985
        %1440 = vmatpush1.bf16.msra.mxu0 %v984
        %1441 = vmatprep.subr.bf16.mxu0 %v981
        %1442 = vmatpush1.bf16.msra.mxu0 %v980
        %1443 = vmatprep.subr.bf16.mxu0 0
        %1444 = vmatpush2.bf16.msra.mxu0 0
        %1445 = vmatprep.subr.bf16.mxu0 0
        %1446 = vmatpush2.bf16.msra.mxu0 0
        %1447 = vmatprep.subr.bf16.mxu0 0
        %1448 = vmatpush2.bf16.msra.mxu0 0
        %1449 = vmatprep.subr.bf16.mxu0 0
        %1450 = vmatpush2.bf16.msra.mxu0 0
        %1451 = vmatprep.subr.bf16.mxu0 0
        %1452 = vmatpush2.bf16.msra.mxu0 0
        %1453 = vmatprep.subr.bf16.mxu0 0
        %1454 = vmatpush2.bf16.msra.mxu0 0
        %1455 = vmatprep.subr.bf16.mxu0 0
        %1456 = vmatpush2.bf16.msra.mxu0 0
        %1457 = vmatprep.subr.bf16.mxu0 0
        %1458 = vmatpush2.bf16.msra.mxu0 0
        %1459 = vmatprep.mubr.bf16.mxu0 0
        %1460 = vmatmul.mubr.bf16.gmra.mxu0 %v1426
        %v1461 = vpop.f32.mrf.mxu0
        %v1462 = vadd.f32 0.0, %v1461
        %v1463 = vpop.f32.mrf.mxu0
        %v1464 = vadd.f32 0.0, %v1463
        %v1465 = vpop.f32.mrf.mxu0
        %v1466 = vpop.f32.mrf.mxu0
        %1467 = vdwg.mxu0
        %1468 = vmatprep.subr.bf16.mxu0 %v1011
        %1469 = vmatpush1.bf16.msra.mxu0 %v1010
        %1470 = vmatprep.subr.bf16.mxu0 %v1007
        %1471 = vmatpush1.bf16.msra.mxu0 %v1006
        %1472 = vmatprep.subr.bf16.mxu0 %v1003
        %1473 = vmatpush1.bf16.msra.mxu0 %v1002
        %1474 = vmatprep.subr.bf16.mxu0 %v999
        %1475 = vmatpush1.bf16.msra.mxu0 %v998
        %1476 = vmatprep.subr.bf16.mxu0 %v995
        %1477 = vmatpush1.bf16.msra.mxu0 %v994
        %1478 = vmatprep.subr.bf16.mxu0 %v991
        %1479 = vmatpush1.bf16.msra.mxu0 %v990
        %1480 = vmatprep.subr.bf16.mxu0 %v987
        %1481 = vmatpush1.bf16.msra.mxu0 %v986
        %1482 = vmatprep.subr.bf16.mxu0 %v983
        %1483 = vmatpush1.bf16.msra.mxu0 %v982
        %1484 = vmatprep.subr.bf16.mxu0 0
        %1485 = vmatpush2.bf16.msra.mxu0 0
        %1486 = vmatprep.subr.bf16.mxu0 0
        %1487 = vmatpush2.bf16.msra.mxu0 0
        %1488 = vmatprep.subr.bf16.mxu0 0
        %1489 = vmatpush2.bf16.msra.mxu0 0
        %1490 = vmatprep.subr.bf16.mxu0 0
        %1491 = vmatpush2.bf16.msra.mxu0 0
        %1492 = vmatprep.subr.bf16.mxu0 0
        %1493 = vmatpush2.bf16.msra.mxu0 0
        %1494 = vmatprep.subr.bf16.mxu0 0
        %1495 = vmatpush2.bf16.msra.mxu0 0
        %1496 = vmatprep.subr.bf16.mxu0 0
        %1497 = vmatpush2.bf16.msra.mxu0 0
        %1498 = vmatprep.subr.bf16.mxu0 0
        %1499 = vmatpush2.bf16.msra.mxu0 0
        %1500 = vmatprep.mubr.bf16.mxu0 0
        %1501 = vmatmul.mubr.bf16.gmra.mxu0 %v1426
        %v1502 = vpop.f32.mrf.mxu0
        %v1503 = vadd.f32 0.0, %v1502
        %v1504 = vpop.f32.mrf.mxu0
        %v1505 = vadd.f32 0.0, %v1504
        %v1506 = vpop.f32.mrf.mxu0
        %v1507 = vpop.f32.mrf.mxu0
        %1508 = vdwg.mxu0
        %v1509 = vadd.f32 %v1422, %v1462
        %v1510 = vadd.f32 %v1423, %v1464
        %v1511 = vadd.f32 %v1424, %v1503
        %v1512 = vadd.f32 %v1425, %v1505
        %v1513 = vxor.u32 %v1509, 2147483648
        %v1514 = vmul.f32 %v1513, 1.442695
        %v1515 = vpow.pop %v1514
        %v1516 = vadd.f32 %v1515, 1.0
        %v1517 = vrcp.pop %v1516
        %v1518 = vmul.f32 1.0, %v1517
        %v1519 = vxor.u32 %v1510, 2147483648
        %v1520 = vmul.f32 %v1519, 1.442695
        %v1521 = vpow.pop %v1520
        %v1522 = vadd.f32 %v1521, 1.0
        %v1523 = vrcp.pop %v1522
        %v1524 = vmul.f32 1.0, %v1523
        %v1525 = vtanh.pop %v1511
        %v1526 = vxor.u32 %v1512, 2147483648
        %v1527 = vmul.f32 %v1526, 1.442695
        %v1528 = vpow.pop %v1527
        %v1529 = vadd.f32 %v1528, 1.0
        %v1530 = vrcp.pop %v1529
        %v1531 = vmul.f32 1.0, %v1530
        %v1532 = vmul.f32 %v1524, %v1418
        %v1533 = vmul.f32 %v1518, %v1525
        %v1534 = vadd.f32 %v1532, %v1533
        %v1535 = vtanh.pop %v1534
        %v1536 = vmul.f32 %v1531, %v1535
        %s1537 = sadd.s32 %s190, 3
        %v1538 = vstv %s1537
        %vm1539 = vcmp.lt.s32.totalorder %v1538, %v874
        %v1540 = vsel %vm1539, 1, 0
        %1541 = vset.pattern.permute.xlu0 0
        %1542 = vperm.xlu0 %1541, %v1540
        %v1543 = vpop.permute.xlu0 %1542
        %vm1544 = vcmp.eq.s32.totalorder %v1543, 1
        %v1545 = vsel %vm1544, %v1536, %v1417
        %v1546 = vsel %vm1544, %v1534, %v1418
        %1547 = vst [vmem:[#allocation2] sm:$0xff] %v1545
        %1548 = vst [vmem:[#allocation3] sm:$0xff] %v1546
      $region48: #{lstm_forward.4} parent=35 // pred_fallthru
        _
      %p1549 = scmp.eq.s32.totalorder %s16, 1
      // Predicated region
      $region49: #{lstm_forward.4} parent=35 // pred_check
        %p1550 = pneg %p1549
      $region50: #{lstm_forward.4} parent=35 // pred_check_branch
        %1552 = sbr.rel (%p1550) target = $region52
      $region51: #{lstm_forward.4} parent=35 // pred_region
        %v1553 = vld [vmem:[#allocation2] sm:$0xff]
        %1554 = vst [vmem:[%s4] sm:$0xff] %v1553
      $region52: #{lstm_forward.4} parent=35 // pred_fallthru
        _
      // Predicated region
      $region53: #{lstm_forward.4} parent=35 // pred_check
        %p1555 = pneg %p118
      $region54: #{lstm_forward.4} parent=35 // pred_check_branch
        %1557 = sbr.rel (%p1555) target = $region56
      $region55: #{lstm_forward.4} parent=35 // pred_region
        _
      $region56: #{lstm_forward.4} parent=35 // pred_fallthru
        _
      // Predicated region
      $region57: #{lstm_forward.4} parent=35 // pred_check
        %p1558 = pneg %p118
      $region58: #{lstm_forward.4} parent=35 // pred_check_branch
        %1560 = sbr.rel (%p1558) target = $region60
      $region59: #{lstm_forward.4} parent=35 // pred_region
        _
      $region60: #{lstm_forward.4} parent=35 // pred_fallthru
        _
    $region36: #{lstm_forward.4} parent=5 // pred_fallthru
      _
    %p1561 = scmp.le.s32.totalorder 2, %s11
    // Predicated region
    $region61: #{lstm_forward.4} parent=5 // pred_check
      %p1562 = pneg %p1561
    $region62: #{lstm_forward.4} parent=5 // pred_check_branch
      %1564 = sbr.rel (%p1562) target = $region64
    $region63: #{lstm_forward.4} parent=5 // pred_region
      %s1565 = ssub.s32 %s11, 2
    $region64: #{lstm_forward.4} parent=5 // pred_fallthru
      _
  $region6: #{lstm_forward.4} parent=0 // loop_footer
    %s15 = sadd.s32 1, %s11
  $region7: #{lstm_forward.4} parent=0 // loop_footer_branch
    %10 = sbr.rel target = $region3
  $region8: #{lstm_forward.4} parent=0 // loop_exit
    _

// kernel: lstm_forward.5
$region0: #{lstm_forward.5}
  #allocation0 [shape = 'u32[]', space=smem, size = 0x4, offset = 0x4, fixed_abs, tag = 'smem constant byte address 0x4 - core index']
  #allocation1 [shape = 'u32[144,128]{1,0:T(1,128)}', space=vmem, size = 0x12000, scoped, tag = 'internal scratch']
  %s0 = inlined_call_operand.vmem [shape: f32[8,32], index: 0, kind: input, shape index: {}]
  %s1 = inlined_call_operand.vmem [shape: bf16[32,1024], index: 1, kind: input, shape index: {}]
  %s2 = inlined_call_operand.vmem [shape: f32[1,1024], index: 2, kind: input, shape index: {}]
  %s3 = inlined_call_operand.vmem [shape: f32[1,1024], index: 3, kind: input, shape index: {}]
  %s4 = inlined_call_operand.vmem [shape: f32[1,1024], index: 4, kind: input, shape index: {}]
  %s5 = inlined_call_operand.vmem [shape: bf16[1024,256], index: 5, kind: input, shape index: {}]
  %s6 = inlined_call_operand.vmem [shape: f32[1,256], index: 6, kind: input, shape index: {}]
  %s7 = inlined_call_operand.vmem [shape: f32[1,256], index: 7, kind: input, shape index: {}]
  %s8 = inlined_call_operand.vmem [shape: f32[1,256], index: 8, kind: input, shape index: {}]
  %s9 = inlined_call_operand.vmem [shape: bf16[256,128], index: 9, kind: input, shape index: {}]
  %s10 = inlined_call_operand.vmem [shape: f32[1,128], index: 10, kind: input, shape index: {}]
  %s11 = inlined_call_operand.hbm [shape: f32[8,128], index: 11, kind: output, shape index: {0}]
  %s12 = inlined_call_operand.hbm [shape: f32[8,256], index: 12, kind: output, shape index: {1}]
  %13 = xla_tuple %s11, %s12
  %s14 = sld [smem:[#allocation0]]
  $region62: #{lstm_forward.5} parent=0
    _
  %s16 = ssub.s32 1, %s14
  %s17 = scalar_select 0, %s16, %s14
  $region1: #{lstm_forward.5} parent=0
    #allocation2 [shape = 'u8[4096]{0}', space=vmem, size = 0x1000, scoped, tag = 'output window, operand 0, single buffered']
    #allocation3 [shape = 's32[1]{0}', space=sflag, size = 0x4, scoped, tag = 'scoped memory for lstm_forward.5']
    #allocation4 [shape = 'u8[8192]{0}', space=vmem, size = 0x2000, scoped, tag = 'output window, operand 1, single buffered']
    #allocation5 [shape = 's32[1]{0}', space=sflag, size = 0x4, scoped, tag = 'scoped memory for lstm_forward.5']
    %18 = vsyncpa [#allocation3], 0
    %19 = vsyncpa [#allocation5], 0
    // Predicated region
    $region2: #{lstm_forward.5} parent=1 // pred_check
      _
    $region3: #{lstm_forward.5} parent=1 // pred_check_branch
      %21 = sbr.rel (0) target = $region5
    $region4: #{lstm_forward.5} parent=1 // pred_region
      _
    $region5: #{lstm_forward.5} parent=1 // pred_fallthru
      _
    // Predicated region
    $region6: #{lstm_forward.5} parent=1 // pred_check
      _
    $region7: #{lstm_forward.5} parent=1 // pred_check_branch
      %23 = sbr.rel (0) target = $region9
    $region8: #{lstm_forward.5} parent=1 // pred_region
      _
    $region9: #{lstm_forward.5} parent=1 // pred_fallthru
      _
    // Predicated region
    $region10: #{lstm_forward.5} parent=1 // pred_check
      _
    $region11: #{lstm_forward.5} parent=1 // pred_check_branch
      %25 = sbr.rel (0) target = $region13
    $region12: #{lstm_forward.5} parent=1 // pred_region
      _
    $region13: #{lstm_forward.5} parent=1 // pred_fallthru
      _
    // Predicated region
    $region14: #{lstm_forward.5} parent=1 // pred_check
      _
    $region15: #{lstm_forward.5} parent=1 // pred_check_branch
      %27 = sbr.rel (0) target = $region17
    $region16: #{lstm_forward.5} parent=1 // pred_region
      _
    $region17: #{lstm_forward.5} parent=1 // pred_fallthru
      _
    // Predicated region
    $region18: #{lstm_forward.5} parent=1 // pred_check
      _
    $region19: #{lstm_forward.5} parent=1 // pred_check_branch
      %29 = sbr.rel (0) target = $region21
    $region20: #{lstm_forward.5} parent=1 // pred_region
      _
    $region21: #{lstm_forward.5} parent=1 // pred_fallthru
      _
    // Predicated region
    $region22: #{lstm_forward.5} parent=1 // pred_check
      _
    $region23: #{lstm_forward.5} parent=1 // pred_check_branch
      %31 = sbr.rel (0) target = $region25
    $region24: #{lstm_forward.5} parent=1 // pred_region
      _
    $region25: #{lstm_forward.5} parent=1 // pred_fallthru
      _
    // Predicated region
    $region26: #{lstm_forward.5} parent=1 // pred_check
      _
    $region27: #{lstm_forward.5} parent=1 // pred_check_branch
      %33 = sbr.rel (0) target = $region29
    $region28: #{lstm_forward.5} parent=1 // pred_region
      _
    $region29: #{lstm_forward.5} parent=1 // pred_fallthru
      _
    // Predicated region
    $region30: #{lstm_forward.5} parent=1 // pred_check
      _
    $region31: #{lstm_forward.5} parent=1 // pred_check_branch
      %35 = sbr.rel (0) target = $region33
    $region32: #{lstm_forward.5} parent=1 // pred_region
      _
    $region33: #{lstm_forward.5} parent=1 // pred_fallthru
      _
    // Predicated region
    $region34: #{lstm_forward.5} parent=1 // pred_check
      _
    $region35: #{lstm_forward.5} parent=1 // pred_check_branch
      %37 = sbr.rel (0) target = $region37
    $region36: #{lstm_forward.5} parent=1 // pred_region
      _
    $region37: #{lstm_forward.5} parent=1 // pred_fallthru
      _
    // Predicated region
    $region38: #{lstm_forward.5} parent=1 // pred_check
      _
    $region39: #{lstm_forward.5} parent=1 // pred_check_branch
      %39 = sbr.rel (0) target = $region41
    $region40: #{lstm_forward.5} parent=1 // pred_region
      _
    $region41: #{lstm_forward.5} parent=1 // pred_fallthru
      _
    // Predicated region
    $region42: #{lstm_forward.5} parent=1 // pred_check
      _
    $region43: #{lstm_forward.5} parent=1 // pred_check_branch
      %41 = sbr.rel (0) target = $region45
    $region44: #{lstm_forward.5} parent=1 // pred_region
      _
    $region45: #{lstm_forward.5} parent=1 // pred_fallthru
      _
    %v43 = vld [vmem:[%s0] sm:$0xff]
    %v44 = vpack.c.bf16 %v43, %v43
    %v45 = vld [vmem:[%s1] sm:$0xff]
    %v46 = vld [vmem:[%s1 + $0x8] sm:$0xff]
    %v47 = vld [vmem:[%s1 + $0x10] sm:$0xff]
    %v48 = vld [vmem:[%s1 + $0x18] sm:$0xff]
    %v49 = vld [vmem:[%s1 + $0x20] sm:$0xff]
    %v50 = vld [vmem:[%s1 + $0x28] sm:$0xff]
    %v51 = vld [vmem:[%s1 + $0x30] sm:$0xff]
    %v52 = vld [vmem:[%s1 + $0x38] sm:$0xff]
    %v53 = vld [vmem:[%s1 + $0x40] sm:$0xff]
    %v54 = vld [vmem:[%s1 + $0x48] sm:$0xff]
    %v55 = vld [vmem:[%s1 + $0x50] sm:$0xff]
    %v56 = vld [vmem:[%s1 + $0x58] sm:$0xff]
    %v57 = vld [vmem:[%s1 + $0x60] sm:$0xff]
    %v58 = vld [vmem:[%s1 + $0x68] sm:$0xff]
    %v59 = vld [vmem:[%s1 + $0x70] sm:$0xff]
    %v60 = vld [vmem:[%s1 + $0x78] sm:$0xff]
    %v61 = vld [vmem:[%s2] sm:$0xff]
    %v63 = vlaneseq
    %v64 = vshrl.u32 %v63, 7
    %v65 = vsub.s32 0, %v64
    %v66 = vrot.slane %v61, %v65
    %v67 = vlaneseq
    %v68 = vshrl.u32 %v67, 7
    %v69 = vsub.s32 1, %v68
    %v70 = vrot.slane %v61, %v69
    %v71 = vlaneseq
    %v72 = vshrl.u32 %v71, 7
    %v73 = vsub.s32 2, %v72
    %v74 = vrot.slane %v61, %v73
    %v75 = vlaneseq
    %v76 = vshrl.u32 %v75, 7
    %v77 = vsub.s32 3, %v76
    %v78 = vrot.slane %v61, %v77
    %v79 = vlaneseq
    %v80 = vshrl.u32 %v79, 7
    %v81 = vsub.s32 4, %v80
    %v82 = vrot.slane %v61, %v81
    %v83 = vlaneseq
    %v84 = vshrl.u32 %v83, 7
    %v85 = vsub.s32 5, %v84
    %v86 = vrot.slane %v61, %v85
    %v87 = vlaneseq
    %v88 = vshrl.u32 %v87, 7
    %v89 = vsub.s32 6, %v88
    %v90 = vrot.slane %v61, %v89
    %v91 = vlaneseq
    %v92 = vshrl.u32 %v91, 7
    %v93 = vsub.s32 7, %v92
    %v94 = vrot.slane %v61, %v93
    %v119 = vunpack.c.l.b16 %v45
    %v120 = vunpack.c.h.b16 %v45
    %v121 = vunpack.c.l.b16 %v46
    %v122 = vunpack.c.h.b16 %v46
    %v123 = vunpack.c.l.b16 %v47
    %v124 = vunpack.c.h.b16 %v47
    %v125 = vunpack.c.l.b16 %v48
    %v126 = vunpack.c.h.b16 %v48
    %v127 = vunpack.c.l.b16 %v49
    %v128 = vunpack.c.h.b16 %v49
    %v129 = vunpack.c.l.b16 %v50
    %v130 = vunpack.c.h.b16 %v50
    %v131 = vunpack.c.l.b16 %v51
    %v132 = vunpack.c.h.b16 %v51
    %v133 = vunpack.c.l.b16 %v52
    %v134 = vunpack.c.h.b16 %v52
    %v135 = vunpack.c.l.b16 %v53
    %v136 = vunpack.c.h.b16 %v53
    %v137 = vunpack.c.l.b16 %v54
    %v138 = vunpack.c.h.b16 %v54
    %v139 = vunpack.c.l.b16 %v55
    %v140 = vunpack.c.h.b16 %v55
    %v141 = vunpack.c.l.b16 %v56
    %v142 = vunpack.c.h.b16 %v56
    %v143 = vunpack.c.l.b16 %v57
    %v144 = vunpack.c.h.b16 %v57
    %v145 = vunpack.c.l.b16 %v58
    %v146 = vunpack.c.h.b16 %v58
    %v147 = vunpack.c.l.b16 %v59
    %v148 = vunpack.c.h.b16 %v59
    %v149 = vunpack.c.l.b16 %v60
    %v150 = vunpack.c.h.b16 %v60
    %v151 = vpack.c.b16 %v127, %v119
    %v152 = vpack.c.b16 %v128, %v120
    %v153 = vpack.c.b16 %v129, %v121
    %v154 = vpack.c.b16 %v130, %v122
    %v155 = vpack.c.b16 %v131, %v123
    %v156 = vpack.c.b16 %v132, %v124
    %v157 = vpack.c.b16 %v133, %v125
    %v158 = vpack.c.b16 %v134, %v126
    %v159 = vpack.c.b16 %v143, %v135
    %v160 = vpack.c.b16 %v144, %v136
    %v161 = vpack.c.b16 %v145, %v137
    %v162 = vpack.c.b16 %v146, %v138
    %v163 = vpack.c.b16 %v147, %v139
    %v164 = vpack.c.b16 %v148, %v140
    %v165 = vpack.c.b16 %v149, %v141
    %v166 = vpack.c.b16 %v150, %v142
    %vm183 = vcmask 261120
    %v185 = vsel %vm183, %v44, 0
    %187 = vmatprep.subr.bf16.mxu0 0
    %188 = vmatpush1.bf16.msra.mxu0 0
    %189 = vmatprep.subr.bf16.mxu0 0
    %190 = vmatpush1.bf16.msra.mxu0 0
    %191 = vmatprep.subr.bf16.mxu0 0
    %192 = vmatpush1.bf16.msra.mxu0 0
    %193 = vmatprep.subr.bf16.mxu0 0
    %194 = vmatpush1.bf16.msra.mxu0 0
    %195 = vmatprep.subr.bf16.mxu0 0
    %196 = vmatpush1.bf16.msra.mxu0 0
    %197 = vmatprep.subr.bf16.mxu0 0
    %198 = vmatpush1.bf16.msra.mxu0 0
    %199 = vmatprep.subr.bf16.mxu0 %v160
    %200 = vmatpush1.bf16.msra.mxu0 %v159
    %201 = vmatprep.subr.bf16.mxu0 %v152
    %202 = vmatpush1.bf16.msra.mxu0 %v151
    %203 = vmatprep.subr.bf16.mxu0 0
    %204 = vmatpush2.bf16.msra.mxu0 0
    %205 = vmatprep.subr.bf16.mxu0 0
    %206 = vmatpush2.bf16.msra.mxu0 0
    %207 = vmatprep.subr.bf16.mxu0 0
    %208 = vmatpush2.bf16.msra.mxu0 0
    %209 = vmatprep.subr.bf16.mxu0 0
    %210 = vmatpush2.bf16.msra.mxu0 0
    %211 = vmatprep.subr.bf16.mxu0 0
    %212 = vmatpush2.bf16.msra.mxu0 0
    %213 = vmatprep.subr.bf16.mxu0 0
    %214 = vmatpush2.bf16.msra.mxu0 0
    %215 = vmatprep.subr.bf16.mxu0 0
    %216 = vmatpush2.bf16.msra.mxu0 0
    %217 = vmatprep.subr.bf16.mxu0 0
    %218 = vmatpush2.bf16.msra.mxu0 0
    %219 = vmatprep.mubr.bf16.mxu0 0
    %220 = vmatmul.mubr.bf16.gmra.mxu0 %v185
    %v221 = vpop.f32.mrf.mxu0
    %v222 = vadd.f32 %v66, %v221
    %v223 = vpop.f32.mrf.mxu0
    %v224 = vadd.f32 %v70, %v223
    %v225 = vpop.f32.mrf.mxu0
    %v226 = vpop.f32.mrf.mxu0
    %227 = vdwg.mxu0
    %228 = vmatprep.subr.bf16.mxu0 0
    %229 = vmatpush1.bf16.msra.mxu0 0
    %230 = vmatprep.subr.bf16.mxu0 0
    %231 = vmatpush1.bf16.msra.mxu0 0
    %232 = vmatprep.subr.bf16.mxu0 0
    %233 = vmatpush1.bf16.msra.mxu0 0
    %234 = vmatprep.subr.bf16.mxu0 0
    %235 = vmatpush1.bf16.msra.mxu0 0
    %236 = vmatprep.subr.bf16.mxu0 0
    %237 = vmatpush1.bf16.msra.mxu0 0
    %238 = vmatprep.subr.bf16.mxu0 0
    %239 = vmatpush1.bf16.msra.mxu0 0
    %240 = vmatprep.subr.bf16.mxu0 %v162
    %241 = vmatpush1.bf16.msra.mxu0 %v161
    %242 = vmatprep.subr.bf16.mxu0 %v154
    %243 = vmatpush1.bf16.msra.mxu0 %v153
    %244 = vmatprep.subr.bf16.mxu0 0
    %245 = vmatpush2.bf16.msra.mxu0 0
    %246 = vmatprep.subr.bf16.mxu0 0
    %247 = vmatpush2.bf16.msra.mxu0 0
    %248 = vmatprep.subr.bf16.mxu0 0
    %249 = vmatpush2.bf16.msra.mxu0 0
    %250 = vmatprep.subr.bf16.mxu0 0
    %251 = vmatpush2.bf16.msra.mxu0 0
    %252 = vmatprep.subr.bf16.mxu0 0
    %253 = vmatpush2.bf16.msra.mxu0 0
    %254 = vmatprep.subr.bf16.mxu0 0
    %255 = vmatpush2.bf16.msra.mxu0 0
    %256 = vmatprep.subr.bf16.mxu0 0
    %257 = vmatpush2.bf16.msra.mxu0 0
    %258 = vmatprep.subr.bf16.mxu0 0
    %259 = vmatpush2.bf16.msra.mxu0 0
    %260 = vmatprep.mubr.bf16.mxu0 0
    %261 = vmatmul.mubr.bf16.gmra.mxu0 %v185
    %v262 = vpop.f32.mrf.mxu0
    %v263 = vadd.f32 %v74, %v262
    %v264 = vpop.f32.mrf.mxu0
    %v265 = vadd.f32 %v78, %v264
    %v266 = vpop.f32.mrf.mxu0
    %v267 = vpop.f32.mrf.mxu0
    %268 = vdwg.mxu0
    %269 = vmatprep.subr.bf16.mxu0 0
    %270 = vmatpush1.bf16.msra.mxu0 0
    %271 = vmatprep.subr.bf16.mxu0 0
    %272 = vmatpush1.bf16.msra.mxu0 0
    %273 = vmatprep.subr.bf16.mxu0 0
    %274 = vmatpush1.bf16.msra.mxu0 0
    %275 = vmatprep.subr.bf16.mxu0 0
    %276 = vmatpush1.bf16.msra.mxu0 0
    %277 = vmatprep.subr.bf16.mxu0 0
    %278 = vmatpush1.bf16.msra.mxu0 0
    %279 = vmatprep.subr.bf16.mxu0 0
    %280 = vmatpush1.bf16.msra.mxu0 0
    %281 = vmatprep.subr.bf16.mxu0 %v164
    %282 = vmatpush1.bf16.msra.mxu0 %v163
    %283 = vmatprep.subr.bf16.mxu0 %v156
    %284 = vmatpush1.bf16.msra.mxu0 %v155
    %285 = vmatprep.subr.bf16.mxu0 0
    %286 = vmatpush2.bf16.msra.mxu0 0
    %287 = vmatprep.subr.bf16.mxu0 0
    %288 = vmatpush2.bf16.msra.mxu0 0
    %289 = vmatprep.subr.bf16.mxu0 0
    %290 = vmatpush2.bf16.msra.mxu0 0
    %291 = vmatprep.subr.bf16.mxu0 0
    %292 = vmatpush2.bf16.msra.mxu0 0
    %293 = vmatprep.subr.bf16.mxu0 0
    %294 = vmatpush2.bf16.msra.mxu0 0
    %295 = vmatprep.subr.bf16.mxu0 0
    %296 = vmatpush2.bf16.msra.mxu0 0
    %297 = vmatprep.subr.bf16.mxu0 0
    %298 = vmatpush2.bf16.msra.mxu0 0
    %299 = vmatprep.subr.bf16.mxu0 0
    %300 = vmatpush2.bf16.msra.mxu0 0
    %301 = vmatprep.mubr.bf16.mxu0 0
    %302 = vmatmul.mubr.bf16.gmra.mxu0 %v185
    %v303 = vpop.f32.mrf.mxu0
    %v304 = vadd.f32 %v82, %v303
    %v305 = vpop.f32.mrf.mxu0
    %v306 = vadd.f32 %v86, %v305
    %v307 = vpop.f32.mrf.mxu0
    %v308 = vpop.f32.mrf.mxu0
    %309 = vdwg.mxu0
    %310 = vmatprep.subr.bf16.mxu0 0
    %311 = vmatpush1.bf16.msra.mxu0 0
    %312 = vmatprep.subr.bf16.mxu0 0
    %313 = vmatpush1.bf16.msra.mxu0 0
    %314 = vmatprep.subr.bf16.mxu0 0
    %315 = vmatpush1.bf16.msra.mxu0 0
    %316 = vmatprep.subr.bf16.mxu0 0
    %317 = vmatpush1.bf16.msra.mxu0 0
    %318 = vmatprep.subr.bf16.mxu0 0
    %319 = vmatpush1.bf16.msra.mxu0 0
    %320 = vmatprep.subr.bf16.mxu0 0
    %321 = vmatpush1.bf16.msra.mxu0 0
    %322 = vmatprep.subr.bf16.mxu0 %v166
    %323 = vmatpush1.bf16.msra.mxu0 %v165
    %324 = vmatprep.subr.bf16.mxu0 %v158
    %325 = vmatpush1.bf16.msra.mxu0 %v157
    %326 = vmatprep.subr.bf16.mxu0 0
    %327 = vmatpush2.bf16.msra.mxu0 0
    %328 = vmatprep.subr.bf16.mxu0 0
    %329 = vmatpush2.bf16.msra.mxu0 0
    %330 = vmatprep.subr.bf16.mxu0 0
    %331 = vmatpush2.bf16.msra.mxu0 0
    %332 = vmatprep.subr.bf16.mxu0 0
    %333 = vmatpush2.bf16.msra.mxu0 0
    %334 = vmatprep.subr.bf16.mxu0 0
    %335 = vmatpush2.bf16.msra.mxu0 0
    %336 = vmatprep.subr.bf16.mxu0 0
    %337 = vmatpush2.bf16.msra.mxu0 0
    %338 = vmatprep.subr.bf16.mxu0 0
    %339 = vmatpush2.bf16.msra.mxu0 0
    %340 = vmatprep.subr.bf16.mxu0 0
    %341 = vmatpush2.bf16.msra.mxu0 0
    %342 = vmatprep.mubr.bf16.mxu0 0
    %343 = vmatmul.mubr.bf16.gmra.mxu0 %v185
    %v344 = vpop.f32.mrf.mxu0
    %v345 = vadd.f32 %v90, %v344
    %v346 = vpop.f32.mrf.mxu0
    %v347 = vadd.f32 %v94, %v346
    %v348 = vpop.f32.mrf.mxu0
    %v349 = vpop.f32.mrf.mxu0
    %350 = vdwg.mxu0
    %v351 = vld [vmem:[%s3] sm:$0xff]
    %v352 = vld [vmem:[%s4] sm:$0xff]
    %v353 = vrot.slane %v222, 4
    %v354 = vadd.f32 %v222, %v353
    %v355 = vrot.slane %v354, 2
    %v356 = vadd.f32 %v354, %v355
    %v357 = vrot.slane %v356, 1
    %v358 = vadd.f32 %v356, %v357
    %v359 = vrot.slane %v224, 4
    %v360 = vadd.f32 %v224, %v359
    %v361 = vrot.slane %v360, 2
    %v362 = vadd.f32 %v360, %v361
    %v363 = vrot.slane %v362, 1
    %v364 = vadd.f32 %v362, %v363
    %v365 = vrot.slane %v263, 4
    %v366 = vadd.f32 %v263, %v365
    %v367 = vrot.slane %v366, 2
    %v368 = vadd.f32 %v366, %v367
    %v369 = vrot.slane %v368, 1
    %v370 = vadd.f32 %v368, %v369
    %v371 = vrot.slane %v265, 4
    %v372 = vadd.f32 %v265, %v371
    %v373 = vrot.slane %v372, 2
    %v374 = vadd.f32 %v372, %v373
    %v375 = vrot.slane %v374, 1
    %v376 = vadd.f32 %v374, %v375
    %v377 = vrot.slane %v304, 4
    %v378 = vadd.f32 %v304, %v377
    %v379 = vrot.slane %v378, 2
    %v380 = vadd.f32 %v378, %v379
    %v381 = vrot.slane %v380, 1
    %v382 = vadd.f32 %v380, %v381
    %v383 = vrot.slane %v306, 4
    %v384 = vadd.f32 %v306, %v383
    %v385 = vrot.slane %v384, 2
    %v386 = vadd.f32 %v384, %v385
    %v387 = vrot.slane %v386, 1
    %v388 = vadd.f32 %v386, %v387
    %v389 = vrot.slane %v345, 4
    %v390 = vadd.f32 %v345, %v389
    %v391 = vrot.slane %v390, 2
    %v392 = vadd.f32 %v390, %v391
    %v393 = vrot.slane %v392, 1
    %v394 = vadd.f32 %v392, %v393
    %v395 = vrot.slane %v347, 4
    %v396 = vadd.f32 %v347, %v395
    %v397 = vrot.slane %v396, 2
    %v398 = vadd.f32 %v396, %v397
    %v399 = vrot.slane %v398, 1
    %v400 = vadd.f32 %v398, %v399
    %v401 = vrcp.pop 8.0
    %v402 = vmul.f32 %v358, %v401
    %v403 = vmul.f32 %v364, %v401
    %v404 = vmul.f32 %v370, %v401
    %v405 = vmul.f32 %v376, %v401
    %v406 = vmul.f32 %v382, %v401
    %v407 = vmul.f32 %v388, %v401
    %v408 = vmul.f32 %v394, %v401
    %v409 = vmul.f32 %v400, %v401
    %v410 = vsub.f32 %v222, %v402
    %v411 = vsub.f32 %v224, %v403
    %v412 = vsub.f32 %v263, %v404
    %v413 = vsub.f32 %v265, %v405
    %v414 = vsub.f32 %v304, %v406
    %v415 = vsub.f32 %v306, %v407
    %v416 = vsub.f32 %v345, %v408
    %v417 = vsub.f32 %v347, %v409
    %v418 = vmul.f32 %v410, %v410
    %v419 = vmul.f32 %v411, %v411
    %v420 = vmul.f32 %v412, %v412
    %v421 = vmul.f32 %v413, %v413
    %v422 = vmul.f32 %v414, %v414
    %v423 = vmul.f32 %v415, %v415
    %v424 = vmul.f32 %v416, %v416
    %v425 = vmul.f32 %v417, %v417
    %v426 = vrot.slane %v418, 4
    %v427 = vadd.f32 %v418, %v426
    %v428 = vrot.slane %v427, 2
    %v429 = vadd.f32 %v427, %v428
    %v430 = vrot.slane %v429, 1
    %v431 = vadd.f32 %v429, %v430
    %v432 = vrot.slane %v419, 4
    %v433 = vadd.f32 %v419, %v432
    %v434 = vrot.slane %v433, 2
    %v435 = vadd.f32 %v433, %v434
    %v436 = vrot.slane %v435, 1
    %v437 = vadd.f32 %v435, %v436
    %v438 = vrot.slane %v420, 4
    %v439 = vadd.f32 %v420, %v438
    %v440 = vrot.slane %v439, 2
    %v441 = vadd.f32 %v439, %v440
    %v442 = vrot.slane %v441, 1
    %v443 = vadd.f32 %v441, %v442
    %v444 = vrot.slane %v421, 4
    %v445 = vadd.f32 %v421, %v444
    %v446 = vrot.slane %v445, 2
    %v447 = vadd.f32 %v445, %v446
    %v448 = vrot.slane %v447, 1
    %v449 = vadd.f32 %v447, %v448
    %v450 = vrot.slane %v422, 4
    %v451 = vadd.f32 %v422, %v450
    %v452 = vrot.slane %v451, 2
    %v453 = vadd.f32 %v451, %v452
    %v454 = vrot.slane %v453, 1
    %v455 = vadd.f32 %v453, %v454
    %v456 = vrot.slane %v423, 4
    %v457 = vadd.f32 %v423, %v456
    %v458 = vrot.slane %v457, 2
    %v459 = vadd.f32 %v457, %v458
    %v460 = vrot.slane %v459, 1
    %v461 = vadd.f32 %v459, %v460
    %v462 = vrot.slane %v424, 4
    %v463 = vadd.f32 %v424, %v462
    %v464 = vrot.slane %v463, 2
    %v465 = vadd.f32 %v463, %v464
    %v466 = vrot.slane %v465, 1
    %v467 = vadd.f32 %v465, %v466
    %v468 = vrot.slane %v425, 4
    %v469 = vadd.f32 %v425, %v468
    %v470 = vrot.slane %v469, 2
    %v471 = vadd.f32 %v469, %v470
    %v472 = vrot.slane %v471, 1
    %v473 = vadd.f32 %v471, %v472
    %v474 = vmul.f32 %v431, %v401
    %v475 = vmul.f32 %v437, %v401
    %v476 = vmul.f32 %v443, %v401
    %v477 = vmul.f32 %v449, %v401
    %v478 = vmul.f32 %v455, %v401
    %v479 = vmul.f32 %v461, %v401
    %v480 = vmul.f32 %v467, %v401
    %v481 = vmul.f32 %v473, %v401
    %v482 = vadd.f32 %v474, 1e-05
    %v483 = vadd.f32 %v475, 1e-05
    %v484 = vadd.f32 %v476, 1e-05
    %v485 = vadd.f32 %v477, 1e-05
    %v486 = vadd.f32 %v478, 1e-05
    %v487 = vadd.f32 %v479, 1e-05
    %v488 = vadd.f32 %v480, 1e-05
    %v489 = vadd.f32 %v481, 1e-05
    %v490 = vrsqrt.pop %v482
    %v491 = vrsqrt.pop %v483
    %v492 = vrsqrt.pop %v484
    %v493 = vrsqrt.pop %v485
    %v494 = vrsqrt.pop %v486
    %v495 = vrsqrt.pop %v487
    %v496 = vrsqrt.pop %v488
    %v497 = vrsqrt.pop %v489
    %v498 = vmul.f32 %v410, %v490
    %v499 = vmul.f32 %v411, %v491
    %v500 = vmul.f32 %v412, %v492
    %v501 = vmul.f32 %v413, %v493
    %v502 = vmul.f32 %v414, %v494
    %v503 = vmul.f32 %v415, %v495
    %v504 = vmul.f32 %v416, %v496
    %v505 = vmul.f32 %v417, %v497
    %v507 = vlaneseq
    %v508 = vshrl.u32 %v507, 7
    %v509 = vsub.s32 0, %v508
    %v510 = vrot.slane %v351, %v509
    %v511 = vlaneseq
    %v512 = vshrl.u32 %v511, 7
    %v513 = vsub.s32 1, %v512
    %v514 = vrot.slane %v351, %v513
    %v515 = vlaneseq
    %v516 = vshrl.u32 %v515, 7
    %v517 = vsub.s32 2, %v516
    %v518 = vrot.slane %v351, %v517
    %v519 = vlaneseq
    %v520 = vshrl.u32 %v519, 7
    %v521 = vsub.s32 3, %v520
    %v522 = vrot.slane %v351, %v521
    %v523 = vlaneseq
    %v524 = vshrl.u32 %v523, 7
    %v525 = vsub.s32 4, %v524
    %v526 = vrot.slane %v351, %v525
    %v527 = vlaneseq
    %v528 = vshrl.u32 %v527, 7
    %v529 = vsub.s32 5, %v528
    %v530 = vrot.slane %v351, %v529
    %v531 = vlaneseq
    %v532 = vshrl.u32 %v531, 7
    %v533 = vsub.s32 6, %v532
    %v534 = vrot.slane %v351, %v533
    %v535 = vlaneseq
    %v536 = vshrl.u32 %v535, 7
    %v537 = vsub.s32 7, %v536
    %v538 = vrot.slane %v351, %v537
    %v547 = vmul.f32 %v498, %v510
    %v548 = vmul.f32 %v499, %v514
    %v549 = vmul.f32 %v500, %v518
    %v550 = vmul.f32 %v501, %v522
    %v551 = vmul.f32 %v502, %v526
    %v552 = vmul.f32 %v503, %v530
    %v553 = vmul.f32 %v504, %v534
    %v554 = vmul.f32 %v505, %v538
    %v556 = vlaneseq
    %v557 = vshrl.u32 %v556, 7
    %v558 = vsub.s32 0, %v557
    %v559 = vrot.slane %v352, %v558
    %v560 = vlaneseq
    %v561 = vshrl.u32 %v560, 7
    %v562 = vsub.s32 1, %v561
    %v563 = vrot.slane %v352, %v562
    %v564 = vlaneseq
    %v565 = vshrl.u32 %v564, 7
    %v566 = vsub.s32 2, %v565
    %v567 = vrot.slane %v352, %v566
    %v568 = vlaneseq
    %v569 = vshrl.u32 %v568, 7
    %v570 = vsub.s32 3, %v569
    %v571 = vrot.slane %v352, %v570
    %v572 = vlaneseq
    %v573 = vshrl.u32 %v572, 7
    %v574 = vsub.s32 4, %v573
    %v575 = vrot.slane %v352, %v574
    %v576 = vlaneseq
    %v577 = vshrl.u32 %v576, 7
    %v578 = vsub.s32 5, %v577
    %v579 = vrot.slane %v352, %v578
    %v580 = vlaneseq
    %v581 = vshrl.u32 %v580, 7
    %v582 = vsub.s32 6, %v581
    %v583 = vrot.slane %v352, %v582
    %v584 = vlaneseq
    %v585 = vshrl.u32 %v584, 7
    %v586 = vsub.s32 7, %v585
    %v587 = vrot.slane %v352, %v586
    %v596 = vadd.f32 %v547, %v559
    %v597 = vadd.f32 %v548, %v563
    %v598 = vadd.f32 %v549, %v567
    %v599 = vadd.f32 %v550, %v571
    %v600 = vadd.f32 %v551, %v575
    %v601 = vadd.f32 %v552, %v579
    %v602 = vadd.f32 %v553, %v583
    %v603 = vadd.f32 %v554, %v587
    %v604 = vmax.f32 %v596, 0.0
    %v605 = vmax.f32 %v597, 0.0
    %v606 = vmax.f32 %v598, 0.0
    %v607 = vmax.f32 %v599, 0.0
    %v608 = vmax.f32 %v600, 0.0
    %v609 = vmax.f32 %v601, 0.0
    %v610 = vmax.f32 %v602, 0.0
    %v611 = vmax.f32 %v603, 0.0
    %v612 = vpack.c.bf16 %v604, %v604
    %v613 = vpack.c.bf16 %v605, %v605
    %v614 = vpack.c.bf16 %v606, %v606
    %v615 = vpack.c.bf16 %v607, %v607
    %v616 = vpack.c.bf16 %v608, %v608
    %v617 = vpack.c.bf16 %v609, %v609
    %v618 = vpack.c.bf16 %v610, %v610
    %v619 = vpack.c.bf16 %v611, %v611
    %v620 = vld [vmem:[%s5] sm:$0xff]
    %v621 = vld [vmem:[%s5 + $0x8] sm:$0xff]
    %v622 = vld [vmem:[%s5 + $0x10] sm:$0xff]
    %v623 = vld [vmem:[%s5 + $0x18] sm:$0xff]
    %v624 = vld [vmem:[%s5 + $0x20] sm:$0xff]
    %v625 = vld [vmem:[%s5 + $0x28] sm:$0xff]
    %v626 = vld [vmem:[%s5 + $0x30] sm:$0xff]
    %v627 = vld [vmem:[%s5 + $0x38] sm:$0xff]
    %v628 = vld [vmem:[%s5 + $0x40] sm:$0xff]
    %v629 = vld [vmem:[%s5 + $0x48] sm:$0xff]
    %v630 = vld [vmem:[%s5 + $0x50] sm:$0xff]
    %v631 = vld [vmem:[%s5 + $0x58] sm:$0xff]
    %v632 = vld [vmem:[%s5 + $0x60] sm:$0xff]
    %v633 = vld [vmem:[%s5 + $0x68] sm:$0xff]
    %v634 = vld [vmem:[%s5 + $0x70] sm:$0xff]
    %v635 = vld [vmem:[%s5 + $0x78] sm:$0xff]
    %v636 = vld [vmem:[%s5 + $0x80] sm:$0xff]
    %v637 = vld [vmem:[%s5 + $0x88] sm:$0xff]
    %v638 = vld [vmem:[%s5 + $0x90] sm:$0xff]
    %v639 = vld [vmem:[%s5 + $0x98] sm:$0xff]
    %v640 = vld [vmem:[%s5 + $0xa0] sm:$0xff]
    %v641 = vld [vmem:[%s5 + $0xa8] sm:$0xff]
    %v642 = vld [vmem:[%s5 + $0xb0] sm:$0xff]
    %v643 = vld [vmem:[%s5 + $0xb8] sm:$0xff]
    %v644 = vld [vmem:[%s5 + $0xc0] sm:$0xff]
    %v645 = vld [vmem:[%s5 + $0xc8] sm:$0xff]
    %v646 = vld [vmem:[%s5 + $0xd0] sm:$0xff]
    %v647 = vld [vmem:[%s5 + $0xd8] sm:$0xff]
    %v648 = vld [vmem:[%s5 + $0xe0] sm:$0xff]
    %v649 = vld [vmem:[%s5 + $0xe8] sm:$0xff]
    %v650 = vld [vmem:[%s5 + $0xf0] sm:$0xff]
    %v651 = vld [vmem:[%s5 + $0xf8] sm:$0xff]
    %v652 = vld [vmem:[%s5 + $0x100] sm:$0xff]
    %v653 = vld [vmem:[%s5 + $0x108] sm:$0xff]
    %v654 = vld [vmem:[%s5 + $0x110] sm:$0xff]
    %v655 = vld [vmem:[%s5 + $0x118] sm:$0xff]
    %v656 = vld [vmem:[%s5 + $0x120] sm:$0xff]
    %v657 = vld [vmem:[%s5 + $0x128] sm:$0xff]
    %v658 = vld [vmem:[%s5 + $0x130] sm:$0xff]
    %v659 = vld [vmem:[%s5 + $0x138] sm:$0xff]
    %v660 = vld [vmem:[%s5 + $0x140] sm:$0xff]
    %v661 = vld [vmem:[%s5 + $0x148] sm:$0xff]
    %v662 = vld [vmem:[%s5 + $0x150] sm:$0xff]
    %v663 = vld [vmem:[%s5 + $0x158] sm:$0xff]
    %v664 = vld [vmem:[%s5 + $0x160] sm:$0xff]
    %v665 = vld [vmem:[%s5 + $0x168] sm:$0xff]
    %v666 = vld [vmem:[%s5 + $0x170] sm:$0xff]
    %v667 = vld [vmem:[%s5 + $0x178] sm:$0xff]
    %v668 = vld [vmem:[%s5 + $0x180] sm:$0xff]
    %v669 = vld [vmem:[%s5 + $0x188] sm:$0xff]
    %v670 = vld [vmem:[%s5 + $0x190] sm:$0xff]
    %v671 = vld [vmem:[%s5 + $0x198] sm:$0xff]
    %v672 = vld [vmem:[%s5 + $0x1a0] sm:$0xff]
    %v673 = vld [vmem:[%s5 + $0x1a8] sm:$0xff]
    %v674 = vld [vmem:[%s5 + $0x1b0] sm:$0xff]
    %v675 = vld [vmem:[%s5 + $0x1b8] sm:$0xff]
    %v676 = vld [vmem:[%s5 + $0x1c0] sm:$0xff]
    %v677 = vld [vmem:[%s5 + $0x1c8] sm:$0xff]
    %v678 = vld [vmem:[%s5 + $0x1d0] sm:$0xff]
    %v679 = vld [vmem:[%s5 + $0x1d8] sm:$0xff]
    %v680 = vld [vmem:[%s5 + $0x1e0] sm:$0xff]
    %v681 = vld [vmem:[%s5 + $0x1e8] sm:$0xff]
    %v682 = vld [vmem:[%s5 + $0x1f0] sm:$0xff]
    %v683 = vld [vmem:[%s5 + $0x1f8] sm:$0xff]
    %v684 = vld [vmem:[%s5 + $0x200] sm:$0xff]
    %v685 = vld [vmem:[%s5 + $0x208] sm:$0xff]
    %v686 = vld [vmem:[%s5 + $0x210] sm:$0xff]
    %v687 = vld [vmem:[%s5 + $0x218] sm:$0xff]
    %v688 = vld [vmem:[%s5 + $0x220] sm:$0xff]
    %v689 = vld [vmem:[%s5 + $0x228] sm:$0xff]
    %v690 = vld [vmem:[%s5 + $0x230] sm:$0xff]
    %v691 = vld [vmem:[%s5 + $0x238] sm:$0xff]
    %v692 = vld [vmem:[%s5 + $0x240] sm:$0xff]
    %v693 = vld [vmem:[%s5 + $0x248] sm:$0xff]
    %v694 = vld [vmem:[%s5 + $0x250] sm:$0xff]
    %v695 = vld [vmem:[%s5 + $0x258] sm:$0xff]
    %v696 = vld [vmem:[%s5 + $0x260] sm:$0xff]
    %v697 = vld [vmem:[%s5 + $0x268] sm:$0xff]
    %v698 = vld [vmem:[%s5 + $0x270] sm:$0xff]
    %v699 = vld [vmem:[%s5 + $0x278] sm:$0xff]
    %v700 = vld [vmem:[%s5 + $0x280] sm:$0xff]
    %v701 = vld [vmem:[%s5 + $0x288] sm:$0xff]
    %v702 = vld [vmem:[%s5 + $0x290] sm:$0xff]
    %v703 = vld [vmem:[%s5 + $0x298] sm:$0xff]
    %v704 = vld [vmem:[%s5 + $0x2a0] sm:$0xff]
    %v705 = vld [vmem:[%s5 + $0x2a8] sm:$0xff]
    %v706 = vld [vmem:[%s5 + $0x2b0] sm:$0xff]
    %v707 = vld [vmem:[%s5 + $0x2b8] sm:$0xff]
    %v708 = vld [vmem:[%s5 + $0x2c0] sm:$0xff]
    %v709 = vld [vmem:[%s5 + $0x2c8] sm:$0xff]
    %v710 = vld [vmem:[%s5 + $0x2d0] sm:$0xff]
    %v711 = vld [vmem:[%s5 + $0x2d8] sm:$0xff]
    %v712 = vld [vmem:[%s5 + $0x2e0] sm:$0xff]
    %v713 = vld [vmem:[%s5 + $0x2e8] sm:$0xff]
    %v714 = vld [vmem:[%s5 + $0x2f0] sm:$0xff]
    %v715 = vld [vmem:[%s5 + $0x2f8] sm:$0xff]
    %v716 = vld [vmem:[%s5 + $0x300] sm:$0xff]
    %v717 = vld [vmem:[%s5 + $0x308] sm:$0xff]
    %v718 = vld [vmem:[%s5 + $0x310] sm:$0xff]
    %v719 = vld [vmem:[%s5 + $0x318] sm:$0xff]
    %v720 = vld [vmem:[%s5 + $0x320] sm:$0xff]
    %v721 = vld [vmem:[%s5 + $0x328] sm:$0xff]
    %v722 = vld [vmem:[%s5 + $0x330] sm:$0xff]
    %v723 = vld [vmem:[%s5 + $0x338] sm:$0xff]
    %v724 = vld [vmem:[%s5 + $0x340] sm:$0xff]
    %v725 = vld [vmem:[%s5 + $0x348] sm:$0xff]
    %v726 = vld [vmem:[%s5 + $0x350] sm:$0xff]
    %v727 = vld [vmem:[%s5 + $0x358] sm:$0xff]
    %v728 = vld [vmem:[%s5 + $0x360] sm:$0xff]
    %v729 = vld [vmem:[%s5 + $0x368] sm:$0xff]
    %v730 = vld [vmem:[%s5 + $0x370] sm:$0xff]
    %v731 = vld [vmem:[%s5 + $0x378] sm:$0xff]
    %v732 = vld [vmem:[%s5 + $0x380] sm:$0xff]
    %v733 = vld [vmem:[%s5 + $0x388] sm:$0xff]
    %v734 = vld [vmem:[%s5 + $0x390] sm:$0xff]
    %v735 = vld [vmem:[%s5 + $0x398] sm:$0xff]
    %v736 = vld [vmem:[%s5 + $0x3a0] sm:$0xff]
    %v737 = vld [vmem:[%s5 + $0x3a8] sm:$0xff]
    %v738 = vld [vmem:[%s5 + $0x3b0] sm:$0xff]
    %v739 = vld [vmem:[%s5 + $0x3b8] sm:$0xff]
    %v740 = vld [vmem:[%s5 + $0x3c0] sm:$0xff]
    %v741 = vld [vmem:[%s5 + $0x3c8] sm:$0xff]
    %v742 = vld [vmem:[%s5 + $0x3d0] sm:$0xff]
    %v743 = vld [vmem:[%s5 + $0x3d8] sm:$0xff]
    %v744 = vld [vmem:[%s5 + $0x3e0] sm:$0xff]
    %v745 = vld [vmem:[%s5 + $0x3e8] sm:$0xff]
    %v746 = vld [vmem:[%s5 + $0x3f0] sm:$0xff]
    %v747 = vld [vmem:[%s5 + $0x3f8] sm:$0xff]
    %v748 = vld [vmem:[%s6] sm:$0x3]
    %v750 = vlaneseq
    %v751 = vshrl.u32 %v750, 7
    %v752 = vsub.s32 0, %v751
    %v753 = vrot.slane %v748, %v752
    %v754 = vlaneseq
    %v755 = vshrl.u32 %v754, 7
    %v756 = vsub.s32 1, %v755
    %v757 = vrot.slane %v748, %v756
    %v888 = vunpack.c.l.b16 %v620
    %v889 = vunpack.c.h.b16 %v620
    %v890 = vunpack.c.l.b16 %v621
    %v891 = vunpack.c.h.b16 %v621
    %v892 = vunpack.c.l.b16 %v622
    %v893 = vunpack.c.h.b16 %v622
    %v894 = vunpack.c.l.b16 %v623
    %v895 = vunpack.c.h.b16 %v623
    %v896 = vunpack.c.l.b16 %v624
    %v897 = vunpack.c.h.b16 %v624
    %v898 = vunpack.c.l.b16 %v625
    %v899 = vunpack.c.h.b16 %v625
    %v900 = vunpack.c.l.b16 %v626
    %v901 = vunpack.c.h.b16 %v626
    %v902 = vunpack.c.l.b16 %v627
    %v903 = vunpack.c.h.b16 %v627
    %v904 = vunpack.c.l.b16 %v628
    %v905 = vunpack.c.h.b16 %v628
    %v906 = vunpack.c.l.b16 %v629
    %v907 = vunpack.c.h.b16 %v629
    %v908 = vunpack.c.l.b16 %v630
    %v909 = vunpack.c.h.b16 %v630
    %v910 = vunpack.c.l.b16 %v631
    %v911 = vunpack.c.h.b16 %v631
    %v912 = vunpack.c.l.b16 %v632
    %v913 = vunpack.c.h.b16 %v632
    %v914 = vunpack.c.l.b16 %v633
    %v915 = vunpack.c.h.b16 %v633
    %v916 = vunpack.c.l.b16 %v634
    %v917 = vunpack.c.h.b16 %v634
    %v918 = vunpack.c.l.b16 %v635
    %v919 = vunpack.c.h.b16 %v635
    %v920 = vunpack.c.l.b16 %v636
    %v921 = vunpack.c.h.b16 %v636
    %v922 = vunpack.c.l.b16 %v637
    %v923 = vunpack.c.h.b16 %v637
    %v924 = vunpack.c.l.b16 %v638
    %v925 = vunpack.c.h.b16 %v638
    %v926 = vunpack.c.l.b16 %v639
    %v927 = vunpack.c.h.b16 %v639
    %v928 = vunpack.c.l.b16 %v640
    %v929 = vunpack.c.h.b16 %v640
    %v930 = vunpack.c.l.b16 %v641
    %v931 = vunpack.c.h.b16 %v641
    %v932 = vunpack.c.l.b16 %v642
    %v933 = vunpack.c.h.b16 %v642
    %v934 = vunpack.c.l.b16 %v643
    %v935 = vunpack.c.h.b16 %v643
    %v936 = vunpack.c.l.b16 %v644
    %v937 = vunpack.c.h.b16 %v644
    %v938 = vunpack.c.l.b16 %v645
    %v939 = vunpack.c.h.b16 %v645
    %v940 = vunpack.c.l.b16 %v646
    %v941 = vunpack.c.h.b16 %v646
    %v942 = vunpack.c.l.b16 %v647
    %v943 = vunpack.c.h.b16 %v647
    %v944 = vunpack.c.l.b16 %v648
    %v945 = vunpack.c.h.b16 %v648
    %v946 = vunpack.c.l.b16 %v649
    %v947 = vunpack.c.h.b16 %v649
    %v948 = vunpack.c.l.b16 %v650
    %v949 = vunpack.c.h.b16 %v650
    %v950 = vunpack.c.l.b16 %v651
    %v951 = vunpack.c.h.b16 %v651
    %v952 = vunpack.c.l.b16 %v652
    %v953 = vunpack.c.h.b16 %v652
    %v954 = vunpack.c.l.b16 %v653
    %v955 = vunpack.c.h.b16 %v653
    %v956 = vunpack.c.l.b16 %v654
    %v957 = vunpack.c.h.b16 %v654
    %v958 = vunpack.c.l.b16 %v655
    %v959 = vunpack.c.h.b16 %v655
    %v960 = vunpack.c.l.b16 %v656
    %v961 = vunpack.c.h.b16 %v656
    %v962 = vunpack.c.l.b16 %v657
    %v963 = vunpack.c.h.b16 %v657
    %v964 = vunpack.c.l.b16 %v658
    %v965 = vunpack.c.h.b16 %v658
    %v966 = vunpack.c.l.b16 %v659
    %v967 = vunpack.c.h.b16 %v659
    %v968 = vunpack.c.l.b16 %v660
    %v969 = vunpack.c.h.b16 %v660
    %v970 = vunpack.c.l.b16 %v661
    %v971 = vunpack.c.h.b16 %v661
    %v972 = vunpack.c.l.b16 %v662
    %v973 = vunpack.c.h.b16 %v662
    %v974 = vunpack.c.l.b16 %v663
    %v975 = vunpack.c.h.b16 %v663
    %v976 = vunpack.c.l.b16 %v664
    %v977 = vunpack.c.h.b16 %v664
    %v978 = vunpack.c.l.b16 %v665
    %v979 = vunpack.c.h.b16 %v665
    %v980 = vunpack.c.l.b16 %v666
    %v981 = vunpack.c.h.b16 %v666
    %v982 = vunpack.c.l.b16 %v667
    %v983 = vunpack.c.h.b16 %v667
    %v984 = vunpack.c.l.b16 %v668
    %v985 = vunpack.c.h.b16 %v668
    %v986 = vunpack.c.l.b16 %v669
    %v987 = vunpack.c.h.b16 %v669
    %v988 = vunpack.c.l.b16 %v670
    %v989 = vunpack.c.h.b16 %v670
    %v990 = vunpack.c.l.b16 %v671
    %v991 = vunpack.c.h.b16 %v671
    %v992 = vunpack.c.l.b16 %v672
    %v993 = vunpack.c.h.b16 %v672
    %v994 = vunpack.c.l.b16 %v673
    %v995 = vunpack.c.h.b16 %v673
    %v996 = vunpack.c.l.b16 %v674
    %v997 = vunpack.c.h.b16 %v674
    %v998 = vunpack.c.l.b16 %v675
    %v999 = vunpack.c.h.b16 %v675
    %v1000 = vunpack.c.l.b16 %v676
    %v1001 = vunpack.c.h.b16 %v676
    %v1002 = vunpack.c.l.b16 %v677
    %v1003 = vunpack.c.h.b16 %v677
    %v1004 = vunpack.c.l.b16 %v678
    %v1005 = vunpack.c.h.b16 %v678
    %v1006 = vunpack.c.l.b16 %v679
    %v1007 = vunpack.c.h.b16 %v679
    %v1008 = vunpack.c.l.b16 %v680
    %v1009 = vunpack.c.h.b16 %v680
    %v1010 = vunpack.c.l.b16 %v681
    %v1011 = vunpack.c.h.b16 %v681
    %v1012 = vunpack.c.l.b16 %v682
    %v1013 = vunpack.c.h.b16 %v682
    %v1014 = vunpack.c.l.b16 %v683
    %v1015 = vunpack.c.h.b16 %v683
    %v1016 = vunpack.c.l.b16 %v684
    %v1017 = vunpack.c.h.b16 %v684
    %v1018 = vunpack.c.l.b16 %v685
    %v1019 = vunpack.c.h.b16 %v685
    %v1020 = vunpack.c.l.b16 %v686
    %v1021 = vunpack.c.h.b16 %v686
    %v1022 = vunpack.c.l.b16 %v687
    %v1023 = vunpack.c.h.b16 %v687
    %v1024 = vunpack.c.l.b16 %v688
    %v1025 = vunpack.c.h.b16 %v688
    %v1026 = vunpack.c.l.b16 %v689
    %v1027 = vunpack.c.h.b16 %v689
    %v1028 = vunpack.c.l.b16 %v690
    %v1029 = vunpack.c.h.b16 %v690
    %v1030 = vunpack.c.l.b16 %v691
    %v1031 = vunpack.c.h.b16 %v691
    %v1032 = vunpack.c.l.b16 %v692
    %v1033 = vunpack.c.h.b16 %v692
    %v1034 = vunpack.c.l.b16 %v693
    %v1035 = vunpack.c.h.b16 %v693
    %v1036 = vunpack.c.l.b16 %v694
    %v1037 = vunpack.c.h.b16 %v694
    %v1038 = vunpack.c.l.b16 %v695
    %v1039 = vunpack.c.h.b16 %v695
    %v1040 = vunpack.c.l.b16 %v696
    %v1041 = vunpack.c.h.b16 %v696
    %v1042 = vunpack.c.l.b16 %v697
    %v1043 = vunpack.c.h.b16 %v697
    %v1044 = vunpack.c.l.b16 %v698
    %v1045 = vunpack.c.h.b16 %v698
    %v1046 = vunpack.c.l.b16 %v699
    %v1047 = vunpack.c.h.b16 %v699
    %v1048 = vunpack.c.l.b16 %v700
    %v1049 = vunpack.c.h.b16 %v700
    %v1050 = vunpack.c.l.b16 %v701
    %v1051 = vunpack.c.h.b16 %v701
    %v1052 = vunpack.c.l.b16 %v702
    %v1053 = vunpack.c.h.b16 %v702
    %v1054 = vunpack.c.l.b16 %v703
    %v1055 = vunpack.c.h.b16 %v703
    %v1056 = vunpack.c.l.b16 %v704
    %v1057 = vunpack.c.h.b16 %v704
    %v1058 = vunpack.c.l.b16 %v705
    %v1059 = vunpack.c.h.b16 %v705
    %v1060 = vunpack.c.l.b16 %v706
    %v1061 = vunpack.c.h.b16 %v706
    %v1062 = vunpack.c.l.b16 %v707
    %v1063 = vunpack.c.h.b16 %v707
    %v1064 = vunpack.c.l.b16 %v708
    %v1065 = vunpack.c.h.b16 %v708
    %v1066 = vunpack.c.l.b16 %v709
    %v1067 = vunpack.c.h.b16 %v709
    %v1068 = vunpack.c.l.b16 %v710
    %v1069 = vunpack.c.h.b16 %v710
    %v1070 = vunpack.c.l.b16 %v711
    %v1071 = vunpack.c.h.b16 %v711
    %v1072 = vunpack.c.l.b16 %v712
    %v1073 = vunpack.c.h.b16 %v712
    %v1074 = vunpack.c.l.b16 %v713
    %v1075 = vunpack.c.h.b16 %v713
    %v1076 = vunpack.c.l.b16 %v714
    %v1077 = vunpack.c.h.b16 %v714
    %v1078 = vunpack.c.l.b16 %v715
    %v1079 = vunpack.c.h.b16 %v715
    %v1080 = vunpack.c.l.b16 %v716
    %v1081 = vunpack.c.h.b16 %v716
    %v1082 = vunpack.c.l.b16 %v717
    %v1083 = vunpack.c.h.b16 %v717
    %v1084 = vunpack.c.l.b16 %v718
    %v1085 = vunpack.c.h.b16 %v718
    %v1086 = vunpack.c.l.b16 %v719
    %v1087 = vunpack.c.h.b16 %v719
    %v1088 = vunpack.c.l.b16 %v720
    %v1089 = vunpack.c.h.b16 %v720
    %v1090 = vunpack.c.l.b16 %v721
    %v1091 = vunpack.c.h.b16 %v721
    %v1092 = vunpack.c.l.b16 %v722
    %v1093 = vunpack.c.h.b16 %v722
    %v1094 = vunpack.c.l.b16 %v723
    %v1095 = vunpack.c.h.b16 %v723
    %v1096 = vunpack.c.l.b16 %v724
    %v1097 = vunpack.c.h.b16 %v724
    %v1098 = vunpack.c.l.b16 %v725
    %v1099 = vunpack.c.h.b16 %v725
    %v1100 = vunpack.c.l.b16 %v726
    %v1101 = vunpack.c.h.b16 %v726
    %v1102 = vunpack.c.l.b16 %v727
    %v1103 = vunpack.c.h.b16 %v727
    %v1104 = vunpack.c.l.b16 %v728
    %v1105 = vunpack.c.h.b16 %v728
    %v1106 = vunpack.c.l.b16 %v729
    %v1107 = vunpack.c.h.b16 %v729
    %v1108 = vunpack.c.l.b16 %v730
    %v1109 = vunpack.c.h.b16 %v730
    %v1110 = vunpack.c.l.b16 %v731
    %v1111 = vunpack.c.h.b16 %v731
    %v1112 = vunpack.c.l.b16 %v732
    %v1113 = vunpack.c.h.b16 %v732
    %v1114 = vunpack.c.l.b16 %v733
    %v1115 = vunpack.c.h.b16 %v733
    %v1116 = vunpack.c.l.b16 %v734
    %v1117 = vunpack.c.h.b16 %v734
    %v1118 = vunpack.c.l.b16 %v735
    %v1119 = vunpack.c.h.b16 %v735
    %v1120 = vunpack.c.l.b16 %v736
    %v1121 = vunpack.c.h.b16 %v736
    %v1122 = vunpack.c.l.b16 %v737
    %v1123 = vunpack.c.h.b16 %v737
    %v1124 = vunpack.c.l.b16 %v738
    %v1125 = vunpack.c.h.b16 %v738
    %v1126 = vunpack.c.l.b16 %v739
    %v1127 = vunpack.c.h.b16 %v739
    %v1128 = vunpack.c.l.b16 %v740
    %v1129 = vunpack.c.h.b16 %v740
    %v1130 = vunpack.c.l.b16 %v741
    %v1131 = vunpack.c.h.b16 %v741
    %v1132 = vunpack.c.l.b16 %v742
    %v1133 = vunpack.c.h.b16 %v742
    %v1134 = vunpack.c.l.b16 %v743
    %v1135 = vunpack.c.h.b16 %v743
    %v1136 = vunpack.c.l.b16 %v744
    %v1137 = vunpack.c.h.b16 %v744
    %v1138 = vunpack.c.l.b16 %v745
    %v1139 = vunpack.c.h.b16 %v745
    %v1140 = vunpack.c.l.b16 %v746
    %v1141 = vunpack.c.h.b16 %v746
    %v1142 = vunpack.c.l.b16 %v747
    %v1143 = vunpack.c.h.b16 %v747
    %v1144 = vpack.c.b16 %v890, %v888
    %v1145 = vpack.c.b16 %v891, %v889
    %v1146 = vpack.c.b16 %v894, %v892
    %v1147 = vpack.c.b16 %v895, %v893
    %v1148 = vpack.c.b16 %v898, %v896
    %v1149 = vpack.c.b16 %v899, %v897
    %v1150 = vpack.c.b16 %v902, %v900
    %v1151 = vpack.c.b16 %v903, %v901
    %v1152 = vpack.c.b16 %v906, %v904
    %v1153 = vpack.c.b16 %v907, %v905
    %v1154 = vpack.c.b16 %v910, %v908
    %v1155 = vpack.c.b16 %v911, %v909
    %v1156 = vpack.c.b16 %v914, %v912
    %v1157 = vpack.c.b16 %v915, %v913
    %v1158 = vpack.c.b16 %v918, %v916
    %v1159 = vpack.c.b16 %v919, %v917
    %v1160 = vpack.c.b16 %v922, %v920
    %v1161 = vpack.c.b16 %v923, %v921
    %v1162 = vpack.c.b16 %v926, %v924
    %v1163 = vpack.c.b16 %v927, %v925
    %v1164 = vpack.c.b16 %v930, %v928
    %v1165 = vpack.c.b16 %v931, %v929
    %v1166 = vpack.c.b16 %v934, %v932
    %v1167 = vpack.c.b16 %v935, %v933
    %v1168 = vpack.c.b16 %v938, %v936
    %v1169 = vpack.c.b16 %v939, %v937
    %v1170 = vpack.c.b16 %v942, %v940
    %v1171 = vpack.c.b16 %v943, %v941
    %v1172 = vpack.c.b16 %v946, %v944
    %v1173 = vpack.c.b16 %v947, %v945
    %v1174 = vpack.c.b16 %v950, %v948
    %v1175 = vpack.c.b16 %v951, %v949
    %v1176 = vpack.c.b16 %v954, %v952
    %v1177 = vpack.c.b16 %v955, %v953
    %v1178 = vpack.c.b16 %v958, %v956
    %v1179 = vpack.c.b16 %v959, %v957
    %v1180 = vpack.c.b16 %v962, %v960
    %v1181 = vpack.c.b16 %v963, %v961
    %v1182 = vpack.c.b16 %v966, %v964
    %v1183 = vpack.c.b16 %v967, %v965
    %v1184 = vpack.c.b16 %v970, %v968
    %v1185 = vpack.c.b16 %v971, %v969
    %v1186 = vpack.c.b16 %v974, %v972
    %v1187 = vpack.c.b16 %v975, %v973
    %v1188 = vpack.c.b16 %v978, %v976
    %v1189 = vpack.c.b16 %v979, %v977
    %v1190 = vpack.c.b16 %v982, %v980
    %v1191 = vpack.c.b16 %v983, %v981
    %v1192 = vpack.c.b16 %v986, %v984
    %v1193 = vpack.c.b16 %v987, %v985
    %v1194 = vpack.c.b16 %v990, %v988
    %v1195 = vpack.c.b16 %v991, %v989
    %v1196 = vpack.c.b16 %v994, %v992
    %v1197 = vpack.c.b16 %v995, %v993
    %v1198 = vpack.c.b16 %v998, %v996
    %v1199 = vpack.c.b16 %v999, %v997
    %v1200 = vpack.c.b16 %v1002, %v1000
    %v1201 = vpack.c.b16 %v1003, %v1001
    %v1202 = vpack.c.b16 %v1006, %v1004
    %v1203 = vpack.c.b16 %v1007, %v1005
    %v1204 = vpack.c.b16 %v1010, %v1008
    %v1205 = vpack.c.b16 %v1011, %v1009
    %v1206 = vpack.c.b16 %v1014, %v1012
    %v1207 = vpack.c.b16 %v1015, %v1013
    %v1208 = vpack.c.b16 %v1018, %v1016
    %v1209 = vpack.c.b16 %v1019, %v1017
    %v1210 = vpack.c.b16 %v1022, %v1020
    %v1211 = vpack.c.b16 %v1023, %v1021
    %v1212 = vpack.c.b16 %v1026, %v1024
    %v1213 = vpack.c.b16 %v1027, %v1025
    %v1214 = vpack.c.b16 %v1030, %v1028
    %v1215 = vpack.c.b16 %v1031, %v1029
    %v1216 = vpack.c.b16 %v1034, %v1032
    %v1217 = vpack.c.b16 %v1035, %v1033
    %v1218 = vpack.c.b16 %v1038, %v1036
    %v1219 = vpack.c.b16 %v1039, %v1037
    %v1220 = vpack.c.b16 %v1042, %v1040
    %v1221 = vpack.c.b16 %v1043, %v1041
    %v1222 = vpack.c.b16 %v1046, %v1044
    %v1223 = vpack.c.b16 %v1047, %v1045
    %v1224 = vpack.c.b16 %v1050, %v1048
    %v1225 = vpack.c.b16 %v1051, %v1049
    %v1226 = vpack.c.b16 %v1054, %v1052
    %v1227 = vpack.c.b16 %v1055, %v1053
    %v1228 = vpack.c.b16 %v1058, %v1056
    %v1229 = vpack.c.b16 %v1059, %v1057
    %v1230 = vpack.c.b16 %v1062, %v1060
    %v1231 = vpack.c.b16 %v1063, %v1061
    %v1232 = vpack.c.b16 %v1066, %v1064
    %v1233 = vpack.c.b16 %v1067, %v1065
    %v1234 = vpack.c.b16 %v1070, %v1068
    %v1235 = vpack.c.b16 %v1071, %v1069
    %v1236 = vpack.c.b16 %v1074, %v1072
    %v1237 = vpack.c.b16 %v1075, %v1073
    %v1238 = vpack.c.b16 %v1078, %v1076
    %v1239 = vpack.c.b16 %v1079, %v1077
    %v1240 = vpack.c.b16 %v1082, %v1080
    %v1241 = vpack.c.b16 %v1083, %v1081
    %v1242 = vpack.c.b16 %v1086, %v1084
    %v1243 = vpack.c.b16 %v1087, %v1085
    %v1244 = vpack.c.b16 %v1090, %v1088
    %v1245 = vpack.c.b16 %v1091, %v1089
    %v1246 = vpack.c.b16 %v1094, %v1092
    %v1247 = vpack.c.b16 %v1095, %v1093
    %v1248 = vpack.c.b16 %v1098, %v1096
    %v1249 = vpack.c.b16 %v1099, %v1097
    %v1250 = vpack.c.b16 %v1102, %v1100
    %v1251 = vpack.c.b16 %v1103, %v1101
    %v1252 = vpack.c.b16 %v1106, %v1104
    %v1253 = vpack.c.b16 %v1107, %v1105
    %v1254 = vpack.c.b16 %v1110, %v1108
    %v1255 = vpack.c.b16 %v1111, %v1109
    %v1256 = vpack.c.b16 %v1114, %v1112
    %v1257 = vpack.c.b16 %v1115, %v1113
    %v1258 = vpack.c.b16 %v1118, %v1116
    %v1259 = vpack.c.b16 %v1119, %v1117
    %v1260 = vpack.c.b16 %v1122, %v1120
    %v1261 = vpack.c.b16 %v1123, %v1121
    %v1262 = vpack.c.b16 %v1126, %v1124
    %v1263 = vpack.c.b16 %v1127, %v1125
    %v1264 = vpack.c.b16 %v1130, %v1128
    %v1265 = vpack.c.b16 %v1131, %v1129
    %v1266 = vpack.c.b16 %v1134, %v1132
    %v1267 = vpack.c.b16 %v1135, %v1133
    %v1268 = vpack.c.b16 %v1138, %v1136
    %v1269 = vpack.c.b16 %v1139, %v1137
    %v1270 = vpack.c.b16 %v1142, %v1140
    %v1271 = vpack.c.b16 %v1143, %v1141
    %1400 = vmatprep.subr.bf16.mxu0 %v1159
    %1401 = vmatpush1.bf16.msra.mxu0 %v1158
    %1402 = vmatprep.subr.bf16.mxu0 %v1157
    %1403 = vmatpush1.bf16.msra.mxu0 %v1156
    %1404 = vmatprep.subr.bf16.mxu0 %v1155
    %1405 = vmatpush1.bf16.msra.mxu0 %v1154
    %1406 = vmatprep.subr.bf16.mxu0 %v1153
    %1407 = vmatpush1.bf16.msra.mxu0 %v1152
    %1408 = vmatprep.subr.bf16.mxu0 %v1151
    %1409 = vmatpush1.bf16.msra.mxu0 %v1150
    %1410 = vmatprep.subr.bf16.mxu0 %v1149
    %1411 = vmatpush1.bf16.msra.mxu0 %v1148
    %1412 = vmatprep.subr.bf16.mxu0 %v1147
    %1413 = vmatpush1.bf16.msra.mxu0 %v1146
    %1414 = vmatprep.subr.bf16.mxu0 %v1145
    %1415 = vmatpush1.bf16.msra.mxu0 %v1144
    %1416 = vmatprep.subr.bf16.mxu0 %v1175
    %1417 = vmatpush2.bf16.msra.mxu0 %v1174
    %1418 = vmatprep.subr.bf16.mxu0 %v1173
    %1419 = vmatpush2.bf16.msra.mxu0 %v1172
    %1420 = vmatprep.subr.bf16.mxu0 %v1171
    %1421 = vmatpush2.bf16.msra.mxu0 %v1170
    %1422 = vmatprep.subr.bf16.mxu0 %v1169
    %1423 = vmatpush2.bf16.msra.mxu0 %v1168
    %1424 = vmatprep.subr.bf16.mxu0 %v1167
    %1425 = vmatpush2.bf16.msra.mxu0 %v1166
    %1426 = vmatprep.subr.bf16.mxu0 %v1165
    %1427 = vmatpush2.bf16.msra.mxu0 %v1164
    %1428 = vmatprep.subr.bf16.mxu0 %v1163
    %1429 = vmatpush2.bf16.msra.mxu0 %v1162
    %1430 = vmatprep.subr.bf16.mxu0 %v1161
    %1431 = vmatpush2.bf16.msra.mxu0 %v1160
    %1432 = vmatprep.mubr.bf16.mxu0 %v613
    %1433 = vmatmul.mubr.bf16.gmra.mxu0 %v612
    %v1434 = vpop.f32.mrf.mxu0
    %v1435 = vadd.f32 %v753, %v1434
    %v1436 = vpop.f32.mrf.mxu0
    %v1437 = vadd.f32 %v757, %v1436
    %v1438 = vpop.f32.mrf.mxu0
    %v1439 = vpop.f32.mrf.mxu0
    %1440 = vdwg.mxu0
    %1441 = vmatprep.subr.bf16.mxu0 %v1191
    %1442 = vmatpush1.bf16.msra.mxu0 %v1190
    %1443 = vmatprep.subr.bf16.mxu0 %v1189
    %1444 = vmatpush1.bf16.msra.mxu0 %v1188
    %1445 = vmatprep.subr.bf16.mxu0 %v1187
    %1446 = vmatpush1.bf16.msra.mxu0 %v1186
    %1447 = vmatprep.subr.bf16.mxu0 %v1185
    %1448 = vmatpush1.bf16.msra.mxu0 %v1184
    %1449 = vmatprep.subr.bf16.mxu0 %v1183
    %1450 = vmatpush1.bf16.msra.mxu0 %v1182
    %1451 = vmatprep.subr.bf16.mxu0 %v1181
    %1452 = vmatpush1.bf16.msra.mxu0 %v1180
    %1453 = vmatprep.subr.bf16.mxu0 %v1179
    %1454 = vmatpush1.bf16.msra.mxu0 %v1178
    %1455 = vmatprep.subr.bf16.mxu0 %v1177
    %1456 = vmatpush1.bf16.msra.mxu0 %v1176
    %1457 = vmatprep.subr.bf16.mxu0 %v1207
    %1458 = vmatpush2.bf16.msra.mxu0 %v1206
    %1459 = vmatprep.subr.bf16.mxu0 %v1205
    %1460 = vmatpush2.bf16.msra.mxu0 %v1204
    %1461 = vmatprep.subr.bf16.mxu0 %v1203
    %1462 = vmatpush2.bf16.msra.mxu0 %v1202
    %1463 = vmatprep.subr.bf16.mxu0 %v1201
    %1464 = vmatpush2.bf16.msra.mxu0 %v1200
    %1465 = vmatprep.subr.bf16.mxu0 %v1199
    %1466 = vmatpush2.bf16.msra.mxu0 %v1198
    %1467 = vmatprep.subr.bf16.mxu0 %v1197
    %1468 = vmatpush2.bf16.msra.mxu0 %v1196
    %1469 = vmatprep.subr.bf16.mxu0 %v1195
    %1470 = vmatpush2.bf16.msra.mxu0 %v1194
    %1471 = vmatprep.subr.bf16.mxu0 %v1193
    %1472 = vmatpush2.bf16.msra.mxu0 %v1192
    %1473 = vmatprep.mubr.bf16.mxu0 %v615
    %1474 = vmatmul.mubr.bf16.gmra.mxu0 %v614
    %v1475 = vpop.f32.mrf.mxu0
    %v1476 = vadd.f32 %v1435, %v1475
    %v1477 = vpop.f32.mrf.mxu0
    %v1478 = vadd.f32 %v1437, %v1477
    %v1479 = vpop.f32.mrf.mxu0
    %v1480 = vpop.f32.mrf.mxu0
    %1481 = vdwg.mxu0
    %1482 = vmatprep.subr.bf16.mxu0 %v1223
    %1483 = vmatpush1.bf16.msra.mxu0 %v1222
    %1484 = vmatprep.subr.bf16.mxu0 %v1221
    %1485 = vmatpush1.bf16.msra.mxu0 %v1220
    %1486 = vmatprep.subr.bf16.mxu0 %v1219
    %1487 = vmatpush1.bf16.msra.mxu0 %v1218
    %1488 = vmatprep.subr.bf16.mxu0 %v1217
    %1489 = vmatpush1.bf16.msra.mxu0 %v1216
    %1490 = vmatprep.subr.bf16.mxu0 %v1215
    %1491 = vmatpush1.bf16.msra.mxu0 %v1214
    %1492 = vmatprep.subr.bf16.mxu0 %v1213
    %1493 = vmatpush1.bf16.msra.mxu0 %v1212
    %1494 = vmatprep.subr.bf16.mxu0 %v1211
    %1495 = vmatpush1.bf16.msra.mxu0 %v1210
    %1496 = vmatprep.subr.bf16.mxu0 %v1209
    %1497 = vmatpush1.bf16.msra.mxu0 %v1208
    %1498 = vmatprep.subr.bf16.mxu0 %v1239
    %1499 = vmatpush2.bf16.msra.mxu0 %v1238
    %1500 = vmatprep.subr.bf16.mxu0 %v1237
    %1501 = vmatpush2.bf16.msra.mxu0 %v1236
    %1502 = vmatprep.subr.bf16.mxu0 %v1235
    %1503 = vmatpush2.bf16.msra.mxu0 %v1234
    %1504 = vmatprep.subr.bf16.mxu0 %v1233
    %1505 = vmatpush2.bf16.msra.mxu0 %v1232
    %1506 = vmatprep.subr.bf16.mxu0 %v1231
    %1507 = vmatpush2.bf16.msra.mxu0 %v1230
    %1508 = vmatprep.subr.bf16.mxu0 %v1229
    %1509 = vmatpush2.bf16.msra.mxu0 %v1228
    %1510 = vmatprep.subr.bf16.mxu0 %v1227
    %1511 = vmatpush2.bf16.msra.mxu0 %v1226
    %1512 = vmatprep.subr.bf16.mxu0 %v1225
    %1513 = vmatpush2.bf16.msra.mxu0 %v1224
    %1514 = vmatprep.mubr.bf16.mxu0 %v617
    %1515 = vmatmul.mubr.bf16.gmra.mxu0 %v616
    %v1516 = vpop.f32.mrf.mxu0
    %v1517 = vadd.f32 %v1476, %v1516
    %v1518 = vpop.f32.mrf.mxu0
    %v1519 = vadd.f32 %v1478, %v1518
    %v1520 = vpop.f32.mrf.mxu0
    %v1521 = vpop.f32.mrf.mxu0
    %1522 = vdwg.mxu0
    %1523 = vmatprep.subr.bf16.mxu0 %v1255
    %1524 = vmatpush1.bf16.msra.mxu0 %v1254
    %1525 = vmatprep.subr.bf16.mxu0 %v1253
    %1526 = vmatpush1.bf16.msra.mxu0 %v1252
    %1527 = vmatprep.subr.bf16.mxu0 %v1251
    %1528 = vmatpush1.bf16.msra.mxu0 %v1250
    %1529 = vmatprep.subr.bf16.mxu0 %v1249
    %1530 = vmatpush1.bf16.msra.mxu0 %v1248
    %1531 = vmatprep.subr.bf16.mxu0 %v1247
    %1532 = vmatpush1.bf16.msra.mxu0 %v1246
    %1533 = vmatprep.subr.bf16.mxu0 %v1245
    %1534 = vmatpush1.bf16.msra.mxu0 %v1244
    %1535 = vmatprep.subr.bf16.mxu0 %v1243
    %1536 = vmatpush1.bf16.msra.mxu0 %v1242
    %1537 = vmatprep.subr.bf16.mxu0 %v1241
    %1538 = vmatpush1.bf16.msra.mxu0 %v1240
    %1539 = vmatprep.subr.bf16.mxu0 %v1271
    %1540 = vmatpush2.bf16.msra.mxu0 %v1270
    %1541 = vmatprep.subr.bf16.mxu0 %v1269
    %1542 = vmatpush2.bf16.msra.mxu0 %v1268
    %1543 = vmatprep.subr.bf16.mxu0 %v1267
    %1544 = vmatpush2.bf16.msra.mxu0 %v1266
    %1545 = vmatprep.subr.bf16.mxu0 %v1265
    %1546 = vmatpush2.bf16.msra.mxu0 %v1264
    %1547 = vmatprep.subr.bf16.mxu0 %v1263
    %1548 = vmatpush2.bf16.msra.mxu0 %v1262
    %1549 = vmatprep.subr.bf16.mxu0 %v1261
    %1550 = vmatpush2.bf16.msra.mxu0 %v1260
    %1551 = vmatprep.subr.bf16.mxu0 %v1259
    %1552 = vmatpush2.bf16.msra.mxu0 %v1258
    %1553 = vmatprep.subr.bf16.mxu0 %v1257
    %1554 = vmatpush2.bf16.msra.mxu0 %v1256
    %1555 = vmatprep.mubr.bf16.mxu0 %v619
    %1556 = vmatmul.mubr.bf16.gmra.mxu0 %v618
    %v1557 = vpop.f32.mrf.mxu0
    %v1558 = vadd.f32 %v1517, %v1557
    %v1559 = vpop.f32.mrf.mxu0
    %v1560 = vadd.f32 %v1519, %v1559
    %v1561 = vpop.f32.mrf.mxu0
    %v1562 = vpop.f32.mrf.mxu0
    %1563 = vdwg.mxu0
    %v1564 = vld [vmem:[%s7] sm:$0x3]
    %v1565 = vld [vmem:[%s8] sm:$0x3]
    %v1566 = vrot.slane %v1558, 4
    %v1567 = vadd.f32 %v1558, %v1566
    %v1568 = vrot.slane %v1567, 2
    %v1569 = vadd.f32 %v1567, %v1568
    %v1570 = vrot.slane %v1569, 1
    %v1571 = vadd.f32 %v1569, %v1570
    %v1572 = vrot.slane %v1560, 4
    %v1573 = vadd.f32 %v1560, %v1572
    %v1574 = vrot.slane %v1573, 2
    %v1575 = vadd.f32 %v1573, %v1574
    %v1576 = vrot.slane %v1575, 1
    %v1577 = vadd.f32 %v1575, %v1576
    %v1578 = vmul.f32 %v1571, %v401
    %v1579 = vmul.f32 %v1577, %v401
    %v1580 = vsub.f32 %v1558, %v1578
    %v1581 = vsub.f32 %v1560, %v1579
    %v1582 = vmul.f32 %v1580, %v1580
    %v1583 = vmul.f32 %v1581, %v1581
    %v1584 = vrot.slane %v1582, 4
    %v1585 = vadd.f32 %v1582, %v1584
    %v1586 = vrot.slane %v1585, 2
    %v1587 = vadd.f32 %v1585, %v1586
    %v1588 = vrot.slane %v1587, 1
    %v1589 = vadd.f32 %v1587, %v1588
    %v1590 = vrot.slane %v1583, 4
    %v1591 = vadd.f32 %v1583, %v1590
    %v1592 = vrot.slane %v1591, 2
    %v1593 = vadd.f32 %v1591, %v1592
    %v1594 = vrot.slane %v1593, 1
    %v1595 = vadd.f32 %v1593, %v1594
    %v1596 = vmul.f32 %v1589, %v401
    %v1597 = vmul.f32 %v1595, %v401
    %v1598 = vadd.f32 %v1596, 1e-05
    %v1599 = vadd.f32 %v1597, 1e-05
    %v1600 = vrsqrt.pop %v1598
    %v1601 = vrsqrt.pop %v1599
    %v1602 = vmul.f32 %v1580, %v1600
    %v1603 = vmul.f32 %v1581, %v1601
    %v1605 = vlaneseq
    %v1606 = vshrl.u32 %v1605, 7
    %v1607 = vsub.s32 0, %v1606
    %v1608 = vrot.slane %v1564, %v1607
    %v1609 = vlaneseq
    %v1610 = vshrl.u32 %v1609, 7
    %v1611 = vsub.s32 1, %v1610
    %v1612 = vrot.slane %v1564, %v1611
    %v1615 = vmul.f32 %v1602, %v1608
    %v1616 = vmul.f32 %v1603, %v1612
    %v1618 = vlaneseq
    %v1619 = vshrl.u32 %v1618, 7
    %v1620 = vsub.s32 0, %v1619
    %v1621 = vrot.slane %v1565, %v1620
    %v1622 = vlaneseq
    %v1623 = vshrl.u32 %v1622, 7
    %v1624 = vsub.s32 1, %v1623
    %v1625 = vrot.slane %v1565, %v1624
    %v1628 = vadd.f32 %v1615, %v1621
    %v1629 = vadd.f32 %v1616, %v1625
    %v1630 = vmax.f32 %v1628, 0.0
    %v1631 = vmax.f32 %v1629, 0.0
    %1632 = vst [vmem:[#allocation4] sm:$0xff] %v1630
    %1633 = vst [vmem:[#allocation4 + $0x8] sm:$0xff] %v1631
    %v1634 = vpack.c.bf16 %v1630, %v1630
    %v1635 = vpack.c.bf16 %v1631, %v1631
    %v1636 = vld [vmem:[%s9] sm:$0xf]
    %v1637 = vld [vmem:[%s9 + $0x4] sm:$0xf]
    %v1638 = vld [vmem:[%s9 + $0x8] sm:$0xf]
    %v1639 = vld [vmem:[%s9 + $0xc] sm:$0xf]
    %v1640 = vld [vmem:[%s9 + $0x10] sm:$0xf]
    %v1641 = vld [vmem:[%s9 + $0x14] sm:$0xf]
    %v1642 = vld [vmem:[%s9 + $0x18] sm:$0xf]
    %v1643 = vld [vmem:[%s9 + $0x1c] sm:$0xf]
    %v1644 = vld [vmem:[%s9 + $0x20] sm:$0xf]
    %v1645 = vld [vmem:[%s9 + $0x24] sm:$0xf]
    %v1646 = vld [vmem:[%s9 + $0x28] sm:$0xf]
    %v1647 = vld [vmem:[%s9 + $0x2c] sm:$0xf]
    %v1648 = vld [vmem:[%s9 + $0x30] sm:$0xf]
    %v1649 = vld [vmem:[%s9 + $0x34] sm:$0xf]
    %v1650 = vld [vmem:[%s9 + $0x38] sm:$0xf]
    %v1651 = vld [vmem:[%s9 + $0x3c] sm:$0xf]
    %v1652 = vld [vmem:[%s9 + $0x40] sm:$0xf]
    %v1653 = vld [vmem:[%s9 + $0x44] sm:$0xf]
    %v1654 = vld [vmem:[%s9 + $0x48] sm:$0xf]
    %v1655 = vld [vmem:[%s9 + $0x4c] sm:$0xf]
    %v1656 = vld [vmem:[%s9 + $0x50] sm:$0xf]
    %v1657 = vld [vmem:[%s9 + $0x54] sm:$0xf]
    %v1658 = vld [vmem:[%s9 + $0x58] sm:$0xf]
    %v1659 = vld [vmem:[%s9 + $0x5c] sm:$0xf]
    %v1660 = vld [vmem:[%s9 + $0x60] sm:$0xf]
    %v1661 = vld [vmem:[%s9 + $0x64] sm:$0xf]
    %v1662 = vld [vmem:[%s9 + $0x68] sm:$0xf]
    %v1663 = vld [vmem:[%s9 + $0x6c] sm:$0xf]
    %v1664 = vld [vmem:[%s9 + $0x70] sm:$0xf]
    %v1665 = vld [vmem:[%s9 + $0x74] sm:$0xf]
    %v1666 = vld [vmem:[%s9 + $0x78] sm:$0xf]
    %v1667 = vld [vmem:[%s9 + $0x7c] sm:$0xf]
    %v1668 = vld [vmem:[%s10] sm:$0x1]
    %v1670 = vlaneseq
    %v1671 = vshrl.u32 %v1670, 7
    %v1672 = vsub.s32 0, %v1671
    %v1673 = vrot.slane %v1668, %v1672
    %v1707 = vunpack.c.l.b16 %v1636
    %v1708 = vunpack.c.l.b16 %v1637
    %v1709 = vunpack.c.l.b16 %v1638
    %v1710 = vunpack.c.l.b16 %v1639
    %v1711 = vunpack.c.l.b16 %v1640
    %v1712 = vunpack.c.l.b16 %v1641
    %v1713 = vunpack.c.l.b16 %v1642
    %v1714 = vunpack.c.l.b16 %v1643
    %v1715 = vunpack.c.l.b16 %v1644
    %v1716 = vunpack.c.l.b16 %v1645
    %v1717 = vunpack.c.l.b16 %v1646
    %v1718 = vunpack.c.l.b16 %v1647
    %v1719 = vunpack.c.l.b16 %v1648
    %v1720 = vunpack.c.l.b16 %v1649
    %v1721 = vunpack.c.l.b16 %v1650
    %v1722 = vunpack.c.l.b16 %v1651
    %v1723 = vunpack.c.l.b16 %v1652
    %v1724 = vunpack.c.l.b16 %v1653
    %v1725 = vunpack.c.l.b16 %v1654
    %v1726 = vunpack.c.l.b16 %v1655
    %v1727 = vunpack.c.l.b16 %v1656
    %v1728 = vunpack.c.l.b16 %v1657
    %v1729 = vunpack.c.l.b16 %v1658
    %v1730 = vunpack.c.l.b16 %v1659
    %v1731 = vunpack.c.l.b16 %v1660
    %v1732 = vunpack.c.l.b16 %v1661
    %v1733 = vunpack.c.l.b16 %v1662
    %v1734 = vunpack.c.l.b16 %v1663
    %v1735 = vunpack.c.l.b16 %v1664
    %v1736 = vunpack.c.l.b16 %v1665
    %v1737 = vunpack.c.l.b16 %v1666
    %v1738 = vunpack.c.l.b16 %v1667
    %v1739 = vpack.c.b16 %v1708, %v1707
    %v1740 = vpack.c.b16 %v1710, %v1709
    %v1741 = vpack.c.b16 %v1712, %v1711
    %v1742 = vpack.c.b16 %v1714, %v1713
    %v1743 = vpack.c.b16 %v1716, %v1715
    %v1744 = vpack.c.b16 %v1718, %v1717
    %v1745 = vpack.c.b16 %v1720, %v1719
    %v1746 = vpack.c.b16 %v1722, %v1721
    %v1747 = vpack.c.b16 %v1724, %v1723
    %v1748 = vpack.c.b16 %v1726, %v1725
    %v1749 = vpack.c.b16 %v1728, %v1727
    %v1750 = vpack.c.b16 %v1730, %v1729
    %v1751 = vpack.c.b16 %v1732, %v1731
    %v1752 = vpack.c.b16 %v1734, %v1733
    %v1753 = vpack.c.b16 %v1736, %v1735
    %v1754 = vpack.c.b16 %v1738, %v1737
    %1771 = vmatprep.subr.bf16.mxu0 0
    %1772 = vmatpush1.bf16.msra.mxu0 %v1746
    %1773 = vmatprep.subr.bf16.mxu0 0
    %1774 = vmatpush1.bf16.msra.mxu0 %v1745
    %1775 = vmatprep.subr.bf16.mxu0 0
    %1776 = vmatpush1.bf16.msra.mxu0 %v1744
    %1777 = vmatprep.subr.bf16.mxu0 0
    %1778 = vmatpush1.bf16.msra.mxu0 %v1743
    %1779 = vmatprep.subr.bf16.mxu0 0
    %1780 = vmatpush1.bf16.msra.mxu0 %v1742
    %1781 = vmatprep.subr.bf16.mxu0 0
    %1782 = vmatpush1.bf16.msra.mxu0 %v1741
    %1783 = vmatprep.subr.bf16.mxu0 0
    %1784 = vmatpush1.bf16.msra.mxu0 %v1740
    %1785 = vmatprep.subr.bf16.mxu0 0
    %1786 = vmatpush1.bf16.msra.mxu0 %v1739
    %1787 = vmatprep.subr.bf16.mxu0 0
    %1788 = vmatpush2.bf16.msra.mxu0 %v1754
    %1789 = vmatprep.subr.bf16.mxu0 0
    %1790 = vmatpush2.bf16.msra.mxu0 %v1753
    %1791 = vmatprep.subr.bf16.mxu0 0
    %1792 = vmatpush2.bf16.msra.mxu0 %v1752
    %1793 = vmatprep.subr.bf16.mxu0 0
    %1794 = vmatpush2.bf16.msra.mxu0 %v1751
    %1795 = vmatprep.subr.bf16.mxu0 0
    %1796 = vmatpush2.bf16.msra.mxu0 %v1750
    %1797 = vmatprep.subr.bf16.mxu0 0
    %1798 = vmatpush2.bf16.msra.mxu0 %v1749
    %1799 = vmatprep.subr.bf16.mxu0 0
    %1800 = vmatpush2.bf16.msra.mxu0 %v1748
    %1801 = vmatprep.subr.bf16.mxu0 0
    %1802 = vmatpush2.bf16.msra.mxu0 %v1747
    %1803 = vmatprep.mubr.bf16.mxu0 %v1635
    %1804 = vmatmul.mubr.bf16.gmra.mxu0 %v1634
    %v1805 = vpop.f32.mrf.mxu0
    %v1806 = vadd.f32 %v1673, %v1805
    %v1807 = vpop.f32.mrf.mxu0
    %v1808 = vpop.f32.mrf.mxu0
    %v1809 = vpop.f32.mrf.mxu0
    %1810 = vdwg.mxu0
    %1811 = vmax.xlane.f32.xlu0 %v1806
    %v1812 = vpop.xlane.xlu0 %1811
    %v1813 = vsub.f32 %v1806, %v1812
    %v1814 = vmul.f32 %v1813, 1.442695
    %v1815 = vpow.pop %v1814
    %1816 = vadd.xlane.f32.xlu0 %v1815
    %v1817 = vpop.xlane.xlu0 %1816
    %v1818 = vrcp.pop %v1817
    %v1819 = vmul.f32 %v1815, %v1818
    %1820 = vst [vmem:[#allocation2] sm:$0xff] %v1819
    // Predicated region
    $region46: #{lstm_forward.5} parent=1 // pred_check
      _
    $region47: #{lstm_forward.5} parent=1 // pred_check_branch
      %1822 = sbr.rel (0) target = $region49
    $region48: #{lstm_forward.5} parent=1 // pred_region
      %s1824 = ssub.s32 128, 128
      %1825 = vsyncadd [#allocation3], %s1824
      %s1827 = sshll.u32 [#allocation2], 4
      %s1828 = int_to_ptr.vmem [resolvable:$true] %s1827
      %1830 = dma.vmem_to_hbm [thread:$0]  %s1828, 128, %s11, [#allocation3]
    $region49: #{lstm_forward.5} parent=1 // pred_fallthru
      _
    // Predicated region
    $region50: #{lstm_forward.5} parent=1 // pred_check
      _
    $region51: #{lstm_forward.5} parent=1 // pred_check_branch
      %1832 = sbr.rel (0) target = $region53
    $region52: #{lstm_forward.5} parent=1 // pred_region
      %s1834 = ssub.s32 256, 256
      %1835 = vsyncadd [#allocation5], %s1834
      %s1837 = sshll.u32 [#allocation4], 4
      %s1838 = int_to_ptr.vmem [resolvable:$true] %s1837
      %1840 = dma.vmem_to_hbm [thread:$0]  %s1838, 256, %s12, [#allocation5]
    $region53: #{lstm_forward.5} parent=1 // pred_fallthru
      _
    // Predicated region
    $region54: #{lstm_forward.5} parent=1 // pred_check
      _
    $region55: #{lstm_forward.5} parent=1 // pred_check_branch
      %1842 = sbr.rel (0) target = $region57
    $region56: #{lstm_forward.5} parent=1 // pred_region
      %1843 = dma.done [#allocation3], 128
    $region57: #{lstm_forward.5} parent=1 // pred_fallthru
      _
    // Predicated region
    $region58: #{lstm_forward.5} parent=1 // pred_check
      _
    $region59: #{lstm_forward.5} parent=1 // pred_check_branch
      %1845 = sbr.rel (0) target = $region61
    $region60: #{lstm_forward.5} parent=1 // pred_region
      %1846 = dma.done [#allocation5], 256
    $region61: #{lstm_forward.5} parent=1 // pred_fallthru
      _
    %1847 = vsyncpa [#allocation3], 1
    %1848 = vsyncpa [#allocation5], 1

</llo_original>
